<compile_context>
chip_gen: v5e
topology: v5e:2x2
jax: 0.10.0
libtpu: 0.0.40
codegen_flags: <defaults>
</compile_context>

<pallas_src>
from functools import partial

import jax
import jax.numpy as jnp
from jax.experimental import pallas as pl
from jax.experimental.pallas import tpu as pltpu


def _pick_batch_block(B, per_b_bytes, fixed_bytes, budget_bytes=24 << 20,
                      min_steps=4):
    """Largest divisor bb of B with >= min(min_steps, B) grid steps that fits
    the VMEM budget (constants + double-buffered blocks + intermediates)."""
    target_steps = min(min_steps, B)
    best = 1
    for bb in range(1, B + 1):
        if B % bb:
            continue
        if B // bb < target_steps:
            break
        if fixed_bytes + bb * per_b_bytes <= budget_bytes:
            best = bb
    return best


def mrstan_block_ntf(x_ntf, W1, W2, W3, bs, Vs, cheb, Theta, Wc, bc, gamma,
                     beta, *, compute_dtype=jnp.float32, batch_block=None,
                     single_buffer_consts=True):
    """x_ntf: (B, N, T, F_in) -> (B, N, T, F_out), lane-dense layout throughout."""
    B, N, T, F_in = x_ntf.shape
    K, _, F_out = Theta.shape
    TF_in, TF_out = T * F_in, T * F_out
    f32 = jnp.float32
    cdtype = compute_dtype
    cbytes = jnp.dtype(cdtype).itemsize

    Np = ((N + 7) // 8) * 8          # pad vertices to a sublane multiple
    pad = Np - N

    eye_t = jnp.eye(T, dtype=f32)

    # ---- one-time HBM-side weight expansions (plain XLA, outside the kernel) ----
    w12 = (W1.astype(f32)[:, None, None] * W2.astype(f32)[None]).reshape(TF_in, T)
    w3e = jnp.kron(eye_t, W3.astype(f32).reshape(F_in, 1))              # (TF_in, T)
    theta_bd = jnp.concatenate(
        [jnp.kron(eye_t, Theta[k].astype(f32)) for k in range(K)], axis=1)
    wc_bd = jnp.kron(eye_t, Wc.astype(f32))                             # (TF_in, TF_out)
    bc_bd = jnp.tile(bc.astype(f32), T).reshape(1, TF_out)
    gamma_bd = jnp.tile(gamma.astype(f32), T).reshape(1, TF_out)
    beta_bd = jnp.tile(beta.astype(f32), T).reshape(1, TF_out)
    # thin LayerNorm reduce / broadcast matrices (replace dense TFxTF stats matmul)
    r_ln = jnp.kron(eye_t, jnp.full((F_out, 1), 1.0 / F_out, f32))      # (TF_out, T)
    e_ln = jnp.kron(eye_t, jnp.ones((1, F_out), f32))                   # (T, TF_out)

    cheb_t3 = jnp.pad(jnp.transpose(cheb.astype(f32), (0, 2, 1)),
                      ((0, 0), (0, pad), (0, pad)))                     # (K,Np,Np) = T_k^T
    bs_t = jnp.pad(jnp.transpose(bs.astype(f32)[0]), ((0, pad), (0, pad)))
    vs_t = jnp.pad(jnp.transpose(Vs.astype(f32)), ((0, pad), (0, pad)))
    # additive softmax mask: padded vertices must not dilute the dim=1 softmax
    att_mask = jnp.where(jnp.arange(Np) < N, 0.0, -1e30).astype(f32).reshape(1, Np)

    x_flat = jnp.pad(x_ntf.astype(f32).reshape(B, N, TF_in),
                     ((0, 0), (0, pad), (0, 0)))

    # compute-dtype cast (MXU-operand side only; softmax / LayerNorm stay f32)
    x_flat = x_flat.astype(cdtype)
    w12, w3e = w12.astype(cdtype), w3e.astype(cdtype)
    theta_bd, wc_bd = theta_bd.astype(cdtype), wc_bd.astype(cdtype)
    cheb_t3, vs_t = cheb_t3.astype(cdtype), vs_t.astype(cdtype)

    consts = (w12, w3e, bs_t, vs_t, att_mask, cheb_t3, theta_bd, wc_bd, bc_bd,
              r_ln, e_ln, gamma_bd, beta_bd)
    const_bytes = sum(int(c.size) * c.dtype.itemsize for c in consts)
    const_buf = 1 if single_buffer_consts else 2

    # per-batch-element activation bytes: double-buffered x/out blocks +
    # f32 intermediates (y_cat, res, lhs, rhs); fixed: constants + per-b temps.
    per_b_bytes = (Np * TF_in * cbytes * 2 + Np * TF_out * 4 * 2
                   + Np * ((K + 1) * TF_out + 2 * T) * 4)
    fixed_bytes = const_bytes * const_buf + Np * (4 * Np + 3 * TF_out) * 4
    if batch_block is None:
        batch_block = _pick_batch_block(B, per_b_bytes, fixed_bytes)
    assert B % batch_block == 0, (B, batch_block)
    grid = (B // batch_block,)

    vmem_limit = int(min(60 << 20,
                         max(16 << 20,
                             1.4 * (fixed_bytes + batch_block * per_b_bytes))))

    approx_recip = jnp.dtype(cdtype) != jnp.dtype(jnp.float32)

    def kernel(x_ref, w12_ref, w3e_ref, bs_t_ref, vs_t_ref, mask_ref, cheb_ref,
               theta_ref, wc_ref, bc_ref, rln_ref, eln_ref, gamma_ref, beta_ref,
               out_ref):
        bb, n, tf_in = x_ref.shape            # batch_block, Np, T*F_in
        tf_out = out_ref.shape[-1]            # T*F_out (lane-dense)
        rows = bb * n

        # single canonical flattened view (n % 8 == 0 -> free reshape)
        x = x_ref[...].reshape(rows, tf_in)

        # ---- batched channel transforms: one MXU dot each over bb*n rows ----
        res = jnp.dot(x, wc_ref[...], preferred_element_type=jnp.float32) + bc_ref[...]
        y_cat = jnp.dot(x, theta_ref[...], preferred_element_type=jnp.float32)  # (rows, K*TF_out)
        lhs = jnp.dot(x, w12_ref[...], preferred_element_type=jnp.float32)      # (rows, T): (x@W1)@W2
        rhs = jnp.dot(x, w3e_ref[...], preferred_element_type=jnp.float32)      # (rows, T): W3@x

        bs_t = bs_t_ref[...]
        vs_t = vs_t_ref[...]
        mask = mask_ref[...]
        rln = rln_ref[...]
        eln = eln_ref[...]
        gamma_b = gamma_ref[...]
        beta_b = beta_ref[...]

        # TODO(synk): convert to lax.fori_loop with pl.ds slicing if batch_block
        # grows large enough for full unrolling to bloat code / vreg live ranges.
        for b in range(bb):
            sl = slice(b * n, (b + 1) * n)
            # product^T via dot_general (contract the T axes; no explicit transpose)
            prod_t = jax.lax.dot_general(
                rhs[sl], lhs[sl], (((1,), (1,)), ((), ())),
                preferred_element_type=jnp.float32)                   # (n, n)
            sig_t = jax.nn.sigmoid(prod_t + bs_t)
            s_t = jnp.dot(sig_t.astype(vs_t.dtype), vs_t,
                          preferred_element_type=jnp.float32)         # = S^T
            s_t = s_t + mask                                          # kill padded vertices
            s_t = s_t - jnp.max(s_t, axis=-1, keepdims=True)
            e = jnp.exp(s_t)
            att_t = e * pl.reciprocal(jnp.sum(e, axis=-1, keepdims=True),
                                      approx=approx_recip)            # softmax(S, dim=1)^T

            # ---- K-order graph conv (Theta pre-applied), K lane-aligned dots ----
            att_c = att_t.astype(cheb_ref.dtype)
            gcn_b = None
            for k in range(K):
                g_k = cheb_ref[k] * att_c                             # (n, n) = (T_k * att)^T
                y_k = y_cat[sl, k * tf_out:(k + 1) * tf_out].astype(cheb_ref.dtype)
                d = jnp.dot(g_k, y_k, preferred_element_type=jnp.float32)
                gcn_b = d if gcn_b is None else gcn_b + d

            # ---- fused epilogue: residual add + ReLU + grouped LayerNorm + store ----
            h = jnp.maximum(res[sl] + jnp.maximum(gcn_b, 0.0), 0.0)
            mean = jnp.dot(jnp.dot(h, rln, preferred_element_type=jnp.float32),
                           eln, preferred_element_type=jnp.float32)   # lane-dense broadcast
            hc = h - mean
            var_t = jnp.dot(hc * hc, rln, preferred_element_type=jnp.float32)  # (n, T)
            inv = jnp.dot(jax.lax.rsqrt(var_t + 1e-5), eln,
                          preferred_element_type=jnp.float32)
            out_ref[b, :, :] = hc * inv * gamma_b + beta_b

    def const_spec(a):
        nd = a.ndim
        if single_buffer_consts:
            # constants never change across grid steps -> single buffer
            return pl.BlockSpec(a.shape, lambda i, _nd=nd: (0,) * _nd,
                                pipeline_mode=pl.Buffered(1))
        return pl.BlockSpec(a.shape, lambda i, _nd=nd: (0,) * _nd)

    flops = 2 * B * Np * (TF_in * TF_out * (K + 1)        # fused Theta + residual conv
                          + 2 * TF_in * T                 # attention projections
                          + Np * T + Np * Np              # product + Vs @ sigmoid
                          + K * Np * TF_out               # graph conv
                          + 4 * T * TF_out)               # LayerNorm reduce/expand
    transcendentals = B * Np * (2 * Np + T + 1)
    bytes_accessed = (int(x_flat.size) * cbytes + B * Np * TF_out * 4 + const_bytes)

    out = pl.pallas_call(
        kernel,
        out_shape=jax.ShapeDtypeStruct((B, Np, TF_out), f32),
        grid=grid,
        in_specs=[pl.BlockSpec((batch_block, Np, TF_in), lambda i: (i, 0, 0))]
                 + [const_spec(c) for c in consts],
        out_specs=pl.BlockSpec((batch_block, Np, TF_out), lambda i: (i, 0, 0)),
        compiler_params=pltpu.CompilerParams(
            dimension_semantics=("parallel",),
            vmem_limit_bytes=vmem_limit),
        cost_estimate=pl.CostEstimate(flops=int(flops),
                                      transcendentals=int(transcendentals),
                                      bytes_accessed=int(bytes_accessed)),
    )(x_flat, *consts)

    if pad:
        out = out[:, :N, :]
    return out.reshape(B, N, T, F_out)


@partial(jax.jit,
         static_argnames=("compute_dtype", "single_buffer_consts", "batch_block"))
def mrstan_block(x, W1, W2, W3, bs, Vs, cheb, Theta, Wc, bc, gamma, beta, *,
                 compute_dtype=jnp.float32, single_buffer_consts=True,
                 batch_block=None):
    """PyTorch-layout adapter: x (B, N, F_in, T) -> (B, N, F_out, T).

    Pass compute_dtype=jnp.bfloat16 in production to halve DMA bytes / constant
    VMEM and use native-rate bf16 MXU (f32 accumulation; softmax/LN stay f32).
    """
    x_ntf = jnp.transpose(x, (0, 1, 3, 2))
    out = mrstan_block_ntf(x_ntf, W1, W2, W3, bs, Vs, cheb, Theta, Wc, bc,
                           gamma, beta, compute_dtype=compute_dtype,
                           batch_block=batch_block,
                           single_buffer_consts=single_buffer_consts)
    return jnp.transpose(out, (0, 1, 3, 2))


def ref_forward(x, W1, W2, W3, bs, Vs, cheb, Theta, Wc, bc, gamma, beta):
    """Pure-JAX transcription of the PyTorch forward (correctness reference)."""
    B, N, F, T = x.shape
    K, _, F_out = Theta.shape
    # spatial attention
    lhs = jnp.einsum('bnft,t->bnf', x, W1)
    lhs = jnp.einsum('bnf,ft->bnt', lhs, W2)
    rhs = jnp.einsum('f,bnft->bnt', W3, x)
    product = jnp.einsum('bnt,bmt->bnm', lhs, rhs)
    sig = jax.nn.sigmoid(product + bs)
    S = jnp.einsum('nm,bmk->bnk', Vs, sig)
    att = jax.nn.softmax(S, axis=1)
    # cheb conv with attention
    out = jnp.zeros((B, N, F_out, T), jnp.float32)
    for k in range(K):
        tk_at = cheb[k][None] * att
        rhs_k = jnp.einsum('bmn,bmft->bnft', tk_at, x)
        out = out + jnp.einsum('bnft,fo->bnot', rhs_k, Theta[k])
    gcn = jax.nn.relu(out)                                   # (B, N, F_out, T)
    spatial_gcn = jnp.transpose(gcn, (0, 2, 1, 3))           # (B, F_out, N, T)
    x_res = jnp.einsum('bnft,fo->bont', x, Wc) + bc[None, :, None, None]
    h = jax.nn.relu(x_res + spatial_gcn)                     # (B, F_out, N, T)
    h = jnp.transpose(h, (0, 3, 2, 1))                       # (B, T, N, F_out)
    mean = jnp.mean(h, axis=-1, keepdims=True)
    var = jnp.mean((h - mean) ** 2, axis=-1, keepdims=True)
    h = (h - mean) / jnp.sqrt(var + 1e-5) * gamma + beta
    return jnp.transpose(h, (0, 2, 3, 1))                    # (B, N, F_out, T)


if __name__ == "__main__":
    # small, self-consistent shapes (T*F_out = 128 -> lane-dense output slab)
    B, N, F_in, T = 8, 16, 4, 8
    K = 3
    nb_chev_filter = 16            # == nb_time_filter, time_strides = 1
    F_out = nb_chev_filter

    key = jax.random.PRNGKey(0)
    ks = jax.random.split(key, 12)
    x     = jax.random.normal(ks[0], (B, N, F_in, T), jnp.float32)
    W1    = 0.1 * jax.random.normal(ks[1], (T,), jnp.float32)
    W2    = 0.1 * jax.random.normal(ks[2], (F_in, T), jnp.float32)
    W3    = 0.1 * jax.random.normal(ks[3], (F_in,), jnp.float32)
    bs    = 0.1 * jax.random.normal(ks[4], (1, N, N), jnp.float32)
    Vs    = 0.1 * jax.random.normal(ks[5], (N, N), jnp.float32)
    cheb  = 0.2 * jax.random.normal(ks[6], (K, N, N), jnp.float32)
    Theta = 0.2 * jax.random.normal(ks[7], (K, F_in, F_out), jnp.float32)
    Wc    = 0.2 * jax.random.normal(ks[8], (F_in, F_out), jnp.float32)  # 1x1 conv (in, out)
    bc    = 0.1 * jax.random.normal(ks[9], (F_out,), jnp.float32)
    gamma = 1.0 + 0.1 * jax.random.normal(ks[10], (F_out,), jnp.float32)
    beta  = 0.1 * jax.random.normal(ks[11], (F_out,), jnp.float32)

    params = (W1, W2, W3, bs, Vs, cheb, Theta, Wc, bc, gamma, beta)
    ref = ref_forward(x, *params)

    def run_and_check(compute_dtype, single_buffer_consts, tol):
        out = jax.block_until_ready(
            mrstan_block(x, *params, compute_dtype=compute_dtype,
                         single_buffer_consts=single_buffer_consts))
        assert out.shape == (B, N, F_out, T), out.shape
        err = float(jnp.max(jnp.abs(out.astype(jnp.float32) - ref)))
        assert err <= tol, ("max abs err", err, "dtype", compute_dtype)
        return out

    # f32: strict parity with the PyTorch math; bf16: fast path, loose sanity bound.
    for cdtype, tol in ((jnp.float32, 2e-3), (jnp.bfloat16, 1e-1)):
        try:
            run_and_check(cdtype, True, tol)
        except Exception:
            # pl.Buffered(1) single-buffered constants may be unsupported on this
            # JAX build; retry with default double-buffered constants.
            run_and_check(cdtype, False, tol)

    print("KERNEL_OK")
</pallas_src>

<mosaic_0001>
module attributes {stable_mosaic.version = 11 : i64} {
  func.func @kernel(%arg0: i32, %arg1: memref<2x16x32xf32, #tpu.memory_space<vmem>>, %arg2: memref<32x8xf32, #tpu.memory_space<vmem>>, %arg3: memref<32x8xf32, #tpu.memory_space<vmem>>, %arg4: memref<16x16xf32, #tpu.memory_space<vmem>>, %arg5: memref<16x16xf32, #tpu.memory_space<vmem>>, %arg6: memref<1x16xf32, #tpu.memory_space<vmem>>, %arg7: memref<3x16x16xf32, #tpu.memory_space<vmem>>, %arg8: memref<32x384xf32, #tpu.memory_space<vmem>>, %arg9: memref<32x128xf32, #tpu.memory_space<vmem>>, %arg10: memref<1x128xf32, #tpu.memory_space<vmem>>, %arg11: memref<128x8xf32, #tpu.memory_space<vmem>>, %arg12: memref<8x128xf32, #tpu.memory_space<vmem>>, %arg13: memref<1x128xf32, #tpu.memory_space<vmem>>, %arg14: memref<1x128xf32, #tpu.memory_space<vmem>>, %arg15: memref<2x16x128xf32, #tpu.memory_space<vmem>>) attributes {dimension_semantics = [#tpu.dimension_semantics<parallel>], iteration_bounds = array<i64: 4>, scalar_prefetch = 0 : i64, scratch_operands = 0 : i64, tpu.core_type = #tpu.core_type<tc>, window_params = [{transform_indices = @transform_0, window_bounds = array<i64: 2, 16, 32>}, {pipeline_mode = #tpu.pipeline_mode<synchronous>, transform_indices = @transform_1, window_bounds = array<i64: 32, 8>}, {pipeline_mode = #tpu.pipeline_mode<synchronous>, transform_indices = @transform_2, window_bounds = array<i64: 32, 8>}, {pipeline_mode = #tpu.pipeline_mode<synchronous>, transform_indices = @transform_3, window_bounds = array<i64: 16, 16>}, {pipeline_mode = #tpu.pipeline_mode<synchronous>, transform_indices = @transform_4, window_bounds = array<i64: 16, 16>}, {pipeline_mode = #tpu.pipeline_mode<synchronous>, transform_indices = @transform_5, window_bounds = array<i64: 1, 16>}, {pipeline_mode = #tpu.pipeline_mode<synchronous>, transform_indices = @transform_6, window_bounds = array<i64: 3, 16, 16>}, {pipeline_mode = #tpu.pipeline_mode<synchronous>, transform_indices = @transform_7, window_bounds = array<i64: 32, 384>}, {pipeline_mode = #tpu.pipeline_mode<synchronous>, transform_indices = @transform_8, window_bounds = array<i64: 32, 128>}, {pipeline_mode = #tpu.pipeline_mode<synchronous>, transform_indices = @transform_9, window_bounds = array<i64: 1, 128>}, {pipeline_mode = #tpu.pipeline_mode<synchronous>, transform_indices = @transform_10, window_bounds = array<i64: 128, 8>}, {pipeline_mode = #tpu.pipeline_mode<synchronous>, transform_indices = @transform_11, window_bounds = array<i64: 8, 128>}, {pipeline_mode = #tpu.pipeline_mode<synchronous>, transform_indices = @transform_12, window_bounds = array<i64: 1, 128>}, {pipeline_mode = #tpu.pipeline_mode<synchronous>, transform_indices = @transform_13, window_bounds = array<i64: 1, 128>}, {transform_indices = @transform_14, window_bounds = array<i64: 2, 16, 128>}]} {
    %c0 = arith.constant 0 : index
    %c0_0 = arith.constant 0 : index
    %c0_1 = arith.constant 0 : index
    %0 = vector.load %arg1[%c0, %c0_0, %c0_1] : memref<2x16x32xf32, #tpu.memory_space<vmem>>, vector<2x16x32xf32>
    %1 = vector.shape_cast %0 : vector<2x16x32xf32> to vector<32x32xf32>
    %c0_2 = arith.constant 0 : index
    %c0_3 = arith.constant 0 : index
    %2 = vector.load %arg9[%c0_2, %c0_3] : memref<32x128xf32, #tpu.memory_space<vmem>>, vector<32x128xf32>
    %cst = arith.constant dense<0.000000e+00> : vector<32x128xf32>
    %3 = tpu.matmul %1, %2, %cst {dimension_numbers = #tpu.dot_dimension_numbers<[1], [0], [0], [1], [0, 0, 1, 1], [], []>} : vector<32x32xf32>, vector<32x128xf32>, vector<32x128xf32> -> vector<32x128xf32>
    %c0_4 = arith.constant 0 : index
    %c0_5 = arith.constant 0 : index
    %4 = vector.load %arg10[%c0_4, %c0_5] : memref<1x128xf32, #tpu.memory_space<vmem>>, vector<1x128xf32>
    %5 = vector.broadcast %4 : vector<1x128xf32> to vector<32x128xf32>
    %6 = arith.addf %3, %5 : vector<32x128xf32>
    %c0_6 = arith.constant 0 : index
    %c0_7 = arith.constant 0 : index
    %7 = vector.load %arg8[%c0_6, %c0_7] : memref<32x384xf32, #tpu.memory_space<vmem>>, vector<32x384xf32>
    %cst_8 = arith.constant dense<0.000000e+00> : vector<32x384xf32>
    %8 = tpu.matmul %1, %7, %cst_8 {dimension_numbers = #tpu.dot_dimension_numbers<[1], [0], [0], [1], [0, 0, 1, 1], [], []>} : vector<32x32xf32>, vector<32x384xf32>, vector<32x384xf32> -> vector<32x384xf32>
    %c0_9 = arith.constant 0 : index
    %c0_10 = arith.constant 0 : index
    %9 = vector.load %arg2[%c0_9, %c0_10] : memref<32x8xf32, #tpu.memory_space<vmem>>, vector<32x8xf32>
    %cst_11 = arith.constant dense<0.000000e+00> : vector<32x8xf32>
    %10 = tpu.matmul %1, %9, %cst_11 {dimension_numbers = #tpu.dot_dimension_numbers<[1], [0], [0], [1], [0, 0, 1, 1], [], []>} : vector<32x32xf32>, vector<32x8xf32>, vector<32x8xf32> -> vector<32x8xf32>
    %c0_12 = arith.constant 0 : index
    %c0_13 = arith.constant 0 : index
    %11 = vector.load %arg3[%c0_12, %c0_13] : memref<32x8xf32, #tpu.memory_space<vmem>>, vector<32x8xf32>
    %cst_14 = arith.constant dense<0.000000e+00> : vector<32x8xf32>
    %12 = tpu.matmul %1, %11, %cst_14 {dimension_numbers = #tpu.dot_dimension_numbers<[1], [0], [0], [1], [0, 0, 1, 1], [], []>} : vector<32x32xf32>, vector<32x8xf32>, vector<32x8xf32> -> vector<32x8xf32>
    %c0_15 = arith.constant 0 : index
    %c0_16 = arith.constant 0 : index
    %13 = vector.load %arg4[%c0_15, %c0_16] : memref<16x16xf32, #tpu.memory_space<vmem>>, vector<16x16xf32>
    %c0_17 = arith.constant 0 : index
    %c0_18 = arith.constant 0 : index
    %14 = vector.load %arg5[%c0_17, %c0_18] : memref<16x16xf32, #tpu.memory_space<vmem>>, vector<16x16xf32>
    %c0_19 = arith.constant 0 : index
    %c0_20 = arith.constant 0 : index
    %15 = vector.load %arg6[%c0_19, %c0_20] : memref<1x16xf32, #tpu.memory_space<vmem>>, vector<1x16xf32>
    %c0_21 = arith.constant 0 : index
    %c0_22 = arith.constant 0 : index
    %16 = vector.load %arg11[%c0_21, %c0_22] : memref<128x8xf32, #tpu.memory_space<vmem>>, vector<128x8xf32>
    %c0_23 = arith.constant 0 : index
    %c0_24 = arith.constant 0 : index
    %17 = vector.load %arg12[%c0_23, %c0_24] : memref<8x128xf32, #tpu.memory_space<vmem>>, vector<8x128xf32>
    %c0_25 = arith.constant 0 : index
    %c0_26 = arith.constant 0 : index
    %18 = vector.load %arg13[%c0_25, %c0_26] : memref<1x128xf32, #tpu.memory_space<vmem>>, vector<1x128xf32>
    %c0_27 = arith.constant 0 : index
    %c0_28 = arith.constant 0 : index
    %19 = vector.load %arg14[%c0_27, %c0_28] : memref<1x128xf32, #tpu.memory_space<vmem>>, vector<1x128xf32>
    %20 = vector.extract_strided_slice %12 {offsets = [0, 0], sizes = [16, 8], strides = [1, 1]} : vector<32x8xf32> to vector<16x8xf32>
    %21 = vector.extract_strided_slice %10 {offsets = [0, 0], sizes = [16, 8], strides = [1, 1]} : vector<32x8xf32> to vector<16x8xf32>
    %cst_29 = arith.constant dense<0.000000e+00> : vector<16x16xf32>
    %22 = tpu.matmul %20, %21, %cst_29 {dimension_numbers = #tpu.dot_dimension_numbers<[1], [1], [0], [0], [0, 0, 1, 0], [], []>} : vector<16x8xf32>, vector<16x8xf32>, vector<16x16xf32> -> vector<16x16xf32>
    %23 = arith.addf %22, %13 : vector<16x16xf32>
    %24 = arith.negf %23 : vector<16x16xf32>
    %25 = math.exp %24 : vector<16x16xf32>
    %cst_30 = arith.constant 1.000000e+00 : f32
    %26 = vector.broadcast %cst_30 : f32 to vector<16x16xf32>
    %27 = arith.addf %26, %25 : vector<16x16xf32>
    %28 = arith.divf %26, %27 : vector<16x16xf32>
    %cst_31 = arith.constant dense<0.000000e+00> : vector<16x16xf32>
    %29 = tpu.matmul %28, %14, %cst_31 {dimension_numbers = #tpu.dot_dimension_numbers<[1], [0], [0], [1], [0, 0, 1, 1], [], []>} : vector<16x16xf32>, vector<16x16xf32>, vector<16x16xf32> -> vector<16x16xf32>
    %30 = vector.broadcast %15 : vector<1x16xf32> to vector<16x16xf32>
    %31 = arith.addf %29, %30 : vector<16x16xf32>
    %cst_32 = arith.constant dense<0xFF800000> : vector<16xf32>
    %32 = vector.multi_reduction <maximumf>, %31, %cst_32 [1] : vector<16x16xf32> to vector<16xf32>
    %33 = vector.shape_cast %32 : vector<16xf32> to vector<16x1xf32>
    %34 = vector.broadcast %33 : vector<16x1xf32> to vector<16x16xf32>
    %35 = arith.subf %31, %34 : vector<16x16xf32>
    %36 = math.exp %35 : vector<16x16xf32>
    %cst_33 = arith.constant dense<0.000000e+00> : vector<16xf32>
    %37 = vector.multi_reduction <add>, %36, %cst_33 [1] : vector<16x16xf32> to vector<16xf32>
    %38 = vector.shape_cast %37 : vector<16xf32> to vector<16x1xf32>
    %39 = tpu.reciprocal %38 : vector<16x1xf32> -> vector<16x1xf32>
    %40 = vector.broadcast %39 : vector<16x1xf32> to vector<16x16xf32>
    %41 = arith.mulf %36, %40 : vector<16x16xf32>
    %c0_34 = arith.constant 0 : index
    %c0_35 = arith.constant 0 : index
    %c0_36 = arith.constant 0 : index
    %42 = vector.load %arg7[%c0_34, %c0_35, %c0_36] : memref<3x16x16xf32, #tpu.memory_space<vmem>>, vector<1x16x16xf32>
    %43 = vector.shape_cast %42 : vector<1x16x16xf32> to vector<16x16xf32>
    %44 = arith.mulf %43, %41 : vector<16x16xf32>
    %45 = vector.extract_strided_slice %8 {offsets = [0, 0], sizes = [16, 128], strides = [1, 1]} : vector<32x384xf32> to vector<16x128xf32>
    %cst_37 = arith.constant dense<0.000000e+00> : vector<16x128xf32>
    %46 = tpu.matmul %44, %45, %cst_37 {dimension_numbers = #tpu.dot_dimension_numbers<[1], [0], [0], [1], [0, 0, 1, 1], [], []>} : vector<16x16xf32>, vector<16x128xf32>, vector<16x128xf32> -> vector<16x128xf32>
    %c1 = arith.constant 1 : index
    %c0_38 = arith.constant 0 : index
    %c0_39 = arith.constant 0 : index
    %47 = vector.load %arg7[%c1, %c0_38, %c0_39] : memref<3x16x16xf32, #tpu.memory_space<vmem>>, vector<1x16x16xf32>
    %48 = vector.shape_cast %47 : vector<1x16x16xf32> to vector<16x16xf32>
    %49 = arith.mulf %48, %41 : vector<16x16xf32>
    %50 = vector.extract_strided_slice %8 {offsets = [0, 128], sizes = [16, 128], strides = [1, 1]} : vector<32x384xf32> to vector<16x128xf32>
    %cst_40 = arith.constant dense<0.000000e+00> : vector<16x128xf32>
    %51 = tpu.matmul %49, %50, %cst_40 {dimension_numbers = #tpu.dot_dimension_numbers<[1], [0], [0], [1], [0, 0, 1, 1], [], []>} : vector<16x16xf32>, vector<16x128xf32>, vector<16x128xf32> -> vector<16x128xf32>
    %52 = arith.addf %46, %51 : vector<16x128xf32>
    %c2 = arith.constant 2 : index
    %c0_41 = arith.constant 0 : index
    %c0_42 = arith.constant 0 : index
    %53 = vector.load %arg7[%c2, %c0_41, %c0_42] : memref<3x16x16xf32, #tpu.memory_space<vmem>>, vector<1x16x16xf32>
    %54 = vector.shape_cast %53 : vector<1x16x16xf32> to vector<16x16xf32>
    %55 = arith.mulf %54, %41 : vector<16x16xf32>
    %56 = vector.extract_strided_slice %8 {offsets = [0, 256], sizes = [16, 128], strides = [1, 1]} : vector<32x384xf32> to vector<16x128xf32>
    %cst_43 = arith.constant dense<0.000000e+00> : vector<16x128xf32>
    %57 = tpu.matmul %55, %56, %cst_43 {dimension_numbers = #tpu.dot_dimension_numbers<[1], [0], [0], [1], [0, 0, 1, 1], [], []>} : vector<16x16xf32>, vector<16x128xf32>, vector<16x128xf32> -> vector<16x128xf32>
    %58 = arith.addf %52, %57 : vector<16x128xf32>
    %59 = vector.extract_strided_slice %6 {offsets = [0, 0], sizes = [16, 128], strides = [1, 1]} : vector<32x128xf32> to vector<16x128xf32>
    %cst_44 = arith.constant 0.000000e+00 : f32
    %60 = vector.broadcast %cst_44 : f32 to vector<16x128xf32>
    %61 = arith.maximumf %58, %60 : vector<16x128xf32>
    %62 = arith.addf %59, %61 : vector<16x128xf32>
    %cst_45 = arith.constant 0.000000e+00 : f32
    %63 = vector.broadcast %cst_45 : f32 to vector<16x128xf32>
    %64 = arith.maximumf %62, %63 : vector<16x128xf32>
    %cst_46 = arith.constant dense<0.000000e+00> : vector<16x8xf32>
    %65 = tpu.matmul %64, %16, %cst_46 {dimension_numbers = #tpu.dot_dimension_numbers<[1], [0], [0], [1], [0, 0, 1, 1], [], []>} : vector<16x128xf32>, vector<128x8xf32>, vector<16x8xf32> -> vector<16x8xf32>
    %cst_47 = arith.constant dense<0.000000e+00> : vector<16x128xf32>
    %66 = tpu.matmul %65, %17, %cst_47 {dimension_numbers = #tpu.dot_dimension_numbers<[1], [0], [0], [1], [0, 0, 1, 1], [], []>} : vector<16x8xf32>, vector<8x128xf32>, vector<16x128xf32> -> vector<16x128xf32>
    %67 = arith.subf %64, %66 : vector<16x128xf32>
    %68 = arith.mulf %67, %67 : vector<16x128xf32>
    %cst_48 = arith.constant dense<0.000000e+00> : vector<16x8xf32>
    %69 = tpu.matmul %68, %16, %cst_48 {dimension_numbers = #tpu.dot_dimension_numbers<[1], [0], [0], [1], [0, 0, 1, 1], [], []>} : vector<16x128xf32>, vector<128x8xf32>, vector<16x8xf32> -> vector<16x8xf32>
    %cst_49 = arith.constant 9.99999974E-6 : f32
    %70 = vector.broadcast %cst_49 : f32 to vector<16x8xf32>
    %71 = arith.addf %69, %70 : vector<16x8xf32>
    %72 = math.rsqrt %71 : vector<16x8xf32>
    %cst_50 = arith.constant dense<0.000000e+00> : vector<16x128xf32>
    %73 = tpu.matmul %72, %17, %cst_50 {dimension_numbers = #tpu.dot_dimension_numbers<[1], [0], [0], [1], [0, 0, 1, 1], [], []>} : vector<16x8xf32>, vector<8x128xf32>, vector<16x128xf32> -> vector<16x128xf32>
    %74 = arith.mulf %67, %73 : vector<16x128xf32>
    %75 = vector.broadcast %18 : vector<1x128xf32> to vector<16x128xf32>
    %76 = arith.mulf %74, %75 : vector<16x128xf32>
    %77 = vector.broadcast %19 : vector<1x128xf32> to vector<16x128xf32>
    %78 = arith.addf %76, %77 : vector<16x128xf32>
    %c0_51 = arith.constant 0 : index
    %c0_52 = arith.constant 0 : index
    %c0_53 = arith.constant 0 : index
    %79 = vector.load %arg15[%c0_51, %c0_52, %c0_53] : memref<2x16x128xf32, #tpu.memory_space<vmem>>, vector<1x16x128xf32>
    %80 = vector.shape_cast %79 : vector<1x16x128xf32> to vector<16x128xf32>
    %81 = vector.shape_cast %78 : vector<16x128xf32> to vector<1x16x128xf32>
    tpu.vector_store %arg15[%c0_51, %c0_52, %c0_53], %81 {strides = array<i32>} : memref<2x16x128xf32, #tpu.memory_space<vmem>>, vector<1x16x128xf32>,
    %82 = vector.extract_strided_slice %12 {offsets = [16, 0], sizes = [16, 8], strides = [1, 1]} : vector<32x8xf32> to vector<16x8xf32>
    %83 = vector.extract_strided_slice %10 {offsets = [16, 0], sizes = [16, 8], strides = [1, 1]} : vector<32x8xf32> to vector<16x8xf32>
    %cst_54 = arith.constant dense<0.000000e+00> : vector<16x16xf32>
    %84 = tpu.matmul %82, %83, %cst_54 {dimension_numbers = #tpu.dot_dimension_numbers<[1], [1], [0], [0], [0, 0, 1, 0], [], []>} : vector<16x8xf32>, vector<16x8xf32>, vector<16x16xf32> -> vector<16x16xf32>
    %85 = arith.addf %84, %13 : vector<16x16xf32>
    %86 = arith.negf %85 : vector<16x16xf32>
    %87 = math.exp %86 : vector<16x16xf32>
    %cst_55 = arith.constant 1.000000e+00 : f32
    %88 = vector.broadcast %cst_55 : f32 to vector<16x16xf32>
    %89 = arith.addf %88, %87 : vector<16x16xf32>
    %90 = arith.divf %88, %89 : vector<16x16xf32>
    %cst_56 = arith.constant dense<0.000000e+00> : vector<16x16xf32>
    %91 = tpu.matmul %90, %14, %cst_56 {dimension_numbers = #tpu.dot_dimension_numbers<[1], [0], [0], [1], [0, 0, 1, 1], [], []>} : vector<16x16xf32>, vector<16x16xf32>, vector<16x16xf32> -> vector<16x16xf32>
    %92 = vector.broadcast %15 : vector<1x16xf32> to vector<16x16xf32>
    %93 = arith.addf %91, %92 : vector<16x16xf32>
    %cst_57 = arith.constant dense<0xFF800000> : vector<16xf32>
    %94 = vector.multi_reduction <maximumf>, %93, %cst_57 [1] : vector<16x16xf32> to vector<16xf32>
    %95 = vector.shape_cast %94 : vector<16xf32> to vector<16x1xf32>
    %96 = vector.broadcast %95 : vector<16x1xf32> to vector<16x16xf32>
    %97 = arith.subf %93, %96 : vector<16x16xf32>
    %98 = math.exp %97 : vector<16x16xf32>
    %cst_58 = arith.constant dense<0.000000e+00> : vector<16xf32>
    %99 = vector.multi_reduction <add>, %98, %cst_58 [1] : vector<16x16xf32> to vector<16xf32>
    %100 = vector.shape_cast %99 : vector<16xf32> to vector<16x1xf32>
    %101 = tpu.reciprocal %100 : vector<16x1xf32> -> vector<16x1xf32>
    %102 = vector.broadcast %101 : vector<16x1xf32> to vector<16x16xf32>
    %103 = arith.mulf %98, %102 : vector<16x16xf32>
    %c0_59 = arith.constant 0 : index
    %c0_60 = arith.constant 0 : index
    %c0_61 = arith.constant 0 : index
    %104 = vector.load %arg7[%c0_59, %c0_60, %c0_61] : memref<3x16x16xf32, #tpu.memory_space<vmem>>, vector<1x16x16xf32>
    %105 = vector.shape_cast %104 : vector<1x16x16xf32> to vector<16x16xf32>
    %106 = arith.mulf %105, %103 : vector<16x16xf32>
    %107 = vector.extract_strided_slice %8 {offsets = [16, 0], sizes = [16, 128], strides = [1, 1]} : vector<32x384xf32> to vector<16x128xf32>
    %cst_62 = arith.constant dense<0.000000e+00> : vector<16x128xf32>
    %108 = tpu.matmul %106, %107, %cst_62 {dimension_numbers = #tpu.dot_dimension_numbers<[1], [0], [0], [1], [0, 0, 1, 1], [], []>} : vector<16x16xf32>, vector<16x128xf32>, vector<16x128xf32> -> vector<16x128xf32>
    %c1_63 = arith.constant 1 : index
    %c0_64 = arith.constant 0 : index
    %c0_65 = arith.constant 0 : index
    %109 = vector.load %arg7[%c1_63, %c0_64, %c0_65] : memref<3x16x16xf32, #tpu.memory_space<vmem>>, vector<1x16x16xf32>
    %110 = vector.shape_cast %109 : vector<1x16x16xf32> to vector<16x16xf32>
    %111 = arith.mulf %110, %103 : vector<16x16xf32>
    %112 = vector.extract_strided_slice %8 {offsets = [16, 128], sizes = [16, 128], strides = [1, 1]} : vector<32x384xf32> to vector<16x128xf32>
    %cst_66 = arith.constant dense<0.000000e+00> : vector<16x128xf32>
    %113 = tpu.matmul %111, %112, %cst_66 {dimension_numbers = #tpu.dot_dimension_numbers<[1], [0], [0], [1], [0, 0, 1, 1], [], []>} : vector<16x16xf32>, vector<16x128xf32>, vector<16x128xf32> -> vector<16x128xf32>
    %114 = arith.addf %108, %113 : vector<16x128xf32>
    %c2_67 = arith.constant 2 : index
    %c0_68 = arith.constant 0 : index
    %c0_69 = arith.constant 0 : index
    %115 = vector.load %arg7[%c2_67, %c0_68, %c0_69] : memref<3x16x16xf32, #tpu.memory_space<vmem>>, vector<1x16x16xf32>
    %116 = vector.shape_cast %115 : vector<1x16x16xf32> to vector<16x16xf32>
    %117 = arith.mulf %116, %103 : vector<16x16xf32>
    %118 = vector.extract_strided_slice %8 {offsets = [16, 256], sizes = [16, 128], strides = [1, 1]} : vector<32x384xf32> to vector<16x128xf32>
    %cst_70 = arith.constant dense<0.000000e+00> : vector<16x128xf32>
    %119 = tpu.matmul %117, %118, %cst_70 {dimension_numbers = #tpu.dot_dimension_numbers<[1], [0], [0], [1], [0, 0, 1, 1], [], []>} : vector<16x16xf32>, vector<16x128xf32>, vector<16x128xf32> -> vector<16x128xf32>
    %120 = arith.addf %114, %119 : vector<16x128xf32>
    %121 = vector.extract_strided_slice %6 {offsets = [16, 0], sizes = [16, 128], strides = [1, 1]} : vector<32x128xf32> to vector<16x128xf32>
    %cst_71 = arith.constant 0.000000e+00 : f32
    %122 = vector.broadcast %cst_71 : f32 to vector<16x128xf32>
    %123 = arith.maximumf %120, %122 : vector<16x128xf32>
    %124 = arith.addf %121, %123 : vector<16x128xf32>
    %cst_72 = arith.constant 0.000000e+00 : f32
    %125 = vector.broadcast %cst_72 : f32 to vector<16x128xf32>
    %126 = arith.maximumf %124, %125 : vector<16x128xf32>
    %cst_73 = arith.constant dense<0.000000e+00> : vector<16x8xf32>
    %127 = tpu.matmul %126, %16, %cst_73 {dimension_numbers = #tpu.dot_dimension_numbers<[1], [0], [0], [1], [0, 0, 1, 1], [], []>} : vector<16x128xf32>, vector<128x8xf32>, vector<16x8xf32> -> vector<16x8xf32>
    %cst_74 = arith.constant dense<0.000000e+00> : vector<16x128xf32>
    %128 = tpu.matmul %127, %17, %cst_74 {dimension_numbers = #tpu.dot_dimension_numbers<[1], [0], [0], [1], [0, 0, 1, 1], [], []>} : vector<16x8xf32>, vector<8x128xf32>, vector<16x128xf32> -> vector<16x128xf32>
    %129 = arith.subf %126, %128 : vector<16x128xf32>
    %130 = arith.mulf %129, %129 : vector<16x128xf32>
    %cst_75 = arith.constant dense<0.000000e+00> : vector<16x8xf32>
    %131 = tpu.matmul %130, %16, %cst_75 {dimension_numbers = #tpu.dot_dimension_numbers<[1], [0], [0], [1], [0, 0, 1, 1], [], []>} : vector<16x128xf32>, vector<128x8xf32>, vector<16x8xf32> -> vector<16x8xf32>
    %cst_76 = arith.constant 9.99999974E-6 : f32
    %132 = vector.broadcast %cst_76 : f32 to vector<16x8xf32>
    %133 = arith.addf %131, %132 : vector<16x8xf32>
    %134 = math.rsqrt %133 : vector<16x8xf32>
    %cst_77 = arith.constant dense<0.000000e+00> : vector<16x128xf32>
    %135 = tpu.matmul %134, %17, %cst_77 {dimension_numbers = #tpu.dot_dimension_numbers<[1], [0], [0], [1], [0, 0, 1, 1], [], []>} : vector<16x8xf32>, vector<8x128xf32>, vector<16x128xf32> -> vector<16x128xf32>
    %136 = arith.mulf %129, %135 : vector<16x128xf32>
    %137 = vector.broadcast %18 : vector<1x128xf32> to vector<16x128xf32>
    %138 = arith.mulf %136, %137 : vector<16x128xf32>
    %139 = vector.broadcast %19 : vector<1x128xf32> to vector<16x128xf32>
    %140 = arith.addf %138, %139 : vector<16x128xf32>
    %c1_78 = arith.constant 1 : index
    %c0_79 = arith.constant 0 : index
    %c0_80 = arith.constant 0 : index
    %141 = vector.load %arg15[%c1_78, %c0_79, %c0_80] : memref<2x16x128xf32, #tpu.memory_space<vmem>>, vector<1x16x128xf32>
    %142 = vector.shape_cast %141 : vector<1x16x128xf32> to vector<16x128xf32>
    %143 = vector.shape_cast %140 : vector<16x128xf32> to vector<1x16x128xf32>
    tpu.vector_store %arg15[%c1_78, %c0_79, %c0_80], %143 {strides = array<i32>} : memref<2x16x128xf32, #tpu.memory_space<vmem>>, vector<1x16x128xf32>,
    return
  }
  func.func @transform_0(%arg0: i32) -> (i32, i32, i32) {
    %c0_i32 = arith.constant 0 : i32
    %c0_i32_0 = arith.constant 0 : i32
    %c0_i32_1 = arith.constant 0 : i32
    return %arg0, %c0_i32, %c0_i32_0 : i32, i32, i32
  }
  func.func @transform_1(%arg0: i32) -> (i32, i32) {
    %c0_i32 = arith.constant 0 : i32
    %c0_i32_0 = arith.constant 0 : i32
    %c0_i32_1 = arith.constant 0 : i32
    return %c0_i32, %c0_i32_0 : i32, i32
  }
  func.func @transform_2(%arg0: i32) -> (i32, i32) {
    %c0_i32 = arith.constant 0 : i32
    %c0_i32_0 = arith.constant 0 : i32
    %c0_i32_1 = arith.constant 0 : i32
    return %c0_i32, %c0_i32_0 : i32, i32
  }
  func.func @transform_3(%arg0: i32) -> (i32, i32) {
    %c0_i32 = arith.constant 0 : i32
    %c0_i32_0 = arith.constant 0 : i32
    %c0_i32_1 = arith.constant 0 : i32
    return %c0_i32, %c0_i32_0 : i32, i32
  }
  func.func @transform_4(%arg0: i32) -> (i32, i32) {
    %c0_i32 = arith.constant 0 : i32
    %c0_i32_0 = arith.constant 0 : i32
    %c0_i32_1 = arith.constant 0 : i32
    return %c0_i32, %c0_i32_0 : i32, i32
  }
  func.func @transform_5(%arg0: i32) -> (i32, i32) {
    %c0_i32 = arith.constant 0 : i32
    %c0_i32_0 = arith.constant 0 : i32
    %c0_i32_1 = arith.constant 0 : i32
    return %c0_i32, %c0_i32_0 : i32, i32
  }
  func.func @transform_6(%arg0: i32) -> (i32, i32, i32) {
    %c0_i32 = arith.constant 0 : i32
    %c0_i32_0 = arith.constant 0 : i32
    %c0_i32_1 = arith.constant 0 : i32
    %c0_i32_2 = arith.constant 0 : i32
    return %c0_i32, %c0_i32_0, %c0_i32_1 : i32, i32, i32
  }
  func.func @transform_7(%arg0: i32) -> (i32, i32) {
    %c0_i32 = arith.constant 0 : i32
    %c0_i32_0 = arith.constant 0 : i32
    %c0_i32_1 = arith.constant 0 : i32
    return %c0_i32, %c0_i32_0 : i32, i32
  }
  func.func @transform_8(%arg0: i32) -> (i32, i32) {
    %c0_i32 = arith.constant 0 : i32
    %c0_i32_0 = arith.constant 0 : i32
    %c0_i32_1 = arith.constant 0 : i32
    return %c0_i32, %c0_i32_0 : i32, i32
  }
  func.func @transform_9(%arg0: i32) -> (i32, i32) {
    %c0_i32 = arith.constant 0 : i32
    %c0_i32_0 = arith.constant 0 : i32
    %c0_i32_1 = arith.constant 0 : i32
    return %c0_i32, %c0_i32_0 : i32, i32
  }
  func.func @transform_10(%arg0: i32) -> (i32, i32) {
    %c0_i32 = arith.constant 0 : i32
    %c0_i32_0 = arith.constant 0 : i32
    %c0_i32_1 = arith.constant 0 : i32
    return %c0_i32, %c0_i32_0 : i32, i32
  }
  func.func @transform_11(%arg0: i32) -> (i32, i32) {
    %c0_i32 = arith.constant 0 : i32
    %c0_i32_0 = arith.constant 0 : i32
    %c0_i32_1 = arith.constant 0 : i32
    return %c0_i32, %c0_i32_0 : i32, i32
  }
  func.func @transform_12(%arg0: i32) -> (i32, i32) {
    %c0_i32 = arith.constant 0 : i32
    %c0_i32_0 = arith.constant 0 : i32
    %c0_i32_1 = arith.constant 0 : i32
    return %c0_i32, %c0_i32_0 : i32, i32
  }
  func.func @transform_13(%arg0: i32) -> (i32, i32) {
    %c0_i32 = arith.constant 0 : i32
    %c0_i32_0 = arith.constant 0 : i32
    %c0_i32_1 = arith.constant 0 : i32
    return %c0_i32, %c0_i32_0 : i32, i32
  }
  func.func @transform_14(%arg0: i32) -> (i32, i32, i32) {
    %c0_i32 = arith.constant 0 : i32
    %c0_i32_0 = arith.constant 0 : i32
    %c0_i32_1 = arith.constant 0 : i32
    return %arg0, %c0_i32, %c0_i32_0 : i32, i32, i32
  }
}

module attributes {stable_mosaic.version = 11 : i64} {
  func.func @kernel(%arg0: i32, %arg1: memref<2x16x32xf32, #tpu.memory_space<vmem>>, %arg2: memref<32x8xf32, #tpu.memory_space<vmem>>, %arg3: memref<32x8xf32, #tpu.memory_space<vmem>>, %arg4: memref<16x16xf32, #tpu.memory_space<vmem>>, %arg5: memref<16x16xf32, #tpu.memory_space<vmem>>, %arg6: memref<1x16xf32, #tpu.memory_space<vmem>>, %arg7: memref<3x16x16xf32, #tpu.memory_space<vmem>>, %arg8: memref<32x384xf32, #tpu.memory_space<vmem>>, %arg9: memref<32x128xf32, #tpu.memory_space<vmem>>, %arg10: memref<1x128xf32, #tpu.memory_space<vmem>>, %arg11: memref<128x8xf32, #tpu.memory_space<vmem>>, %arg12: memref<8x128xf32, #tpu.memory_space<vmem>>, %arg13: memref<1x128xf32, #tpu.memory_space<vmem>>, %arg14: memref<1x128xf32, #tpu.memory_space<vmem>>, %arg15: memref<2x16x128xf32, #tpu.memory_space<vmem>>) attributes {dimension_semantics = [#tpu.dimension_semantics<parallel>], iteration_bounds = array<i64: 4>, scalar_prefetch = 0 : i64, scratch_operands = 0 : i64, tpu.core_type = #tpu.core_type<tc>, window_params = [{transform_indices = @transform_0, window_bounds = array<i64: 2, 16, 32>}, {pipeline_mode = #tpu.pipeline_mode<synchronous>, transform_indices = @transform_1, window_bounds = array<i64: 32, 8>}, {pipeline_mode = #tpu.pipeline_mode<synchronous>, transform_indices = @transform_2, window_bounds = array<i64: 32, 8>}, {pipeline_mode = #tpu.pipeline_mode<synchronous>, transform_indices = @transform_3, window_bounds = array<i64: 16, 16>}, {pipeline_mode = #tpu.pipeline_mode<synchronous>, transform_indices = @transform_4, window_bounds = array<i64: 16, 16>}, {pipeline_mode = #tpu.pipeline_mode<synchronous>, transform_indices = @transform_5, window_bounds = array<i64: 1, 16>}, {pipeline_mode = #tpu.pipeline_mode<synchronous>, transform_indices = @transform_6, window_bounds = array<i64: 3, 16, 16>}, {pipeline_mode = #tpu.pipeline_mode<synchronous>, transform_indices = @transform_7, window_bounds = array<i64: 32, 384>}, {pipeline_mode = #tpu.pipeline_mode<synchronous>, transform_indices = @transform_8, window_bounds = array<i64: 32, 128>}, {pipeline_mode = #tpu.pipeline_mode<synchronous>, transform_indices = @transform_9, window_bounds = array<i64: 1, 128>}, {pipeline_mode = #tpu.pipeline_mode<synchronous>, transform_indices = @transform_10, window_bounds = array<i64: 128, 8>}, {pipeline_mode = #tpu.pipeline_mode<synchronous>, transform_indices = @transform_11, window_bounds = array<i64: 8, 128>}, {pipeline_mode = #tpu.pipeline_mode<synchronous>, transform_indices = @transform_12, window_bounds = array<i64: 1, 128>}, {pipeline_mode = #tpu.pipeline_mode<synchronous>, transform_indices = @transform_13, window_bounds = array<i64: 1, 128>}, {transform_indices = @transform_14, window_bounds = array<i64: 2, 16, 128>}]} {
    %c0 = arith.constant 0 : index
    %c0_0 = arith.constant 0 : index
    %c0_1 = arith.constant 0 : index
    %0 = vector.load %arg1[%c0, %c0_0, %c0_1] : memref<2x16x32xf32, #tpu.memory_space<vmem>>, vector<2x16x32xf32>
    %1 = vector.shape_cast %0 : vector<2x16x32xf32> to vector<32x32xf32>
    %c0_2 = arith.constant 0 : index
    %c0_3 = arith.constant 0 : index
    %2 = vector.load %arg9[%c0_2, %c0_3] : memref<32x128xf32, #tpu.memory_space<vmem>>, vector<32x128xf32>
    %cst = arith.constant dense<0.000000e+00> : vector<32x128xf32>
    %3 = tpu.matmul %1, %2, %cst {dimension_numbers = #tpu.dot_dimension_numbers<[1], [0], [0], [1], [0, 0, 1, 1], [], []>} : vector<32x32xf32>, vector<32x128xf32>, vector<32x128xf32> -> vector<32x128xf32>
    %c0_4 = arith.constant 0 : index
    %c0_5 = arith.constant 0 : index
    %4 = vector.load %arg10[%c0_4, %c0_5] : memref<1x128xf32, #tpu.memory_space<vmem>>, vector<1x128xf32>
    %5 = vector.broadcast %4 : vector<1x128xf32> to vector<32x128xf32>
    %6 = arith.addf %3, %5 : vector<32x128xf32>
    %c0_6 = arith.constant 0 : index
    %c0_7 = arith.constant 0 : index
    %7 = vector.load %arg8[%c0_6, %c0_7] : memref<32x384xf32, #tpu.memory_space<vmem>>, vector<32x384xf32>
    %cst_8 = arith.constant dense<0.000000e+00> : vector<32x384xf32>
    %8 = tpu.matmul %1, %7, %cst_8 {dimension_numbers = #tpu.dot_dimension_numbers<[1], [0], [0], [1], [0, 0, 1, 1], [], []>} : vector<32x32xf32>, vector<32x384xf32>, vector<32x384xf32> -> vector<32x384xf32>
    %c0_9 = arith.constant 0 : index
    %c0_10 = arith.constant 0 : index
    %9 = vector.load %arg2[%c0_9, %c0_10] : memref<32x8xf32, #tpu.memory_space<vmem>>, vector<32x8xf32>
    %cst_11 = arith.constant dense<0.000000e+00> : vector<32x8xf32>
    %10 = tpu.matmul %1, %9, %cst_11 {dimension_numbers = #tpu.dot_dimension_numbers<[1], [0], [0], [1], [0, 0, 1, 1], [], []>} : vector<32x32xf32>, vector<32x8xf32>, vector<32x8xf32> -> vector<32x8xf32>
    %c0_12 = arith.constant 0 : index
    %c0_13 = arith.constant 0 : index
    %11 = vector.load %arg3[%c0_12, %c0_13] : memref<32x8xf32, #tpu.memory_space<vmem>>, vector<32x8xf32>
    %cst_14 = arith.constant dense<0.000000e+00> : vector<32x8xf32>
    %12 = tpu.matmul %1, %11, %cst_14 {dimension_numbers = #tpu.dot_dimension_numbers<[1], [0], [0], [1], [0, 0, 1, 1], [], []>} : vector<32x32xf32>, vector<32x8xf32>, vector<32x8xf32> -> vector<32x8xf32>
    %c0_15 = arith.constant 0 : index
    %c0_16 = arith.constant 0 : index
    %13 = vector.load %arg4[%c0_15, %c0_16] : memref<16x16xf32, #tpu.memory_space<vmem>>, vector<16x16xf32>
    %c0_17 = arith.constant 0 : index
    %c0_18 = arith.constant 0 : index
    %14 = vector.load %arg5[%c0_17, %c0_18] : memref<16x16xf32, #tpu.memory_space<vmem>>, vector<16x16xf32>
    %c0_19 = arith.constant 0 : index
    %c0_20 = arith.constant 0 : index
    %15 = vector.load %arg6[%c0_19, %c0_20] : memref<1x16xf32, #tpu.memory_space<vmem>>, vector<1x16xf32>
    %c0_21 = arith.constant 0 : index
    %c0_22 = arith.constant 0 : index
    %16 = vector.load %arg11[%c0_21, %c0_22] : memref<128x8xf32, #tpu.memory_space<vmem>>, vector<128x8xf32>
    %c0_23 = arith.constant 0 : index
    %c0_24 = arith.constant 0 : index
    %17 = vector.load %arg12[%c0_23, %c0_24] : memref<8x128xf32, #tpu.memory_space<vmem>>, vector<8x128xf32>
    %c0_25 = arith.constant 0 : index
    %c0_26 = arith.constant 0 : index
    %18 = vector.load %arg13[%c0_25, %c0_26] : memref<1x128xf32, #tpu.memory_space<vmem>>, vector<1x128xf32>
    %c0_27 = arith.constant 0 : index
    %c0_28 = arith.constant 0 : index
    %19 = vector.load %arg14[%c0_27, %c0_28] : memref<1x128xf32, #tpu.memory_space<vmem>>, vector<1x128xf32>
    %20 = vector.extract_strided_slice %12 {offsets = [0, 0], sizes = [16, 8], strides = [1, 1]} : vector<32x8xf32> to vector<16x8xf32>
    %21 = vector.extract_strided_slice %10 {offsets = [0, 0], sizes = [16, 8], strides = [1, 1]} : vector<32x8xf32> to vector<16x8xf32>
    %cst_29 = arith.constant dense<0.000000e+00> : vector<16x16xf32>
    %22 = tpu.matmul %20, %21, %cst_29 {dimension_numbers = #tpu.dot_dimension_numbers<[1], [1], [0], [0], [0, 0, 1, 0], [], []>} : vector<16x8xf32>, vector<16x8xf32>, vector<16x16xf32> -> vector<16x16xf32>
    %23 = arith.addf %22, %13 : vector<16x16xf32>
    %24 = arith.negf %23 : vector<16x16xf32>
    %25 = math.exp %24 : vector<16x16xf32>
    %cst_30 = arith.constant 1.000000e+00 : f32
    %26 = vector.broadcast %cst_30 : f32 to vector<16x16xf32>
    %27 = arith.addf %26, %25 : vector<16x16xf32>
    %28 = arith.divf %26, %27 : vector<16x16xf32>
    %cst_31 = arith.constant dense<0.000000e+00> : vector<16x16xf32>
    %29 = tpu.matmul %28, %14, %cst_31 {dimension_numbers = #tpu.dot_dimension_numbers<[1], [0], [0], [1], [0, 0, 1, 1], [], []>} : vector<16x16xf32>, vector<16x16xf32>, vector<16x16xf32> -> vector<16x16xf32>
    %30 = vector.broadcast %15 : vector<1x16xf32> to vector<16x16xf32>
    %31 = arith.addf %29, %30 : vector<16x16xf32>
    %cst_32 = arith.constant dense<0xFF800000> : vector<16xf32>
    %32 = vector.multi_reduction <maximumf>, %31, %cst_32 [1] : vector<16x16xf32> to vector<16xf32>
    %33 = vector.shape_cast %32 : vector<16xf32> to vector<16x1xf32>
    %34 = vector.broadcast %33 : vector<16x1xf32> to vector<16x16xf32>
    %35 = arith.subf %31, %34 : vector<16x16xf32>
    %36 = math.exp %35 : vector<16x16xf32>
    %cst_33 = arith.constant dense<0.000000e+00> : vector<16xf32>
    %37 = vector.multi_reduction <add>, %36, %cst_33 [1] : vector<16x16xf32> to vector<16xf32>
    %38 = vector.shape_cast %37 : vector<16xf32> to vector<16x1xf32>
    %39 = tpu.reciprocal %38 : vector<16x1xf32> -> vector<16x1xf32>
    %40 = vector.broadcast %39 : vector<16x1xf32> to vector<16x16xf32>
    %41 = arith.mulf %36, %40 : vector<16x16xf32>
    %c0_34 = arith.constant 0 : index
    %c0_35 = arith.constant 0 : index
    %c0_36 = arith.constant 0 : index
    %42 = vector.load %arg7[%c0_34, %c0_35, %c0_36] : memref<3x16x16xf32, #tpu.memory_space<vmem>>, vector<1x16x16xf32>
    %43 = vector.shape_cast %42 : vector<1x16x16xf32> to vector<16x16xf32>
    %44 = arith.mulf %43, %41 : vector<16x16xf32>
    %45 = vector.extract_strided_slice %8 {offsets = [0, 0], sizes = [16, 128], strides = [1, 1]} : vector<32x384xf32> to vector<16x128xf32>
    %cst_37 = arith.constant dense<0.000000e+00> : vector<16x128xf32>
    %46 = tpu.matmul %44, %45, %cst_37 {dimension_numbers = #tpu.dot_dimension_numbers<[1], [0], [0], [1], [0, 0, 1, 1], [], []>} : vector<16x16xf32>, vector<16x128xf32>, vector<16x128xf32> -> vector<16x128xf32>
    %c1 = arith.constant 1 : index
    %c0_38 = arith.constant 0 : index
    %c0_39 = arith.constant 0 : index
    %47 = vector.load %arg7[%c1, %c0_38, %c0_39] : memref<3x16x16xf32, #tpu.memory_space<vmem>>, vector<1x16x16xf32>
    %48 = vector.shape_cast %47 : vector<1x16x16xf32> to vector<16x16xf32>
    %49 = arith.mulf %48, %41 : vector<16x16xf32>
    %50 = vector.extract_strided_slice %8 {offsets = [0, 128], sizes = [16, 128], strides = [1, 1]} : vector<32x384xf32> to vector<16x128xf32>
    %cst_40 = arith.constant dense<0.000000e+00> : vector<16x128xf32>
    %51 = tpu.matmul %49, %50, %cst_40 {dimension_numbers = #tpu.dot_dimension_numbers<[1], [0], [0], [1], [0, 0, 1, 1], [], []>} : vector<16x16xf32>, vector<16x128xf32>, vector<16x128xf32> -> vector<16x128xf32>
    %52 = arith.addf %46, %51 : vector<16x128xf32>
    %c2 = arith.constant 2 : index
    %c0_41 = arith.constant 0 : index
    %c0_42 = arith.constant 0 : index
    %53 = vector.load %arg7[%c2, %c0_41, %c0_42] : memref<3x16x16xf32, #tpu.memory_space<vmem>>, vector<1x16x16xf32>
    %54 = vector.shape_cast %53 : vector<1x16x16xf32> to vector<16x16xf32>
    %55 = arith.mulf %54, %41 : vector<16x16xf32>
    %56 = vector.extract_strided_slice %8 {offsets = [0, 256], sizes = [16, 128], strides = [1, 1]} : vector<32x384xf32> to vector<16x128xf32>
    %cst_43 = arith.constant dense<0.000000e+00> : vector<16x128xf32>
    %57 = tpu.matmul %55, %56, %cst_43 {dimension_numbers = #tpu.dot_dimension_numbers<[1], [0], [0], [1], [0, 0, 1, 1], [], []>} : vector<16x16xf32>, vector<16x128xf32>, vector<16x128xf32> -> vector<16x128xf32>
    %58 = arith.addf %52, %57 : vector<16x128xf32>
    %59 = vector.extract_strided_slice %6 {offsets = [0, 0], sizes = [16, 128], strides = [1, 1]} : vector<32x128xf32> to vector<16x128xf32>
    %cst_44 = arith.constant 0.000000e+00 : f32
    %60 = vector.broadcast %cst_44 : f32 to vector<16x128xf32>
    %61 = arith.maximumf %58, %60 : vector<16x128xf32>
    %62 = arith.addf %59, %61 : vector<16x128xf32>
    %cst_45 = arith.constant 0.000000e+00 : f32
    %63 = vector.broadcast %cst_45 : f32 to vector<16x128xf32>
    %64 = arith.maximumf %62, %63 : vector<16x128xf32>
    %cst_46 = arith.constant dense<0.000000e+00> : vector<16x8xf32>
    %65 = tpu.matmul %64, %16, %cst_46 {dimension_numbers = #tpu.dot_dimension_numbers<[1], [0], [0], [1], [0, 0, 1, 1], [], []>} : vector<16x128xf32>, vector<128x8xf32>, vector<16x8xf32> -> vector<16x8xf32>
    %cst_47 = arith.constant dense<0.000000e+00> : vector<16x128xf32>
    %66 = tpu.matmul %65, %17, %cst_47 {dimension_numbers = #tpu.dot_dimension_numbers<[1], [0], [0], [1], [0, 0, 1, 1], [], []>} : vector<16x8xf32>, vector<8x128xf32>, vector<16x128xf32> -> vector<16x128xf32>
    %67 = arith.subf %64, %66 : vector<16x128xf32>
    %68 = arith.mulf %67, %67 : vector<16x128xf32>
    %cst_48 = arith.constant dense<0.000000e+00> : vector<16x8xf32>
    %69 = tpu.matmul %68, %16, %cst_48 {dimension_numbers = #tpu.dot_dimension_numbers<[1], [0], [0], [1], [0, 0, 1, 1], [], []>} : vector<16x128xf32>, vector<128x8xf32>, vector<16x8xf32> -> vector<16x8xf32>
    %cst_49 = arith.constant 9.99999974E-6 : f32
    %70 = vector.broadcast %cst_49 : f32 to vector<16x8xf32>
    %71 = arith.addf %69, %70 : vector<16x8xf32>
    %72 = math.rsqrt %71 : vector<16x8xf32>
    %cst_50 = arith.constant dense<0.000000e+00> : vector<16x128xf32>
    %73 = tpu.matmul %72, %17, %cst_50 {dimension_numbers = #tpu.dot_dimension_numbers<[1], [0], [0], [1], [0, 0, 1, 1], [], []>} : vector<16x8xf32>, vector<8x128xf32>, vector<16x128xf32> -> vector<16x128xf32>
    %74 = arith.mulf %67, %73 : vector<16x128xf32>
    %75 = vector.broadcast %18 : vector<1x128xf32> to vector<16x128xf32>
    %76 = arith.mulf %74, %75 : vector<16x128xf32>
    %77 = vector.broadcast %19 : vector<1x128xf32> to vector<16x128xf32>
    %78 = arith.addf %76, %77 : vector<16x128xf32>
    %c0_51 = arith.constant 0 : index
    %c0_52 = arith.constant 0 : index
    %c0_53 = arith.constant 0 : index
    %79 = vector.load %arg15[%c0_51, %c0_52, %c0_53] : memref<2x16x128xf32, #tpu.memory_space<vmem>>, vector<1x16x128xf32>
    %80 = vector.shape_cast %79 : vector<1x16x128xf32> to vector<16x128xf32>
    %81 = vector.shape_cast %78 : vector<16x128xf32> to vector<1x16x128xf32>
    tpu.vector_store %arg15[%c0_51, %c0_52, %c0_53], %81 {strides = array<i32>} : memref<2x16x128xf32, #tpu.memory_space<vmem>>, vector<1x16x128xf32>,
    %82 = vector.extract_strided_slice %12 {offsets = [16, 0], sizes = [16, 8], strides = [1, 1]} : vector<32x8xf32> to vector<16x8xf32>
    %83 = vector.extract_strided_slice %10 {offsets = [16, 0], sizes = [16, 8], strides = [1, 1]} : vector<32x8xf32> to vector<16x8xf32>
    %cst_54 = arith.constant dense<0.000000e+00> : vector<16x16xf32>
    %84 = tpu.matmul %82, %83, %cst_54 {dimension_numbers = #tpu.dot_dimension_numbers<[1], [1], [0], [0], [0, 0, 1, 0], [], []>} : vector<16x8xf32>, vector<16x8xf32>, vector<16x16xf32> -> vector<16x16xf32>
    %85 = arith.addf %84, %13 : vector<16x16xf32>
    %86 = arith.negf %85 : vector<16x16xf32>
    %87 = math.exp %86 : vector<16x16xf32>
    %cst_55 = arith.constant 1.000000e+00 : f32
    %88 = vector.broadcast %cst_55 : f32 to vector<16x16xf32>
    %89 = arith.addf %88, %87 : vector<16x16xf32>
    %90 = arith.divf %88, %89 : vector<16x16xf32>
    %cst_56 = arith.constant dense<0.000000e+00> : vector<16x16xf32>
    %91 = tpu.matmul %90, %14, %cst_56 {dimension_numbers = #tpu.dot_dimension_numbers<[1], [0], [0], [1], [0, 0, 1, 1], [], []>} : vector<16x16xf32>, vector<16x16xf32>, vector<16x16xf32> -> vector<16x16xf32>
    %92 = vector.broadcast %15 : vector<1x16xf32> to vector<16x16xf32>
    %93 = arith.addf %91, %92 : vector<16x16xf32>
    %cst_57 = arith.constant dense<0xFF800000> : vector<16xf32>
    %94 = vector.multi_reduction <maximumf>, %93, %cst_57 [1] : vector<16x16xf32> to vector<16xf32>
    %95 = vector.shape_cast %94 : vector<16xf32> to vector<16x1xf32>
    %96 = vector.broadcast %95 : vector<16x1xf32> to vector<16x16xf32>
    %97 = arith.subf %93, %96 : vector<16x16xf32>
    %98 = math.exp %97 : vector<16x16xf32>
    %cst_58 = arith.constant dense<0.000000e+00> : vector<16xf32>
    %99 = vector.multi_reduction <add>, %98, %cst_58 [1] : vector<16x16xf32> to vector<16xf32>
    %100 = vector.shape_cast %99 : vector<16xf32> to vector<16x1xf32>
    %101 = tpu.reciprocal %100 : vector<16x1xf32> -> vector<16x1xf32>
    %102 = vector.broadcast %101 : vector<16x1xf32> to vector<16x16xf32>
    %103 = arith.mulf %98, %102 : vector<16x16xf32>
    %c0_59 = arith.constant 0 : index
    %c0_60 = arith.constant 0 : index
    %c0_61 = arith.constant 0 : index
    %104 = vector.load %arg7[%c0_59, %c0_60, %c0_61] : memref<3x16x16xf32, #tpu.memory_space<vmem>>, vector<1x16x16xf32>
    %105 = vector.shape_cast %104 : vector<1x16x16xf32> to vector<16x16xf32>
    %106 = arith.mulf %105, %103 : vector<16x16xf32>
    %107 = vector.extract_strided_slice %8 {offsets = [16, 0], sizes = [16, 128], strides = [1, 1]} : vector<32x384xf32> to vector<16x128xf32>
    %cst_62 = arith.constant dense<0.000000e+00> : vector<16x128xf32>
    %108 = tpu.matmul %106, %107, %cst_62 {dimension_numbers = #tpu.dot_dimension_numbers<[1], [0], [0], [1], [0, 0, 1, 1], [], []>} : vector<16x16xf32>, vector<16x128xf32>, vector<16x128xf32> -> vector<16x128xf32>
    %c1_63 = arith.constant 1 : index
    %c0_64 = arith.constant 0 : index
    %c0_65 = arith.constant 0 : index
    %109 = vector.load %arg7[%c1_63, %c0_64, %c0_65] : memref<3x16x16xf32, #tpu.memory_space<vmem>>, vector<1x16x16xf32>
    %110 = vector.shape_cast %109 : vector<1x16x16xf32> to vector<16x16xf32>
    %111 = arith.mulf %110, %103 : vector<16x16xf32>
    %112 = vector.extract_strided_slice %8 {offsets = [16, 128], sizes = [16, 128], strides = [1, 1]} : vector<32x384xf32> to vector<16x128xf32>
    %cst_66 = arith.constant dense<0.000000e+00> : vector<16x128xf32>
    %113 = tpu.matmul %111, %112, %cst_66 {dimension_numbers = #tpu.dot_dimension_numbers<[1], [0], [0], [1], [0, 0, 1, 1], [], []>} : vector<16x16xf32>, vector<16x128xf32>, vector<16x128xf32> -> vector<16x128xf32>
    %114 = arith.addf %108, %113 : vector<16x128xf32>
    %c2_67 = arith.constant 2 : index
    %c0_68 = arith.constant 0 : index
    %c0_69 = arith.constant 0 : index
    %115 = vector.load %arg7[%c2_67, %c0_68, %c0_69] : memref<3x16x16xf32, #tpu.memory_space<vmem>>, vector<1x16x16xf32>
    %116 = vector.shape_cast %115 : vector<1x16x16xf32> to vector<16x16xf32>
    %117 = arith.mulf %116, %103 : vector<16x16xf32>
    %118 = vector.extract_strided_slice %8 {offsets = [16, 256], sizes = [16, 128], strides = [1, 1]} : vector<32x384xf32> to vector<16x128xf32>
    %cst_70 = arith.constant dense<0.000000e+00> : vector<16x128xf32>
    %119 = tpu.matmul %117, %118, %cst_70 {dimension_numbers = #tpu.dot_dimension_numbers<[1], [0], [0], [1], [0, 0, 1, 1], [], []>} : vector<16x16xf32>, vector<16x128xf32>, vector<16x128xf32> -> vector<16x128xf32>
    %120 = arith.addf %114, %119 : vector<16x128xf32>
    %121 = vector.extract_strided_slice %6 {offsets = [16, 0], sizes = [16, 128], strides = [1, 1]} : vector<32x128xf32> to vector<16x128xf32>
    %cst_71 = arith.constant 0.000000e+00 : f32
    %122 = vector.broadcast %cst_71 : f32 to vector<16x128xf32>
    %123 = arith.maximumf %120, %122 : vector<16x128xf32>
    %124 = arith.addf %121, %123 : vector<16x128xf32>
    %cst_72 = arith.constant 0.000000e+00 : f32
    %125 = vector.broadcast %cst_72 : f32 to vector<16x128xf32>
    %126 = arith.maximumf %124, %125 : vector<16x128xf32>
    %cst_73 = arith.constant dense<0.000000e+00> : vector<16x8xf32>
    %127 = tpu.matmul %126, %16, %cst_73 {dimension_numbers = #tpu.dot_dimension_numbers<[1], [0], [0], [1], [0, 0, 1, 1], [], []>} : vector<16x128xf32>, vector<128x8xf32>, vector<16x8xf32> -> vector<16x8xf32>
    %cst_74 = arith.constant dense<0.000000e+00> : vector<16x128xf32>
    %128 = tpu.matmul %127, %17, %cst_74 {dimension_numbers = #tpu.dot_dimension_numbers<[1], [0], [0], [1], [0, 0, 1, 1], [], []>} : vector<16x8xf32>, vector<8x128xf32>, vector<16x128xf32> -> vector<16x128xf32>
    %129 = arith.subf %126, %128 : vector<16x128xf32>
    %130 = arith.mulf %129, %129 : vector<16x128xf32>
    %cst_75 = arith.constant dense<0.000000e+00> : vector<16x8xf32>
    %131 = tpu.matmul %130, %16, %cst_75 {dimension_numbers = #tpu.dot_dimension_numbers<[1], [0], [0], [1], [0, 0, 1, 1], [], []>} : vector<16x128xf32>, vector<128x8xf32>, vector<16x8xf32> -> vector<16x8xf32>
    %cst_76 = arith.constant 9.99999974E-6 : f32
    %132 = vector.broadcast %cst_76 : f32 to vector<16x8xf32>
    %133 = arith.addf %131, %132 : vector<16x8xf32>
    %134 = math.rsqrt %133 : vector<16x8xf32>
    %cst_77 = arith.constant dense<0.000000e+00> : vector<16x128xf32>
    %135 = tpu.matmul %134, %17, %cst_77 {dimension_numbers = #tpu.dot_dimension_numbers<[1], [0], [0], [1], [0, 0, 1, 1], [], []>} : vector<16x8xf32>, vector<8x128xf32>, vector<16x128xf32> -> vector<16x128xf32>
    %136 = arith.mulf %129, %135 : vector<16x128xf32>
    %137 = vector.broadcast %18 : vector<1x128xf32> to vector<16x128xf32>
    %138 = arith.mulf %136, %137 : vector<16x128xf32>
    %139 = vector.broadcast %19 : vector<1x128xf32> to vector<16x128xf32>
    %140 = arith.addf %138, %139 : vector<16x128xf32>
    %c1_78 = arith.constant 1 : index
    %c0_79 = arith.constant 0 : index
    %c0_80 = arith.constant 0 : index
    %141 = vector.load %arg15[%c1_78, %c0_79, %c0_80] : memref<2x16x128xf32, #tpu.memory_space<vmem>>, vector<1x16x128xf32>
    %142 = vector.shape_cast %141 : vector<1x16x128xf32> to vector<16x128xf32>
    %143 = vector.shape_cast %140 : vector<16x128xf32> to vector<1x16x128xf32>
    tpu.vector_store %arg15[%c1_78, %c0_79, %c0_80], %143 {strides = array<i32>} : memref<2x16x128xf32, #tpu.memory_space<vmem>>, vector<1x16x128xf32>,
    return
  }
  func.func @transform_0(%arg0: i32) -> (i32, i32, i32) {
    %c0_i32 = arith.constant 0 : i32
    %c0_i32_0 = arith.constant 0 : i32
    %c0_i32_1 = arith.constant 0 : i32
    return %arg0, %c0_i32, %c0_i32_0 : i32, i32, i32
  }
  func.func @transform_1(%arg0: i32) -> (i32, i32) {
    %c0_i32 = arith.constant 0 : i32
    %c0_i32_0 = arith.constant 0 : i32
    %c0_i32_1 = arith.constant 0 : i32
    return %c0_i32, %c0_i32_0 : i32, i32
  }
  func.func @transform_2(%arg0: i32) -> (i32, i32) {
    %c0_i32 = arith.constant 0 : i32
    %c0_i32_0 = arith.constant 0 : i32
    %c0_i32_1 = arith.constant 0 : i32
    return %c0_i32, %c0_i32_0 : i32, i32
  }
  func.func @transform_3(%arg0: i32) -> (i32, i32) {
    %c0_i32 = arith.constant 0 : i32
    %c0_i32_0 = arith.constant 0 : i32
    %c0_i32_1 = arith.constant 0 : i32
    return %c0_i32, %c0_i32_0 : i32, i32
  }
  func.func @transform_4(%arg0: i32) -> (i32, i32) {
    %c0_i32 = arith.constant 0 : i32
    %c0_i32_0 = arith.constant 0 : i32
    %c0_i32_1 = arith.constant 0 : i32
    return %c0_i32, %c0_i32_0 : i32, i32
  }
  func.func @transform_5(%arg0: i32) -> (i32, i32) {
    %c0_i32 = arith.constant 0 : i32
    %c0_i32_0 = arith.constant 0 : i32
    %c0_i32_1 = arith.constant 0 : i32
    return %c0_i32, %c0_i32_0 : i32, i32
  }
  func.func @transform_6(%arg0: i32) -> (i32, i32, i32) {
    %c0_i32 = arith.constant 0 : i32
    %c0_i32_0 = arith.constant 0 : i32
    %c0_i32_1 = arith.constant 0 : i32
    %c0_i32_2 = arith.constant 0 : i32
    return %c0_i32, %c0_i32_0, %c0_i32_1 : i32, i32, i32
  }
  func.func @transform_7(%arg0: i32) -> (i32, i32) {
    %c0_i32 = arith.constant 0 : i32
    %c0_i32_0 = arith.constant 0 : i32
    %c0_i32_1 = arith.constant 0 : i32
    return %c0_i32, %c0_i32_0 : i32, i32
  }
  func.func @transform_8(%arg0: i32) -> (i32, i32) {
    %c0_i32 = arith.constant 0 : i32
    %c0_i32_0 = arith.constant 0 : i32
    %c0_i32_1 = arith.constant 0 : i32
    return %c0_i32, %c0_i32_0 : i32, i32
  }
  func.func @transform_9(%arg0: i32) -> (i32, i32) {
    %c0_i32 = arith.constant 0 : i32
    %c0_i32_0 = arith.constant 0 : i32
    %c0_i32_1 = arith.constant 0 : i32
    return %c0_i32, %c0_i32_0 : i32, i32
  }
  func.func @transform_10(%arg0: i32) -> (i32, i32) {
    %c0_i32 = arith.constant 0 : i32
    %c0_i32_0 = arith.constant 0 : i32
    %c0_i32_1 = arith.constant 0 : i32
    return %c0_i32, %c0_i32_0 : i32, i32
  }
  func.func @transform_11(%arg0: i32) -> (i32, i32) {
    %c0_i32 = arith.constant 0 : i32
    %c0_i32_0 = arith.constant 0 : i32
    %c0_i32_1 = arith.constant 0 : i32
    return %c0_i32, %c0_i32_0 : i32, i32
  }
  func.func @transform_12(%arg0: i32) -> (i32, i32) {
    %c0_i32 = arith.constant 0 : i32
    %c0_i32_0 = arith.constant 0 : i32
    %c0_i32_1 = arith.constant 0 : i32
    return %c0_i32, %c0_i32_0 : i32, i32
  }
  func.func @transform_13(%arg0: i32) -> (i32, i32) {
    %c0_i32 = arith.constant 0 : i32
    %c0_i32_0 = arith.constant 0 : i32
    %c0_i32_1 = arith.constant 0 : i32
    return %c0_i32, %c0_i32_0 : i32, i32
  }
  func.func @transform_14(%arg0: i32) -> (i32, i32, i32) {
    %c0_i32 = arith.constant 0 : i32
    %c0_i32_0 = arith.constant 0 : i32
    %c0_i32_1 = arith.constant 0 : i32
    return %arg0, %c0_i32, %c0_i32_0 : i32, i32, i32
  }
}

</mosaic_0001>

<llo_original>
// kernel: tile.19
$region0: #{tile.19}
  %s0 = inlined_call_operand.vmem [shape: f32[8,16], index: 0, kind: input, shape index: {}]
  %s1 = inlined_call_operand.vmem [shape: f32[1,128], index: 1, kind: output, shape index: {}]
  $region1: #{tile.19} parent=0
    #allocation0 [shape = 'u8[4096]{0}', space=vmem, size = 0x1000, scoped, tag = 'scoped mem for output reshape']
    %v2 = vld [vmem:[%s0] sm:$0x1]
    %vm3 = vcmask 130048
    %4 = vst.msk [vmem:[#allocation0] sm:$0x1] %vm3, %v2
    %s5 = scalar_lea.vmem %s0, 7
    %v6 = vld [vmem:[%s5] sm:$0x1]
    %7 = vrot.lane.b32.xlu0 %v6, 112
    %v8 = vpop.permute.xlu0 %7
    %vm9 = vcmask 1048448
    %10 = vst.msk [vmem:[#allocation0] sm:$0x1] %vm9, %v8
    %s11 = scalar_lea.vmem %s0, 6
    %v12 = vld [vmem:[%s11] sm:$0x1]
    %13 = vrot.lane.b32.xlu0 %v12, 96
    %v14 = vpop.permute.xlu0 %13
    %vm15 = vcmask 917248
    %16 = vst.msk [vmem:[#allocation0] sm:$0x1] %vm15, %v14
    %s17 = scalar_lea.vmem %s0, 5
    %v18 = vld [vmem:[%s17] sm:$0x1]
    %19 = vrot.lane.b32.xlu0 %v18, 80
    %v20 = vpop.permute.xlu0 %19
    %vm21 = vcmask 786048
    %22 = vst.msk [vmem:[#allocation0] sm:$0x1] %vm21, %v20
    %s23 = scalar_lea.vmem %s0, 4
    %v24 = vld [vmem:[%s23] sm:$0x1]
    %25 = vrot.lane.b32.xlu0 %v24, 64
    %v26 = vpop.permute.xlu0 %25
    %vm27 = vcmask 654848
    %28 = vst.msk [vmem:[#allocation0] sm:$0x1] %vm27, %v26
    %s29 = scalar_lea.vmem %s0, 3
    %v30 = vld [vmem:[%s29] sm:$0x1]
    %31 = vrot.lane.b32.xlu0 %v30, 48
    %v32 = vpop.permute.xlu0 %31
    %vm33 = vcmask 523648
    %34 = vst.msk [vmem:[#allocation0] sm:$0x1] %vm33, %v32
    %s35 = scalar_lea.vmem %s0, 2
    %v36 = vld [vmem:[%s35] sm:$0x1]
    %37 = vrot.lane.b32.xlu0 %v36, 32
    %v38 = vpop.permute.xlu0 %37
    %vm39 = vcmask 392448
    %40 = vst.msk [vmem:[#allocation0] sm:$0x1] %vm39, %v38
    %s41 = scalar_lea.vmem %s0, 1
    %v42 = vld [vmem:[%s41] sm:$0x1]
    %43 = vrot.lane.b32.xlu0 %v42, 16
    %v44 = vpop.permute.xlu0 %43
    %vm45 = vcmask 261248
    %46 = vst.msk [vmem:[#allocation0] sm:$0x1] %vm45, %v44
    %s48 = ssub.s32 2, 1
    %v49 = vld [vmem:[#allocation0] sm:%s48]
    %s51 = ssub.s32 2, 1
    %52 = vst [vmem:[%s1] sm:%s51] %v49

// kernel: tile.18
$region0: #{tile.18}
  #allocation0 [shape = 's32[1]{0}', space=sflag, size = 0x4, scoped, tag = 'scoped memory for tile.18']
  %s0 = inlined_call_operand.vmem [shape: f32[16], index: 0, kind: input, shape index: {}]
  %s1 = inlined_call_operand.vmem [shape: f32[8,16], index: 1, kind: output, shape index: {}]
  // Predicated region
  $region2: #{tile.18} parent=0 // pred_check
    _
  $region3: #{tile.18} parent=0 // pred_check_branch
    %3 = sbr.rel (0) target = $region5
  $region4: #{tile.18} parent=0 // pred_region
    _
  $region5: #{tile.18} parent=0 // pred_fallthru
    _
  %v4 = vld [vmem:[%s0] ss:$0 sm:$0xff]
  %5 = vst [vmem:[%s1] sm:$0xff] %v4

// kernel: mrstan_block.1
$region0: #{mrstan_block.1}
  #allocation0 [shape = 'u32[]', space=smem, size = 0x4, offset = 0x4, fixed_abs, tag = 'smem constant byte address 0x4 - core index']
  #allocation1 [shape = 'u32[72,128]{1,0:T(1,128)}', space=vmem, size = 0x9000, scoped, tag = 'internal scratch']
  %s0 = inlined_call_operand.vmem [shape: f32[8,16,32], index: 0, kind: input, shape index: {}]
  %s1 = inlined_call_operand.vmem [shape: f32[32,8], index: 1, kind: input, shape index: {}]
  %s2 = inlined_call_operand.vmem [shape: f32[32,8], index: 2, kind: input, shape index: {}]
  %s3 = inlined_call_operand.vmem [shape: f32[16,16], index: 3, kind: input, shape index: {}]
  %s4 = inlined_call_operand.vmem [shape: f32[16,16], index: 4, kind: input, shape index: {}]
  %s5 = inlined_call_operand.vmem [shape: f32[1,16], index: 5, kind: input, shape index: {}]
  %s6 = inlined_call_operand.vmem [shape: f32[3,16,16], index: 6, kind: input, shape index: {}]
  %s7 = inlined_call_operand.vmem [shape: f32[32,384], index: 7, kind: input, shape index: {}]
  %s8 = inlined_call_operand.vmem [shape: f32[32,128], index: 8, kind: input, shape index: {}]
  %s9 = inlined_call_operand.vmem [shape: f32[1,128], index: 9, kind: input, shape index: {}]
  %s10 = inlined_call_operand.vmem [shape: f32[128,8], index: 10, kind: input, shape index: {}]
  %s11 = inlined_call_operand.vmem [shape: f32[8,128], index: 11, kind: input, shape index: {}]
  %s12 = inlined_call_operand.vmem [shape: f32[1,128], index: 12, kind: input, shape index: {}]
  %s13 = inlined_call_operand.vmem [shape: f32[1,128], index: 13, kind: input, shape index: {}]
  %s14 = inlined_call_operand.vmem [shape: f32[8,16,128], index: 14, kind: output, shape index: {}]
  %s15 = sld [smem:[#allocation0]]
  $region89: #{mrstan_block.1} parent=0
    _
  %s17 = ssub.s32 1, %s15
  %s18 = scalar_select 0, %s17, %s15
  loop: start=0, step=1, limit=6
  $region2: #{mrstan_block.1} parent=0 // loop_pre_header
    _
  $region3: #{mrstan_block.1} parent=0 // loop_header
    %s20 = sphi 0, %s24
    %p21 = scmp.ge.s32.totalorder %s20, 6
    %s30 = sphi 0, %s32
    %s33 = sphi 0, %s30
    %s34 = sphi 0, %s33
    %s50 = sphi 0, %s34
    %s54 = sphi 0, %s54
    %s56 = sphi 0, %s54
    %s57 = sphi 0, %s56
    %s71 = sphi 0, %s57
    %s75 = sphi 0, %s75
    %s77 = sphi 0, %s75
    %s78 = sphi 0, %s77
    %s92 = sphi 0, %s78
    %s96 = sphi 0, %s96
    %s98 = sphi 0, %s96
    %s99 = sphi 0, %s98
    %s113 = sphi 0, %s99
    %s117 = sphi 0, %s117
    %s119 = sphi 0, %s117
    %s120 = sphi 0, %s119
    %s134 = sphi 0, %s120
    %s138 = sphi 0, %s138
    %s140 = sphi 0, %s138
    %s141 = sphi 0, %s140
    %s155 = sphi 0, %s141
    %s159 = sphi 0, %s159
    %s161 = sphi 0, %s159
    %s162 = sphi 0, %s161
    %s176 = sphi 0, %s162
    %s180 = sphi 0, %s180
    %s182 = sphi 0, %s180
    %s183 = sphi 0, %s182
    %s197 = sphi 0, %s183
    %s201 = sphi 0, %s201
    %s203 = sphi 0, %s201
    %s204 = sphi 0, %s203
    %s218 = sphi 0, %s204
    %s222 = sphi 0, %s222
    %s224 = sphi 0, %s222
    %s225 = sphi 0, %s224
    %s239 = sphi 0, %s225
    %s243 = sphi 0, %s243
    %s245 = sphi 0, %s243
    %s246 = sphi 0, %s245
    %s260 = sphi 0, %s246
    %s264 = sphi 0, %s264
    %s266 = sphi 0, %s264
    %s267 = sphi 0, %s266
    %s281 = sphi 0, %s267
    %s285 = sphi 0, %s285
    %s287 = sphi 0, %s285
    %s288 = sphi 0, %s287
    %s302 = sphi 0, %s288
    %s306 = sphi 0, %s306
    %s308 = sphi 0, %s306
    %s309 = sphi 0, %s308
    %s323 = sphi 0, %s309
    %s329 = sphi 0, %s331
    %s332 = sphi 0, %s329
    %s333 = sphi 0, %s332
    %s349 = sphi 0, %s333
  $region4: #{mrstan_block.1} parent=0 // loop_header_branch
    %23 = sbr.rel (%p21) target = $region8
  $region5: #{mrstan_block.1} parent=0 // loop_body
    %s25 = ssub.s32 %s20, 1
    %s26 = ssub.s32 %s20, 2
    %s27 = sadd.s32 %s20, 1
    %s28 = ssub.s32 %s20, %s27
    %p29 = scmp.eq.s32.totalorder %s28, 0
    %s31 = sadd.s32 %s30, 1
    %s32 = scalar_select %p29, %s30, %s31
    %p35 = pneg %p29
    %p36 = scmp.eq.s32.totalorder %s20, 3
    %p37 = por %p35, %p36
    %p38 = scmp.ne.s32.totalorder %s30, %s33
    %p39 = scmp.eq.s32.totalorder %s20, 0
    %p40 = por %p38, %p39
    %p41 = scmp.ne.s32.totalorder %s30, %s33
    %p42 = scmp.eq.s32.totalorder %s25, 3
    %p43 = por %p41, %p42
    %p44 = scmp.ne.s32.totalorder %s33, %s34
    %p45 = scmp.eq.s32.totalorder %s25, 0
    %p46 = por %p44, %p45
    %p47 = scmp.ne.s32.totalorder %s33, %s34
    %p48 = scmp.eq.s32.totalorder %s26, 3
    %p49 = por %p47, %p48
    %p51 = scmp.ne.s32.totalorder %s34, %s50
    %p52 = scmp.eq.s32.totalorder %s26, 0
    %p53 = por %p51, %p52
    %s55 = sadd.s32 %s54, 1
    %p58 = scmp.eq.s32.totalorder %s20, 3
    %p59 = scmp.ne.s32.totalorder %s54, %s56
    %p60 = scmp.eq.s32.totalorder %s20, 0
    %p61 = por %p59, %p60
    %p62 = scmp.ne.s32.totalorder %s54, %s56
    %p63 = scmp.eq.s32.totalorder %s25, 3
    %p64 = por %p62, %p63
    %p65 = scmp.ne.s32.totalorder %s56, %s57
    %p66 = scmp.eq.s32.totalorder %s25, 0
    %p67 = por %p65, %p66
    %p68 = scmp.ne.s32.totalorder %s56, %s57
    %p69 = scmp.eq.s32.totalorder %s26, 3
    %p70 = por %p68, %p69
    %p72 = scmp.ne.s32.totalorder %s57, %s71
    %p73 = scmp.eq.s32.totalorder %s26, 0
    %p74 = por %p72, %p73
    %s76 = sadd.s32 %s75, 1
    %p79 = scmp.eq.s32.totalorder %s20, 3
    %p80 = scmp.ne.s32.totalorder %s75, %s77
    %p81 = scmp.eq.s32.totalorder %s20, 0
    %p82 = por %p80, %p81
    %p83 = scmp.ne.s32.totalorder %s75, %s77
    %p84 = scmp.eq.s32.totalorder %s25, 3
    %p85 = por %p83, %p84
    %p86 = scmp.ne.s32.totalorder %s77, %s78
    %p87 = scmp.eq.s32.totalorder %s25, 0
    %p88 = por %p86, %p87
    %p89 = scmp.ne.s32.totalorder %s77, %s78
    %p90 = scmp.eq.s32.totalorder %s26, 3
    %p91 = por %p89, %p90
    %p93 = scmp.ne.s32.totalorder %s78, %s92
    %p94 = scmp.eq.s32.totalorder %s26, 0
    %p95 = por %p93, %p94
    %s97 = sadd.s32 %s96, 1
    %p100 = scmp.eq.s32.totalorder %s20, 3
    %p101 = scmp.ne.s32.totalorder %s96, %s98
    %p102 = scmp.eq.s32.totalorder %s20, 0
    %p103 = por %p101, %p102
    %p104 = scmp.ne.s32.totalorder %s96, %s98
    %p105 = scmp.eq.s32.totalorder %s25, 3
    %p106 = por %p104, %p105
    %p107 = scmp.ne.s32.totalorder %s98, %s99
    %p108 = scmp.eq.s32.totalorder %s25, 0
    %p109 = por %p107, %p108
    %p110 = scmp.ne.s32.totalorder %s98, %s99
    %p111 = scmp.eq.s32.totalorder %s26, 3
    %p112 = por %p110, %p111
    %p114 = scmp.ne.s32.totalorder %s99, %s113
    %p115 = scmp.eq.s32.totalorder %s26, 0
    %p116 = por %p114, %p115
    %s118 = sadd.s32 %s117, 1
    %p121 = scmp.eq.s32.totalorder %s20, 3
    %p122 = scmp.ne.s32.totalorder %s117, %s119
    %p123 = scmp.eq.s32.totalorder %s20, 0
    %p124 = por %p122, %p123
    %p125 = scmp.ne.s32.totalorder %s117, %s119
    %p126 = scmp.eq.s32.totalorder %s25, 3
    %p127 = por %p125, %p126
    %p128 = scmp.ne.s32.totalorder %s119, %s120
    %p129 = scmp.eq.s32.totalorder %s25, 0
    %p130 = por %p128, %p129
    %p131 = scmp.ne.s32.totalorder %s119, %s120
    %p132 = scmp.eq.s32.totalorder %s26, 3
    %p133 = por %p131, %p132
    %p135 = scmp.ne.s32.totalorder %s120, %s134
    %p136 = scmp.eq.s32.totalorder %s26, 0
    %p137 = por %p135, %p136
    %s139 = sadd.s32 %s138, 1
    %p142 = scmp.eq.s32.totalorder %s20, 3
    %p143 = scmp.ne.s32.totalorder %s138, %s140
    %p144 = scmp.eq.s32.totalorder %s20, 0
    %p145 = por %p143, %p144
    %p146 = scmp.ne.s32.totalorder %s138, %s140
    %p147 = scmp.eq.s32.totalorder %s25, 3
    %p148 = por %p146, %p147
    %p149 = scmp.ne.s32.totalorder %s140, %s141
    %p150 = scmp.eq.s32.totalorder %s25, 0
    %p151 = por %p149, %p150
    %p152 = scmp.ne.s32.totalorder %s140, %s141
    %p153 = scmp.eq.s32.totalorder %s26, 3
    %p154 = por %p152, %p153
    %p156 = scmp.ne.s32.totalorder %s141, %s155
    %p157 = scmp.eq.s32.totalorder %s26, 0
    %p158 = por %p156, %p157
    %s160 = sadd.s32 %s159, 1
    %p163 = scmp.eq.s32.totalorder %s20, 3
    %p164 = scmp.ne.s32.totalorder %s159, %s161
    %p165 = scmp.eq.s32.totalorder %s20, 0
    %p166 = por %p164, %p165
    %p167 = scmp.ne.s32.totalorder %s159, %s161
    %p168 = scmp.eq.s32.totalorder %s25, 3
    %p169 = por %p167, %p168
    %p170 = scmp.ne.s32.totalorder %s161, %s162
    %p171 = scmp.eq.s32.totalorder %s25, 0
    %p172 = por %p170, %p171
    %p173 = scmp.ne.s32.totalorder %s161, %s162
    %p174 = scmp.eq.s32.totalorder %s26, 3
    %p175 = por %p173, %p174
    %p177 = scmp.ne.s32.totalorder %s162, %s176
    %p178 = scmp.eq.s32.totalorder %s26, 0
    %p179 = por %p177, %p178
    %s181 = sadd.s32 %s180, 1
    %p184 = scmp.eq.s32.totalorder %s20, 3
    %p185 = scmp.ne.s32.totalorder %s180, %s182
    %p186 = scmp.eq.s32.totalorder %s20, 0
    %p187 = por %p185, %p186
    %p188 = scmp.ne.s32.totalorder %s180, %s182
    %p189 = scmp.eq.s32.totalorder %s25, 3
    %p190 = por %p188, %p189
    %p191 = scmp.ne.s32.totalorder %s182, %s183
    %p192 = scmp.eq.s32.totalorder %s25, 0
    %p193 = por %p191, %p192
    %p194 = scmp.ne.s32.totalorder %s182, %s183
    %p195 = scmp.eq.s32.totalorder %s26, 3
    %p196 = por %p194, %p195
    %p198 = scmp.ne.s32.totalorder %s183, %s197
    %p199 = scmp.eq.s32.totalorder %s26, 0
    %p200 = por %p198, %p199
    %s202 = sadd.s32 %s201, 1
    %p205 = scmp.eq.s32.totalorder %s20, 3
    %p206 = scmp.ne.s32.totalorder %s201, %s203
    %p207 = scmp.eq.s32.totalorder %s20, 0
    %p208 = por %p206, %p207
    %p209 = scmp.ne.s32.totalorder %s201, %s203
    %p210 = scmp.eq.s32.totalorder %s25, 3
    %p211 = por %p209, %p210
    %p212 = scmp.ne.s32.totalorder %s203, %s204
    %p213 = scmp.eq.s32.totalorder %s25, 0
    %p214 = por %p212, %p213
    %p215 = scmp.ne.s32.totalorder %s203, %s204
    %p216 = scmp.eq.s32.totalorder %s26, 3
    %p217 = por %p215, %p216
    %p219 = scmp.ne.s32.totalorder %s204, %s218
    %p220 = scmp.eq.s32.totalorder %s26, 0
    %p221 = por %p219, %p220
    %s223 = sadd.s32 %s222, 1
    %p226 = scmp.eq.s32.totalorder %s20, 3
    %p227 = scmp.ne.s32.totalorder %s222, %s224
    %p228 = scmp.eq.s32.totalorder %s20, 0
    %p229 = por %p227, %p228
    %p230 = scmp.ne.s32.totalorder %s222, %s224
    %p231 = scmp.eq.s32.totalorder %s25, 3
    %p232 = por %p230, %p231
    %p233 = scmp.ne.s32.totalorder %s224, %s225
    %p234 = scmp.eq.s32.totalorder %s25, 0
    %p235 = por %p233, %p234
    %p236 = scmp.ne.s32.totalorder %s224, %s225
    %p237 = scmp.eq.s32.totalorder %s26, 3
    %p238 = por %p236, %p237
    %p240 = scmp.ne.s32.totalorder %s225, %s239
    %p241 = scmp.eq.s32.totalorder %s26, 0
    %p242 = por %p240, %p241
    %s244 = sadd.s32 %s243, 1
    %p247 = scmp.eq.s32.totalorder %s20, 3
    %p248 = scmp.ne.s32.totalorder %s243, %s245
    %p249 = scmp.eq.s32.totalorder %s20, 0
    %p250 = por %p248, %p249
    %p251 = scmp.ne.s32.totalorder %s243, %s245
    %p252 = scmp.eq.s32.totalorder %s25, 3
    %p253 = por %p251, %p252
    %p254 = scmp.ne.s32.totalorder %s245, %s246
    %p255 = scmp.eq.s32.totalorder %s25, 0
    %p256 = por %p254, %p255
    %p257 = scmp.ne.s32.totalorder %s245, %s246
    %p258 = scmp.eq.s32.totalorder %s26, 3
    %p259 = por %p257, %p258
    %p261 = scmp.ne.s32.totalorder %s246, %s260
    %p262 = scmp.eq.s32.totalorder %s26, 0
    %p263 = por %p261, %p262
    %s265 = sadd.s32 %s264, 1
    %p268 = scmp.eq.s32.totalorder %s20, 3
    %p269 = scmp.ne.s32.totalorder %s264, %s266
    %p270 = scmp.eq.s32.totalorder %s20, 0
    %p271 = por %p269, %p270
    %p272 = scmp.ne.s32.totalorder %s264, %s266
    %p273 = scmp.eq.s32.totalorder %s25, 3
    %p274 = por %p272, %p273
    %p275 = scmp.ne.s32.totalorder %s266, %s267
    %p276 = scmp.eq.s32.totalorder %s25, 0
    %p277 = por %p275, %p276
    %p278 = scmp.ne.s32.totalorder %s266, %s267
    %p279 = scmp.eq.s32.totalorder %s26, 3
    %p280 = por %p278, %p279
    %p282 = scmp.ne.s32.totalorder %s267, %s281
    %p283 = scmp.eq.s32.totalorder %s26, 0
    %p284 = por %p282, %p283
    %s286 = sadd.s32 %s285, 1
    %p289 = scmp.eq.s32.totalorder %s20, 3
    %p290 = scmp.ne.s32.totalorder %s285, %s287
    %p291 = scmp.eq.s32.totalorder %s20, 0
    %p292 = por %p290, %p291
    %p293 = scmp.ne.s32.totalorder %s285, %s287
    %p294 = scmp.eq.s32.totalorder %s25, 3
    %p295 = por %p293, %p294
    %p296 = scmp.ne.s32.totalorder %s287, %s288
    %p297 = scmp.eq.s32.totalorder %s25, 0
    %p298 = por %p296, %p297
    %p299 = scmp.ne.s32.totalorder %s287, %s288
    %p300 = scmp.eq.s32.totalorder %s26, 3
    %p301 = por %p299, %p300
    %p303 = scmp.ne.s32.totalorder %s288, %s302
    %p304 = scmp.eq.s32.totalorder %s26, 0
    %p305 = por %p303, %p304
    %s307 = sadd.s32 %s306, 1
    %p310 = scmp.eq.s32.totalorder %s20, 3
    %p311 = scmp.ne.s32.totalorder %s306, %s308
    %p312 = scmp.eq.s32.totalorder %s20, 0
    %p313 = por %p311, %p312
    %p314 = scmp.ne.s32.totalorder %s306, %s308
    %p315 = scmp.eq.s32.totalorder %s25, 3
    %p316 = por %p314, %p315
    %p317 = scmp.ne.s32.totalorder %s308, %s309
    %p318 = scmp.eq.s32.totalorder %s25, 0
    %p319 = por %p317, %p318
    %p320 = scmp.ne.s32.totalorder %s308, %s309
    %p321 = scmp.eq.s32.totalorder %s26, 3
    %p322 = por %p320, %p321
    %p324 = scmp.ne.s32.totalorder %s309, %s323
    %p325 = scmp.eq.s32.totalorder %s26, 0
    %p326 = por %p324, %p325
    %s327 = ssub.s32 %s20, %s27
    %p328 = scmp.eq.s32.totalorder %s327, 0
    %s330 = sadd.s32 %s329, 1
    %s331 = scalar_select %p328, %s329, %s330
    %p334 = pneg %p328
    %p335 = scmp.eq.s32.totalorder %s20, 3
    %p336 = por %p334, %p335
    %p337 = scmp.ne.s32.totalorder %s329, %s332
    %p338 = scmp.eq.s32.totalorder %s20, 0
    %p339 = por %p337, %p338
    %p340 = scmp.ne.s32.totalorder %s329, %s332
    %p341 = scmp.eq.s32.totalorder %s25, 3
    %p342 = por %p340, %p341
    %p343 = scmp.ne.s32.totalorder %s332, %s333
    %p344 = scmp.eq.s32.totalorder %s25, 0
    %p345 = por %p343, %p344
    %p346 = scmp.ne.s32.totalorder %s332, %s333
    %p347 = scmp.eq.s32.totalorder %s26, 3
    %p348 = por %p346, %p347
    %p350 = scmp.ne.s32.totalorder %s333, %s349
    %p351 = scmp.eq.s32.totalorder %s26, 0
    %p352 = por %p350, %p351
    %p353 = scmp.le.s32.totalorder 1, %s20
    %p354 = scmp.lt.s32.totalorder %s20, 5
    %p355 = pnand %p353, %p354
    %p356 = pneg %p355
    // Predicated region
    $region9: #{mrstan_block.1} parent=5 // pred_check
      _
    $region10: #{mrstan_block.1} parent=5 // pred_check_branch
      %358 = sbr.rel (%p355) target = $region12
    $region11: #{mrstan_block.1} parent=5 // pred_region
      %s359 = ssub.s32 %s20, 1
      // Predicated region
      $region13: #{mrstan_block.1} parent=11 // pred_check
        %p360 = pneg %p67
      $region14: #{mrstan_block.1} parent=11 // pred_check_branch
        %362 = sbr.rel (%p360) target = $region16
      $region15: #{mrstan_block.1} parent=11 // pred_region
        _
      $region16: #{mrstan_block.1} parent=11 // pred_fallthru
        _
      // Predicated region
      $region17: #{mrstan_block.1} parent=11 // pred_check
        %p363 = pneg %p88
      $region18: #{mrstan_block.1} parent=11 // pred_check_branch
        %365 = sbr.rel (%p363) target = $region20
      $region19: #{mrstan_block.1} parent=11 // pred_region
        _
      $region20: #{mrstan_block.1} parent=11 // pred_fallthru
        _
      // Predicated region
      $region21: #{mrstan_block.1} parent=11 // pred_check
        %p366 = pneg %p109
      $region22: #{mrstan_block.1} parent=11 // pred_check_branch
        %368 = sbr.rel (%p366) target = $region24
      $region23: #{mrstan_block.1} parent=11 // pred_region
        _
      $region24: #{mrstan_block.1} parent=11 // pred_fallthru
        _
      // Predicated region
      $region25: #{mrstan_block.1} parent=11 // pred_check
        %p369 = pneg %p130
      $region26: #{mrstan_block.1} parent=11 // pred_check_branch
        %371 = sbr.rel (%p369) target = $region28
      $region27: #{mrstan_block.1} parent=11 // pred_region
        _
      $region28: #{mrstan_block.1} parent=11 // pred_fallthru
        _
      // Predicated region
      $region29: #{mrstan_block.1} parent=11 // pred_check
        %p372 = pneg %p151
      $region30: #{mrstan_block.1} parent=11 // pred_check_branch
        %374 = sbr.rel (%p372) target = $region32
      $region31: #{mrstan_block.1} parent=11 // pred_region
        _
      $region32: #{mrstan_block.1} parent=11 // pred_fallthru
        _
      // Predicated region
      $region33: #{mrstan_block.1} parent=11 // pred_check
        %p375 = pneg %p172
      $region34: #{mrstan_block.1} parent=11 // pred_check_branch
        %377 = sbr.rel (%p375) target = $region36
      $region35: #{mrstan_block.1} parent=11 // pred_region
        _
      $region36: #{mrstan_block.1} parent=11 // pred_fallthru
        _
      // Predicated region
      $region37: #{mrstan_block.1} parent=11 // pred_check
        %p378 = pneg %p193
      $region38: #{mrstan_block.1} parent=11 // pred_check_branch
        %380 = sbr.rel (%p378) target = $region40
      $region39: #{mrstan_block.1} parent=11 // pred_region
        _
      $region40: #{mrstan_block.1} parent=11 // pred_fallthru
        _
      // Predicated region
      $region41: #{mrstan_block.1} parent=11 // pred_check
        %p381 = pneg %p214
      $region42: #{mrstan_block.1} parent=11 // pred_check_branch
        %383 = sbr.rel (%p381) target = $region44
      $region43: #{mrstan_block.1} parent=11 // pred_region
        _
      $region44: #{mrstan_block.1} parent=11 // pred_fallthru
        _
      // Predicated region
      $region45: #{mrstan_block.1} parent=11 // pred_check
        %p384 = pneg %p235
      $region46: #{mrstan_block.1} parent=11 // pred_check_branch
        %386 = sbr.rel (%p384) target = $region48
      $region47: #{mrstan_block.1} parent=11 // pred_region
        _
      $region48: #{mrstan_block.1} parent=11 // pred_fallthru
        _
      // Predicated region
      $region49: #{mrstan_block.1} parent=11 // pred_check
        %p387 = pneg %p256
      $region50: #{mrstan_block.1} parent=11 // pred_check_branch
        %389 = sbr.rel (%p387) target = $region52
      $region51: #{mrstan_block.1} parent=11 // pred_region
        _
      $region52: #{mrstan_block.1} parent=11 // pred_fallthru
        _
      // Predicated region
      $region53: #{mrstan_block.1} parent=11 // pred_check
        %p390 = pneg %p277
      $region54: #{mrstan_block.1} parent=11 // pred_check_branch
        %392 = sbr.rel (%p390) target = $region56
      $region55: #{mrstan_block.1} parent=11 // pred_region
        _
      $region56: #{mrstan_block.1} parent=11 // pred_fallthru
        _
      // Predicated region
      $region57: #{mrstan_block.1} parent=11 // pred_check
        %p393 = pneg %p298
      $region58: #{mrstan_block.1} parent=11 // pred_check_branch
        %395 = sbr.rel (%p393) target = $region60
      $region59: #{mrstan_block.1} parent=11 // pred_region
        _
      $region60: #{mrstan_block.1} parent=11 // pred_fallthru
        _
      // Predicated region
      $region61: #{mrstan_block.1} parent=11 // pred_check
        %p396 = pneg %p319
      $region62: #{mrstan_block.1} parent=11 // pred_check_branch
        %398 = sbr.rel (%p396) target = $region64
      $region63: #{mrstan_block.1} parent=11 // pred_region
        _
      $region64: #{mrstan_block.1} parent=11 // pred_fallthru
        _
    $region12: #{mrstan_block.1} parent=5 // pred_fallthru
      _
    %p399 = scmp.lt.s32.totalorder %s20, 4
    // Predicated region
    $region65: #{mrstan_block.1} parent=5 // pred_check
      %p400 = pneg %p399
    $region66: #{mrstan_block.1} parent=5 // pred_check_branch
      %402 = sbr.rel (%p400) target = $region68
    $region67: #{mrstan_block.1} parent=5 // pred_region
      // Predicated region
      $region69: #{mrstan_block.1} parent=67 // pred_check
        %p403 = pneg %p40
      $region70: #{mrstan_block.1} parent=67 // pred_check_branch
        %405 = sbr.rel (%p403) target = $region72
      $region71: #{mrstan_block.1} parent=67 // pred_region
        %s406 = smul.u32 2, %s20
        %p407 = scmp.lt.s32.totalorder %s406, 7
        %s408 = scalar_select %p407, %s406, 7
        %s409 = smul.addr %s408, 2
        %s410 = smul.addr %s409, 8
        %s411 = scalar_lea.vmem %s0, %s410
        %s412 = smul.u32 2, %s20
      $region72: #{mrstan_block.1} parent=67 // pred_fallthru
        _
    $region68: #{mrstan_block.1} parent=5 // pred_fallthru
      _
    %p413 = scmp.le.s32.totalorder 1, %s20
    %p414 = scmp.lt.s32.totalorder %s20, 5
    %p415 = pnand %p413, %p414
    %p416 = pneg %p415
    // Predicated region
    $region73: #{mrstan_block.1} parent=5 // pred_check
      _
    $region74: #{mrstan_block.1} parent=5 // pred_check_branch
      %418 = sbr.rel (%p415) target = $region76
    $region75: #{mrstan_block.1} parent=5 // pred_region
      %s419 = ssub.s32 %s20, 1
      %s420 = smul.u32 2, %s25
      %p421 = scmp.lt.s32.totalorder %s420, 7
      %s422 = scalar_select %p421, %s420, 7
      %s423 = smul.addr %s422, 2
      %s424 = smul.addr %s423, 8
      %s425 = scalar_lea.vmem %s0, %s424
      %p426 = pneg %p46
      %p427 = pneg %p43
      %p428 = pneg %p67
      %p429 = pneg %p64
      %p430 = pneg %p88
      %p431 = pneg %p85
      %p432 = pneg %p109
      %p433 = pneg %p106
      %p434 = pneg %p130
      %p435 = pneg %p127
      %p436 = pneg %p151
      %p437 = pneg %p148
      %p438 = pneg %p172
      %p439 = pneg %p169
      %p440 = pneg %p193
      %p441 = pneg %p190
      %p442 = pneg %p214
      %p443 = pneg %p211
      %p444 = pneg %p235
      %p445 = pneg %p232
      %p446 = pneg %p256
      %p447 = pneg %p253
      %p448 = pneg %p277
      %p449 = pneg %p274
      %p450 = pneg %p298
      %p451 = pneg %p295
      %p452 = pneg %p319
      %p453 = pneg %p316
      %p454 = pneg %p345
      %p455 = pneg %p342
      %s456 = smul.u32 2, %s25
      %p457 = scmp.lt.s32.totalorder %s456, 7
      %s458 = scalar_select %p457, %s456, 7
      %s459 = smul.addr %s458, 2
      %s460 = smul.addr %s459, 8
      %s461 = scalar_lea.vmem %s14, %s460
      %s462 = smul.u32 2, %s25
      %p463 = scmp.lt.s32.totalorder %s462, 7
      %s464 = scalar_select %p463, %s462, 7
      %s465 = smul.addr %s464, 2
      %s466 = smul.addr %s465, 8
      %s467 = scalar_lea.vmem %s0, %s466
      %s468 = smul.u32 2, %s25
      %s469 = smul.u32 2, %s25
      %p470 = scmp.lt.s32.totalorder %s469, 7
      %s471 = scalar_select %p470, %s469, 7
      %s472 = smul.addr %s471, 2
      %s473 = smul.addr %s472, 8
      %s474 = scalar_lea.vmem %s14, %s473
      %s475 = smul.u32 2, %s25
      %v476 = vld [vmem:[%s467] sm:$0xff]
      %v477 = vld [vmem:[%s467 + $0x8] sm:$0xff]
      %v478 = vld [vmem:[%s467 + $0x10] sm:$0xff]
      %v479 = vld [vmem:[%s467 + $0x18] sm:$0xff]
      %v480 = vld [vmem:[%s8] sm:$0xff]
      %v481 = vld [vmem:[%s8 + $0x8] sm:$0xff]
      %v482 = vld [vmem:[%s8 + $0x10] sm:$0xff]
      %v483 = vld [vmem:[%s8 + $0x18] sm:$0xff]
      %v484 = vld [vmem:[%s9] sm:$0x1]
      %v486 = vperm.slane %v484, 0
      %vm488 = vcmask 261120
      %v490 = vsel %vm488, %v476, 0
      %v493 = vsel %vm488, %v477, 0
      %v496 = vsel %vm488, %v478, 0
      %v499 = vsel %vm488, %v479, 0
      %501 = vmatpush.msra.mxu0 0.0
      %502 = vmatpush.msra.mxu0 0.0
      %503 = vmatpush.msra.mxu0 0.0
      %504 = vmatpush.msra.mxu0 0.0
      %505 = vmatpush.msra.mxu0 0.0
      %506 = vmatpush.msra.mxu0 0.0
      %507 = vmatpush.msra.mxu0 0.0
      %508 = vmatpush.msra.mxu0 0.0
      %509 = vmatpush.msra.mxu0 0.0
      %510 = vmatpush.msra.mxu0 0.0
      %511 = vmatpush.msra.mxu0 0.0
      %512 = vmatpush.msra.mxu0 0.0
      %513 = vmatpush.msra.mxu0 %v483
      %514 = vmatpush.msra.mxu0 %v482
      %515 = vmatpush.msra.mxu0 %v481
      %516 = vmatpush.msra.mxu0 %v480
      %517 = vmatmul.f32.gmra.mxu0 %v490
      %v518 = vpop.f32.mrf.mxu0
      %v519 = vadd.f32 %v486, %v518
      %520 = vmatmul.f32.gmra.mxu0 %v493
      %v521 = vpop.f32.mrf.mxu0
      %v522 = vadd.f32 %v486, %v521
      %523 = vmatmul.f32.gmra.mxu0 %v496
      %v524 = vpop.f32.mrf.mxu0
      %v525 = vadd.f32 %v486, %v524
      %526 = vmatmul.f32.gmra.mxu0 %v499
      %v527 = vpop.f32.mrf.mxu0
      %v528 = vadd.f32 %v486, %v527
      %529 = vdwg.mxu0
      %v530 = vld [vmem:[%s7] sm:$0xff]
      %v531 = vld [vmem:[%s7 + $0x8] sm:$0xff]
      %v532 = vld [vmem:[%s7 + $0x10] sm:$0xff]
      %v533 = vld [vmem:[%s7 + $0x18] sm:$0xff]
      %v534 = vld [vmem:[%s7 + $0x20] sm:$0xff]
      %v535 = vld [vmem:[%s7 + $0x28] sm:$0xff]
      %v536 = vld [vmem:[%s7 + $0x30] sm:$0xff]
      %v537 = vld [vmem:[%s7 + $0x38] sm:$0xff]
      %v538 = vld [vmem:[%s7 + $0x40] sm:$0xff]
      %v539 = vld [vmem:[%s7 + $0x48] sm:$0xff]
      %v540 = vld [vmem:[%s7 + $0x50] sm:$0xff]
      %v541 = vld [vmem:[%s7 + $0x58] sm:$0xff]
      %542 = vmatpush.msra.mxu0 0.0
      %543 = vmatpush.msra.mxu0 0.0
      %544 = vmatpush.msra.mxu0 0.0
      %545 = vmatpush.msra.mxu0 0.0
      %546 = vmatpush.msra.mxu0 0.0
      %547 = vmatpush.msra.mxu0 0.0
      %548 = vmatpush.msra.mxu0 0.0
      %549 = vmatpush.msra.mxu0 0.0
      %550 = vmatpush.msra.mxu0 0.0
      %551 = vmatpush.msra.mxu0 0.0
      %552 = vmatpush.msra.mxu0 0.0
      %553 = vmatpush.msra.mxu0 0.0
      %554 = vmatpush.msra.mxu0 %v539
      %555 = vmatpush.msra.mxu0 %v536
      %556 = vmatpush.msra.mxu0 %v533
      %557 = vmatpush.msra.mxu0 %v530
      %558 = vmatmul.f32.gmra.mxu0 %v490
      %v559 = vpop.f32.mrf.mxu0
      %v560 = vadd.f32 0.0, %v559
      %561 = vmatmul.f32.gmra.mxu0 %v493
      %v562 = vpop.f32.mrf.mxu0
      %v563 = vadd.f32 0.0, %v562
      %564 = vmatmul.f32.gmra.mxu0 %v496
      %v565 = vpop.f32.mrf.mxu0
      %v566 = vadd.f32 0.0, %v565
      %567 = vmatmul.f32.gmra.mxu0 %v499
      %v568 = vpop.f32.mrf.mxu0
      %v569 = vadd.f32 0.0, %v568
      %570 = vdwg.mxu0
      %571 = vmatpush.msra.mxu0 0.0
      %572 = vmatpush.msra.mxu0 0.0
      %573 = vmatpush.msra.mxu0 0.0
      %574 = vmatpush.msra.mxu0 0.0
      %575 = vmatpush.msra.mxu0 0.0
      %576 = vmatpush.msra.mxu0 0.0
      %577 = vmatpush.msra.mxu0 0.0
      %578 = vmatpush.msra.mxu0 0.0
      %579 = vmatpush.msra.mxu0 0.0
      %580 = vmatpush.msra.mxu0 0.0
      %581 = vmatpush.msra.mxu0 0.0
      %582 = vmatpush.msra.mxu0 0.0
      %583 = vmatpush.msra.mxu0 %v540
      %584 = vmatpush.msra.mxu0 %v537
      %585 = vmatpush.msra.mxu0 %v534
      %586 = vmatpush.msra.mxu0 %v531
      %587 = vmatmul.f32.gmra.mxu0 %v490
      %v588 = vpop.f32.mrf.mxu0
      %v589 = vadd.f32 0.0, %v588
      %590 = vmatmul.f32.gmra.mxu0 %v493
      %v591 = vpop.f32.mrf.mxu0
      %v592 = vadd.f32 0.0, %v591
      %593 = vmatmul.f32.gmra.mxu0 %v496
      %v594 = vpop.f32.mrf.mxu0
      %v595 = vadd.f32 0.0, %v594
      %596 = vmatmul.f32.gmra.mxu0 %v499
      %v597 = vpop.f32.mrf.mxu0
      %v598 = vadd.f32 0.0, %v597
      %599 = vdwg.mxu0
      %600 = vmatpush.msra.mxu0 0.0
      %601 = vmatpush.msra.mxu0 0.0
      %602 = vmatpush.msra.mxu0 0.0
      %603 = vmatpush.msra.mxu0 0.0
      %604 = vmatpush.msra.mxu0 0.0
      %605 = vmatpush.msra.mxu0 0.0
      %606 = vmatpush.msra.mxu0 0.0
      %607 = vmatpush.msra.mxu0 0.0
      %608 = vmatpush.msra.mxu0 0.0
      %609 = vmatpush.msra.mxu0 0.0
      %610 = vmatpush.msra.mxu0 0.0
      %611 = vmatpush.msra.mxu0 0.0
      %612 = vmatpush.msra.mxu0 %v541
      %613 = vmatpush.msra.mxu0 %v538
      %614 = vmatpush.msra.mxu0 %v535
      %615 = vmatpush.msra.mxu0 %v532
      %616 = vmatmul.f32.gmra.mxu0 %v490
      %v617 = vpop.f32.mrf.mxu0
      %v618 = vadd.f32 0.0, %v617
      %619 = vmatmul.f32.gmra.mxu0 %v493
      %v620 = vpop.f32.mrf.mxu0
      %v621 = vadd.f32 0.0, %v620
      %622 = vmatmul.f32.gmra.mxu0 %v496
      %v623 = vpop.f32.mrf.mxu0
      %v624 = vadd.f32 0.0, %v623
      %625 = vmatmul.f32.gmra.mxu0 %v499
      %v626 = vpop.f32.mrf.mxu0
      %v627 = vadd.f32 0.0, %v626
      %628 = vdwg.mxu0
      %v629 = vld [vmem:[%s1] sm:$0xff]
      %v630 = vld [vmem:[%s1 + $0x8] sm:$0xff]
      %v631 = vld [vmem:[%s1 + $0x10] sm:$0xff]
      %v632 = vld [vmem:[%s1 + $0x18] sm:$0xff]
      %633 = vmatpush.msra.mxu0 0.0
      %634 = vmatpush.msra.mxu0 0.0
      %635 = vmatpush.msra.mxu0 0.0
      %636 = vmatpush.msra.mxu0 0.0
      %637 = vmatpush.msra.mxu0 0.0
      %638 = vmatpush.msra.mxu0 0.0
      %639 = vmatpush.msra.mxu0 0.0
      %640 = vmatpush.msra.mxu0 0.0
      %641 = vmatpush.msra.mxu0 0.0
      %642 = vmatpush.msra.mxu0 0.0
      %643 = vmatpush.msra.mxu0 0.0
      %644 = vmatpush.msra.mxu0 0.0
      %645 = vmatpush.msra.mxu0 %v632
      %646 = vmatpush.msra.mxu0 %v631
      %647 = vmatpush.msra.mxu0 %v630
      %648 = vmatpush.msra.mxu0 %v629
      %649 = vmatmul.f32.gmra.mxu0 %v490
      %v650 = vpop.f32.mrf.mxu0
      %v651 = vadd.f32 0.0, %v650
      %652 = vmatmul.f32.gmra.mxu0 %v493
      %v653 = vpop.f32.mrf.mxu0
      %v654 = vadd.f32 0.0, %v653
      %655 = vmatmul.f32.gmra.mxu0 %v496
      %v656 = vpop.f32.mrf.mxu0
      %v657 = vadd.f32 0.0, %v656
      %658 = vmatmul.f32.gmra.mxu0 %v499
      %v659 = vpop.f32.mrf.mxu0
      %v660 = vadd.f32 0.0, %v659
      %661 = vdwg.mxu0
      %v662 = vld [vmem:[%s2] sm:$0xff]
      %v663 = vld [vmem:[%s2 + $0x8] sm:$0xff]
      %v664 = vld [vmem:[%s2 + $0x10] sm:$0xff]
      %v665 = vld [vmem:[%s2 + $0x18] sm:$0xff]
      %666 = vmatpush.msra.mxu0 0.0
      %667 = vmatpush.msra.mxu0 0.0
      %668 = vmatpush.msra.mxu0 0.0
      %669 = vmatpush.msra.mxu0 0.0
      %670 = vmatpush.msra.mxu0 0.0
      %671 = vmatpush.msra.mxu0 0.0
      %672 = vmatpush.msra.mxu0 0.0
      %673 = vmatpush.msra.mxu0 0.0
      %674 = vmatpush.msra.mxu0 0.0
      %675 = vmatpush.msra.mxu0 0.0
      %676 = vmatpush.msra.mxu0 0.0
      %677 = vmatpush.msra.mxu0 0.0
      %678 = vmatpush.msra.mxu0 %v665
      %679 = vmatpush.msra.mxu0 %v664
      %680 = vmatpush.msra.mxu0 %v663
      %681 = vmatpush.msra.mxu0 %v662
      %682 = vmatmul.f32.gmra.mxu0 %v490
      %v683 = vpop.f32.mrf.mxu0
      %v684 = vadd.f32 0.0, %v683
      %685 = vmatmul.f32.gmra.mxu0 %v493
      %v686 = vpop.f32.mrf.mxu0
      %v687 = vadd.f32 0.0, %v686
      %688 = vmatmul.f32.gmra.mxu0 %v496
      %v689 = vpop.f32.mrf.mxu0
      %v690 = vadd.f32 0.0, %v689
      %691 = vmatmul.f32.gmra.mxu0 %v499
      %v692 = vpop.f32.mrf.mxu0
      %v693 = vadd.f32 0.0, %v692
      %694 = vdwg.mxu0
      %v695 = vld [vmem:[%s3] sm:$0xff]
      %v696 = vld [vmem:[%s3 + $0x8] sm:$0xff]
      %v697 = vld [vmem:[%s4] sm:$0xff]
      %v698 = vld [vmem:[%s4 + $0x8] sm:$0xff]
      %v699 = vld [vmem:[%s5] sm:$0x1]
      %v700 = vld [vmem:[%s10] sm:$0xff]
      %v701 = vld [vmem:[%s10 + $0x8] sm:$0xff]
      %v702 = vld [vmem:[%s10 + $0x10] sm:$0xff]
      %v703 = vld [vmem:[%s10 + $0x18] sm:$0xff]
      %v704 = vld [vmem:[%s10 + $0x20] sm:$0xff]
      %v705 = vld [vmem:[%s10 + $0x28] sm:$0xff]
      %v706 = vld [vmem:[%s10 + $0x30] sm:$0xff]
      %v707 = vld [vmem:[%s10 + $0x38] sm:$0xff]
      %v708 = vld [vmem:[%s10 + $0x40] sm:$0xff]
      %v709 = vld [vmem:[%s10 + $0x48] sm:$0xff]
      %v710 = vld [vmem:[%s10 + $0x50] sm:$0xff]
      %v711 = vld [vmem:[%s10 + $0x58] sm:$0xff]
      %v712 = vld [vmem:[%s10 + $0x60] sm:$0xff]
      %v713 = vld [vmem:[%s10 + $0x68] sm:$0xff]
      %v714 = vld [vmem:[%s10 + $0x70] sm:$0xff]
      %v715 = vld [vmem:[%s10 + $0x78] sm:$0xff]
      %v716 = vld [vmem:[%s11] sm:$0xff]
      %v717 = vld [vmem:[%s12] sm:$0x1]
      %v718 = vld [vmem:[%s13] sm:$0x1]
      %vm719 = vcmask 64512
      %v721 = vsel %vm719, %v684, 0
      %v724 = vsel %vm719, %v687, 0
      %v727 = vsel %vm719, %v651, 0
      %v730 = vsel %vm719, %v654, 0
      %732 = vmatpush.xpose.msra.mxu0 0.0
      %733 = vmatpush.xpose.msra.mxu0 0.0
      %734 = vmatpush.xpose.msra.mxu0 0.0
      %735 = vmatpush.xpose.msra.mxu0 0.0
      %736 = vmatpush.xpose.msra.mxu0 0.0
      %737 = vmatpush.xpose.msra.mxu0 0.0
      %738 = vmatpush.xpose.msra.mxu0 0.0
      %739 = vmatpush.xpose.msra.mxu0 0.0
      %740 = vmatpush.xpose.msra.mxu0 0.0
      %741 = vmatpush.xpose.msra.mxu0 0.0
      %742 = vmatpush.xpose.msra.mxu0 0.0
      %743 = vmatpush.xpose.msra.mxu0 0.0
      %744 = vmatpush.xpose.msra.mxu0 0.0
      %745 = vmatpush.xpose.msra.mxu0 0.0
      %746 = vmatpush.xpose.msra.mxu0 %v730
      %747 = vmatpush.xpose.msra.mxu0 %v727
      %748 = vmatmul.f32.gmra.mxu0 %v721
      %v749 = vpop.f32.mrf.mxu0
      %v750 = vadd.f32 %v695, %v749
      %751 = vmatmul.f32.gmra.mxu0 %v724
      %v752 = vpop.f32.mrf.mxu0
      %v753 = vadd.f32 %v696, %v752
      %754 = vdwg.mxu0
      %v755 = vxor.u32 %v750, 2147483648
      %v756 = vxor.u32 %v753, 2147483648
      %v757 = vmul.f32 %v755, 1.442695
      %v758 = vpow.pop %v757
      %v759 = vmul.f32 %v756, 1.442695
      %v760 = vpow.pop %v759
      %v761 = vadd.f32 %v758, 1.0
      %v762 = vadd.f32 %v760, 1.0
      %v763 = vrcp.pop %v761
      %v764 = vmul.f32 %v761, %v763
      %v765 = vsub.f32 1.0, %v764
      %v766 = vmul.f32 %v763, %v765
      %v767 = vadd.f32 %v763, %v766
      %vm768 = vweird.f32 %v761
      %vm769 = vweird.f32 %v763
      %vm770 = vmor %vm768, %vm769
      %v771 = vsel %vm770, %v763, %v767
      %v772 = vand.u32 2147483647, %v761
      %vm773 = vcmp.eq.f32.partialorder %v772, 8.507059e+37
      %v774 = vand.u32 %v761, 2147483648
      %v775 = vor.u32 1.1754944e-38, %v774
      %v776 = vsel %vm773, %v775, %v771
      %v777 = vmul.f32 1.0, %v776
      %v778 = vrcp.pop %v762
      %v779 = vmul.f32 %v762, %v778
      %v780 = vsub.f32 1.0, %v779
      %v781 = vmul.f32 %v778, %v780
      %v782 = vadd.f32 %v778, %v781
      %vm783 = vweird.f32 %v762
      %vm784 = vweird.f32 %v778
      %vm785 = vmor %vm783, %vm784
      %v786 = vsel %vm785, %v778, %v782
      %v787 = vand.u32 2147483647, %v762
      %vm788 = vcmp.eq.f32.partialorder %v787, 8.507059e+37
      %v789 = vand.u32 %v762, 2147483648
      %v790 = vor.u32 1.1754944e-38, %v789
      %v791 = vsel %vm788, %v790, %v786
      %v792 = vmul.f32 1.0, %v791
      %v794 = vperm.slane %v699, 0
      %vm796 = vcmask 130048
      %v798 = vsel %vm796, %v777, 0
      %v801 = vsel %vm796, %v792, 0
      %803 = vmatpush.msra.mxu0 0.0
      %804 = vmatpush.msra.mxu0 0.0
      %805 = vmatpush.msra.mxu0 0.0
      %806 = vmatpush.msra.mxu0 0.0
      %807 = vmatpush.msra.mxu0 0.0
      %808 = vmatpush.msra.mxu0 0.0
      %809 = vmatpush.msra.mxu0 0.0
      %810 = vmatpush.msra.mxu0 0.0
      %811 = vmatpush.msra.mxu0 0.0
      %812 = vmatpush.msra.mxu0 0.0
      %813 = vmatpush.msra.mxu0 0.0
      %814 = vmatpush.msra.mxu0 0.0
      %815 = vmatpush.msra.mxu0 0.0
      %816 = vmatpush.msra.mxu0 0.0
      %817 = vmatpush.msra.mxu0 %v698
      %818 = vmatpush.msra.mxu0 %v697
      %819 = vmatmul.f32.gmra.mxu0 %v798
      %v820 = vpop.f32.mrf.mxu0
      %v821 = vadd.f32 %v794, %v820
      %822 = vmatmul.f32.gmra.mxu0 %v801
      %v823 = vpop.f32.mrf.mxu0
      %v824 = vadd.f32 %v794, %v823
      %825 = vdwg.mxu0
      %v826 = vsel %vm796, %v821, -inf
      %827 = vmax.xlane.f32.xlu0 %v826
      %v828 = vpop.xlane.xlu0 %827
      %v829 = vsel %vm796, %v824, -inf
      %830 = vmax.xlane.f32.xlu0 %v829
      %v831 = vpop.xlane.xlu0 %830
      %v832 = vsub.f32 %v821, %v828
      %v833 = vsub.f32 %v824, %v831
      %v834 = vmul.f32 %v832, 1.442695
      %v835 = vpow.pop %v834
      %v836 = vmul.f32 %v833, 1.442695
      %v837 = vpow.pop %v836
      %v838 = vsel %vm796, %v835, 0.0
      %839 = vadd.xlane.f32.xlu0 %v838
      %v840 = vpop.xlane.xlu0 %839
      %v841 = vsel %vm796, %v837, 0.0
      %842 = vadd.xlane.f32.xlu0 %v841
      %v843 = vpop.xlane.xlu0 %842
      %v844 = vrcp.pop %v840
      %v845 = vmul.f32 %v840, %v844
      %v846 = vsub.f32 1.0, %v845
      %v847 = vmul.f32 %v844, %v846
      %v848 = vadd.f32 %v844, %v847
      %vm849 = vweird.f32 %v840
      %vm850 = vweird.f32 %v844
      %vm851 = vmor %vm849, %vm850
      %v852 = vsel %vm851, %v844, %v848
      %v853 = vand.u32 2147483647, %v840
      %vm854 = vcmp.eq.f32.partialorder %v853, 8.507059e+37
      %v855 = vand.u32 %v840, 2147483648
      %v856 = vor.u32 1.1754944e-38, %v855
      %v857 = vsel %vm854, %v856, %v852
      %v858 = vrcp.pop %v843
      %v859 = vmul.f32 %v843, %v858
      %v860 = vsub.f32 1.0, %v859
      %v861 = vmul.f32 %v858, %v860
      %v862 = vadd.f32 %v858, %v861
      %vm863 = vweird.f32 %v843
      %vm864 = vweird.f32 %v858
      %vm865 = vmor %vm863, %vm864
      %v866 = vsel %vm865, %v858, %v862
      %v867 = vand.u32 2147483647, %v843
      %vm868 = vcmp.eq.f32.partialorder %v867, 8.507059e+37
      %v869 = vand.u32 %v843, 2147483648
      %v870 = vor.u32 1.1754944e-38, %v869
      %v871 = vsel %vm868, %v870, %v866
      %v872 = vmul.f32 %v835, %v857
      %v873 = vmul.f32 %v837, %v871
      %v874 = vld [vmem:[%s6] sm:$0xff]
      %v875 = vld [vmem:[%s6 + $0x8] sm:$0xff]
      %v876 = vmul.f32 %v874, %v872
      %v877 = vmul.f32 %v875, %v873
      %s878 = scalar_lea.vmem %s6, 16
      %v879 = vld [vmem:[%s878] sm:$0xff]
      %v880 = vld [vmem:[%s878 + $0x8] sm:$0xff]
      %v881 = vmul.f32 %v879, %v872
      %v882 = vmul.f32 %v880, %v873
      %v884 = vsel %vm796, %v881, 0
      %v887 = vsel %vm796, %v882, 0
      %889 = vmatpush.msra.mxu0 0.0
      %890 = vmatpush.msra.mxu0 0.0
      %891 = vmatpush.msra.mxu0 0.0
      %892 = vmatpush.msra.mxu0 0.0
      %893 = vmatpush.msra.mxu0 0.0
      %894 = vmatpush.msra.mxu0 0.0
      %895 = vmatpush.msra.mxu0 0.0
      %896 = vmatpush.msra.mxu0 0.0
      %897 = vmatpush.msra.mxu0 0.0
      %898 = vmatpush.msra.mxu0 0.0
      %899 = vmatpush.msra.mxu0 0.0
      %900 = vmatpush.msra.mxu0 0.0
      %901 = vmatpush.msra.mxu0 0.0
      %902 = vmatpush.msra.mxu0 0.0
      %903 = vmatpush.msra.mxu0 %v592
      %904 = vmatpush.msra.mxu0 %v589
      %905 = vmatmul.f32.gmra.mxu0 %v884
      %v906 = vpop.f32.mrf.mxu0
      %v907 = vadd.f32 0.0, %v906
      %908 = vmatmul.f32.gmra.mxu0 %v887
      %v909 = vpop.f32.mrf.mxu0
      %v910 = vadd.f32 0.0, %v909
      %911 = vdwg.mxu0
      %v913 = vsel %vm796, %v876, 0
      %v916 = vsel %vm796, %v877, 0
      %918 = vmatpush.msra.mxu0 0.0
      %919 = vmatpush.msra.mxu0 0.0
      %920 = vmatpush.msra.mxu0 0.0
      %921 = vmatpush.msra.mxu0 0.0
      %922 = vmatpush.msra.mxu0 0.0
      %923 = vmatpush.msra.mxu0 0.0
      %924 = vmatpush.msra.mxu0 0.0
      %925 = vmatpush.msra.mxu0 0.0
      %926 = vmatpush.msra.mxu0 0.0
      %927 = vmatpush.msra.mxu0 0.0
      %928 = vmatpush.msra.mxu0 0.0
      %929 = vmatpush.msra.mxu0 0.0
      %930 = vmatpush.msra.mxu0 0.0
      %931 = vmatpush.msra.mxu0 0.0
      %932 = vmatpush.msra.mxu0 %v563
      %933 = vmatpush.msra.mxu0 %v560
      %934 = vmatmul.f32.gmra.mxu0 %v913
      %v935 = vpop.f32.mrf.mxu0
      %v936 = vadd.f32 %v907, %v935
      %937 = vmatmul.f32.gmra.mxu0 %v916
      %v938 = vpop.f32.mrf.mxu0
      %v939 = vadd.f32 %v910, %v938
      %940 = vdwg.mxu0
      %s941 = scalar_lea.vmem %s6, 32
      %v942 = vld [vmem:[%s941] sm:$0xff]
      %v943 = vld [vmem:[%s941 + $0x8] sm:$0xff]
      %v944 = vmul.f32 %v942, %v872
      %v945 = vmul.f32 %v943, %v873
      %v947 = vsel %vm796, %v944, 0
      %v950 = vsel %vm796, %v945, 0
      %952 = vmatpush.msra.mxu0 0.0
      %953 = vmatpush.msra.mxu0 0.0
      %954 = vmatpush.msra.mxu0 0.0
      %955 = vmatpush.msra.mxu0 0.0
      %956 = vmatpush.msra.mxu0 0.0
      %957 = vmatpush.msra.mxu0 0.0
      %958 = vmatpush.msra.mxu0 0.0
      %959 = vmatpush.msra.mxu0 0.0
      %960 = vmatpush.msra.mxu0 0.0
      %961 = vmatpush.msra.mxu0 0.0
      %962 = vmatpush.msra.mxu0 0.0
      %963 = vmatpush.msra.mxu0 0.0
      %964 = vmatpush.msra.mxu0 0.0
      %965 = vmatpush.msra.mxu0 0.0
      %966 = vmatpush.msra.mxu0 %v621
      %967 = vmatpush.msra.mxu0 %v618
      %968 = vmatmul.f32.gmra.mxu0 %v947
      %v969 = vpop.f32.mrf.mxu0
      %v970 = vadd.f32 0.0, %v969
      %971 = vmatmul.f32.gmra.mxu0 %v950
      %v972 = vpop.f32.mrf.mxu0
      %v973 = vadd.f32 0.0, %v972
      %974 = vdwg.mxu0
      %v975 = vadd.f32 %v936, %v970
      %v976 = vadd.f32 %v939, %v973
      %v977 = vmax.f32 %v975, 0.0
      %v978 = vmax.f32 %v976, 0.0
      %v979 = vadd.f32 %v519, %v977
      %v980 = vadd.f32 %v522, %v978
      %v981 = vmax.f32 %v979, 0.0
      %v982 = vmax.f32 %v980, 0.0
      %983 = vmatpush.msra.mxu0 %v715
      %984 = vmatpush.msra.mxu0 %v714
      %985 = vmatpush.msra.mxu0 %v713
      %986 = vmatpush.msra.mxu0 %v712
      %987 = vmatpush.msra.mxu0 %v711
      %988 = vmatpush.msra.mxu0 %v710
      %989 = vmatpush.msra.mxu0 %v709
      %990 = vmatpush.msra.mxu0 %v708
      %991 = vmatpush.msra.mxu0 %v707
      %992 = vmatpush.msra.mxu0 %v706
      %993 = vmatpush.msra.mxu0 %v705
      %994 = vmatpush.msra.mxu0 %v704
      %995 = vmatpush.msra.mxu0 %v703
      %996 = vmatpush.msra.mxu0 %v702
      %997 = vmatpush.msra.mxu0 %v701
      %998 = vmatpush.msra.mxu0 %v700
      %999 = vmatmul.f32.gmra.mxu0 %v981
      %v1000 = vpop.f32.mrf.mxu0
      %v1001 = vadd.f32 0.0, %v1000
      %1002 = vmatmul.f32.gmra.mxu0 %v982
      %v1003 = vpop.f32.mrf.mxu0
      %v1004 = vadd.f32 0.0, %v1003
      %1005 = vdwg.mxu0
      %v1007 = vsel %vm719, %v1001, 0
      %v1010 = vsel %vm719, %v1004, 0
      %1012 = vmatpush.msra.mxu0 0.0
      %1013 = vmatpush.msra.mxu0 0.0
      %1014 = vmatpush.msra.mxu0 0.0
      %1015 = vmatpush.msra.mxu0 0.0
      %1016 = vmatpush.msra.mxu0 0.0
      %1017 = vmatpush.msra.mxu0 0.0
      %1018 = vmatpush.msra.mxu0 0.0
      %1019 = vmatpush.msra.mxu0 0.0
      %1020 = vmatpush.msra.mxu0 0.0
      %1021 = vmatpush.msra.mxu0 0.0
      %1022 = vmatpush.msra.mxu0 0.0
      %1023 = vmatpush.msra.mxu0 0.0
      %1024 = vmatpush.msra.mxu0 0.0
      %1025 = vmatpush.msra.mxu0 0.0
      %1026 = vmatpush.msra.mxu0 0.0
      %1027 = vmatpush.msra.mxu0 %v716
      %1028 = vmatmul.f32.gmra.mxu0 %v1007
      %v1029 = vpop.f32.mrf.mxu0
      %v1030 = vadd.f32 0.0, %v1029
      %1031 = vmatmul.f32.gmra.mxu0 %v1010
      %v1032 = vpop.f32.mrf.mxu0
      %v1033 = vadd.f32 0.0, %v1032
      %1034 = vdwg.mxu0
      %v1035 = vsub.f32 %v981, %v1030
      %v1036 = vsub.f32 %v982, %v1033
      %v1037 = vmul.f32 %v1035, %v1035
      %v1038 = vmul.f32 %v1036, %v1036
      %1039 = vmatpush.msra.mxu0 %v715
      %1040 = vmatpush.msra.mxu0 %v714
      %1041 = vmatpush.msra.mxu0 %v713
      %1042 = vmatpush.msra.mxu0 %v712
      %1043 = vmatpush.msra.mxu0 %v711
      %1044 = vmatpush.msra.mxu0 %v710
      %1045 = vmatpush.msra.mxu0 %v709
      %1046 = vmatpush.msra.mxu0 %v708
      %1047 = vmatpush.msra.mxu0 %v707
      %1048 = vmatpush.msra.mxu0 %v706
      %1049 = vmatpush.msra.mxu0 %v705
      %1050 = vmatpush.msra.mxu0 %v704
      %1051 = vmatpush.msra.mxu0 %v703
      %1052 = vmatpush.msra.mxu0 %v702
      %1053 = vmatpush.msra.mxu0 %v701
      %1054 = vmatpush.msra.mxu0 %v700
      %1055 = vmatmul.f32.gmra.mxu0 %v1037
      %v1056 = vpop.f32.mrf.mxu0
      %v1057 = vadd.f32 1e-05, %v1056
      %1058 = vmatmul.f32.gmra.mxu0 %v1038
      %v1059 = vpop.f32.mrf.mxu0
      %v1060 = vadd.f32 1e-05, %v1059
      %1061 = vdwg.mxu0
      %v1062 = vrsqrt.pop %v1057
      %v1063 = vmul.f32 %v1062, %v1057
      %v1064 = vmul.f32 %v1063, %v1062
      %v1065 = vmul.f32 0.5, %v1064
      %v1066 = vsub.f32 1.5, %v1065
      %v1067 = vmul.f32 %v1062, %v1066
      %vm1068 = vweird.f32 %v1057
      %vm1069 = vweird.f32 %v1062
      %vm1070 = vmor %vm1068, %vm1069
      %v1071 = vsel %vm1070, %v1062, %v1067
      %v1072 = vrsqrt.pop %v1060
      %v1073 = vmul.f32 %v1072, %v1060
      %v1074 = vmul.f32 %v1073, %v1072
      %v1075 = vmul.f32 0.5, %v1074
      %v1076 = vsub.f32 1.5, %v1075
      %v1077 = vmul.f32 %v1072, %v1076
      %vm1078 = vweird.f32 %v1060
      %vm1079 = vweird.f32 %v1072
      %vm1080 = vmor %vm1078, %vm1079
      %v1081 = vsel %vm1080, %v1072, %v1077
      %v1083 = vsel %vm719, %v1071, 0
      %v1086 = vsel %vm719, %v1081, 0
      %1088 = vmatpush.msra.mxu0 0.0
      %1089 = vmatpush.msra.mxu0 0.0
      %1090 = vmatpush.msra.mxu0 0.0
      %1091 = vmatpush.msra.mxu0 0.0
      %1092 = vmatpush.msra.mxu0 0.0
      %1093 = vmatpush.msra.mxu0 0.0
      %1094 = vmatpush.msra.mxu0 0.0
      %1095 = vmatpush.msra.mxu0 0.0
      %1096 = vmatpush.msra.mxu0 0.0
      %1097 = vmatpush.msra.mxu0 0.0
      %1098 = vmatpush.msra.mxu0 0.0
      %1099 = vmatpush.msra.mxu0 0.0
      %1100 = vmatpush.msra.mxu0 0.0
      %1101 = vmatpush.msra.mxu0 0.0
      %1102 = vmatpush.msra.mxu0 0.0
      %1103 = vmatpush.msra.mxu0 %v716
      %1104 = vmatmul.f32.gmra.mxu0 %v1083
      %v1105 = vpop.f32.mrf.mxu0
      %v1106 = vadd.f32 0.0, %v1105
      %1107 = vmatmul.f32.gmra.mxu0 %v1086
      %v1108 = vpop.f32.mrf.mxu0
      %v1109 = vadd.f32 0.0, %v1108
      %1110 = vdwg.mxu0
      %v1111 = vmul.f32 %v1035, %v1106
      %v1112 = vmul.f32 %v1036, %v1109
      %v1114 = vperm.slane %v717, 0
      %v1116 = vmul.f32 %v1111, %v1114
      %v1117 = vmul.f32 %v1112, %v1114
      %v1119 = vperm.slane %v718, 0
      %v1121 = vadd.f32 %v1116, %v1119
      %v1122 = vadd.f32 %v1117, %v1119
      %1123 = vst [vmem:[%s474] sm:$0xff] %v1121
      %1124 = vst [vmem:[%s474 + $0x8] sm:$0xff] %v1122
      %v1126 = vsel %vm719, %v690, 0
      %v1129 = vsel %vm719, %v693, 0
      %v1132 = vsel %vm719, %v657, 0
      %v1135 = vsel %vm719, %v660, 0
      %1137 = vmatpush.xpose.msra.mxu0 0.0
      %1138 = vmatpush.xpose.msra.mxu0 0.0
      %1139 = vmatpush.xpose.msra.mxu0 0.0
      %1140 = vmatpush.xpose.msra.mxu0 0.0
      %1141 = vmatpush.xpose.msra.mxu0 0.0
      %1142 = vmatpush.xpose.msra.mxu0 0.0
      %1143 = vmatpush.xpose.msra.mxu0 0.0
      %1144 = vmatpush.xpose.msra.mxu0 0.0
      %1145 = vmatpush.xpose.msra.mxu0 0.0
      %1146 = vmatpush.xpose.msra.mxu0 0.0
      %1147 = vmatpush.xpose.msra.mxu0 0.0
      %1148 = vmatpush.xpose.msra.mxu0 0.0
      %1149 = vmatpush.xpose.msra.mxu0 0.0
      %1150 = vmatpush.xpose.msra.mxu0 0.0
      %1151 = vmatpush.xpose.msra.mxu0 %v1135
      %1152 = vmatpush.xpose.msra.mxu0 %v1132
      %1153 = vmatmul.f32.gmra.mxu0 %v1126
      %v1154 = vpop.f32.mrf.mxu0
      %v1155 = vadd.f32 %v695, %v1154
      %1156 = vmatmul.f32.gmra.mxu0 %v1129
      %v1157 = vpop.f32.mrf.mxu0
      %v1158 = vadd.f32 %v696, %v1157
      %1159 = vdwg.mxu0
      %v1160 = vxor.u32 %v1155, 2147483648
      %v1161 = vxor.u32 %v1158, 2147483648
      %v1162 = vmul.f32 %v1160, 1.442695
      %v1163 = vpow.pop %v1162
      %v1164 = vmul.f32 %v1161, 1.442695
      %v1165 = vpow.pop %v1164
      %v1166 = vadd.f32 %v1163, 1.0
      %v1167 = vadd.f32 %v1165, 1.0
      %v1168 = vrcp.pop %v1166
      %v1169 = vmul.f32 %v1166, %v1168
      %v1170 = vsub.f32 1.0, %v1169
      %v1171 = vmul.f32 %v1168, %v1170
      %v1172 = vadd.f32 %v1168, %v1171
      %vm1173 = vweird.f32 %v1166
      %vm1174 = vweird.f32 %v1168
      %vm1175 = vmor %vm1173, %vm1174
      %v1176 = vsel %vm1175, %v1168, %v1172
      %v1177 = vand.u32 2147483647, %v1166
      %vm1178 = vcmp.eq.f32.partialorder %v1177, 8.507059e+37
      %v1179 = vand.u32 %v1166, 2147483648
      %v1180 = vor.u32 1.1754944e-38, %v1179
      %v1181 = vsel %vm1178, %v1180, %v1176
      %v1182 = vmul.f32 1.0, %v1181
      %v1183 = vrcp.pop %v1167
      %v1184 = vmul.f32 %v1167, %v1183
      %v1185 = vsub.f32 1.0, %v1184
      %v1186 = vmul.f32 %v1183, %v1185
      %v1187 = vadd.f32 %v1183, %v1186
      %vm1188 = vweird.f32 %v1167
      %vm1189 = vweird.f32 %v1183
      %vm1190 = vmor %vm1188, %vm1189
      %v1191 = vsel %vm1190, %v1183, %v1187
      %v1192 = vand.u32 2147483647, %v1167
      %vm1193 = vcmp.eq.f32.partialorder %v1192, 8.507059e+37
      %v1194 = vand.u32 %v1167, 2147483648
      %v1195 = vor.u32 1.1754944e-38, %v1194
      %v1196 = vsel %vm1193, %v1195, %v1191
      %v1197 = vmul.f32 1.0, %v1196
      %v1199 = vsel %vm796, %v1182, 0
      %v1202 = vsel %vm796, %v1197, 0
      %1204 = vmatpush.msra.mxu0 0.0
      %1205 = vmatpush.msra.mxu0 0.0
      %1206 = vmatpush.msra.mxu0 0.0
      %1207 = vmatpush.msra.mxu0 0.0
      %1208 = vmatpush.msra.mxu0 0.0
      %1209 = vmatpush.msra.mxu0 0.0
      %1210 = vmatpush.msra.mxu0 0.0
      %1211 = vmatpush.msra.mxu0 0.0
      %1212 = vmatpush.msra.mxu0 0.0
      %1213 = vmatpush.msra.mxu0 0.0
      %1214 = vmatpush.msra.mxu0 0.0
      %1215 = vmatpush.msra.mxu0 0.0
      %1216 = vmatpush.msra.mxu0 0.0
      %1217 = vmatpush.msra.mxu0 0.0
      %1218 = vmatpush.msra.mxu0 %v698
      %1219 = vmatpush.msra.mxu0 %v697
      %1220 = vmatmul.f32.gmra.mxu0 %v1199
      %v1221 = vpop.f32.mrf.mxu0
      %v1222 = vadd.f32 %v794, %v1221
      %1223 = vmatmul.f32.gmra.mxu0 %v1202
      %v1224 = vpop.f32.mrf.mxu0
      %v1225 = vadd.f32 %v794, %v1224
      %1226 = vdwg.mxu0
      %v1227 = vsel %vm796, %v1222, -inf
      %1228 = vmax.xlane.f32.xlu0 %v1227
      %v1229 = vpop.xlane.xlu0 %1228
      %v1230 = vsel %vm796, %v1225, -inf
      %1231 = vmax.xlane.f32.xlu0 %v1230
      %v1232 = vpop.xlane.xlu0 %1231
      %v1233 = vsub.f32 %v1222, %v1229
      %v1234 = vsub.f32 %v1225, %v1232
      %v1235 = vmul.f32 %v1233, 1.442695
      %v1236 = vpow.pop %v1235
      %v1237 = vmul.f32 %v1234, 1.442695
      %v1238 = vpow.pop %v1237
      %v1239 = vsel %vm796, %v1236, 0.0
      %1240 = vadd.xlane.f32.xlu0 %v1239
      %v1241 = vpop.xlane.xlu0 %1240
      %v1242 = vsel %vm796, %v1238, 0.0
      %1243 = vadd.xlane.f32.xlu0 %v1242
      %v1244 = vpop.xlane.xlu0 %1243
      %v1245 = vrcp.pop %v1241
      %v1246 = vmul.f32 %v1241, %v1245
      %v1247 = vsub.f32 1.0, %v1246
      %v1248 = vmul.f32 %v1245, %v1247
      %v1249 = vadd.f32 %v1245, %v1248
      %vm1250 = vweird.f32 %v1241
      %vm1251 = vweird.f32 %v1245
      %vm1252 = vmor %vm1250, %vm1251
      %v1253 = vsel %vm1252, %v1245, %v1249
      %v1254 = vand.u32 2147483647, %v1241
      %vm1255 = vcmp.eq.f32.partialorder %v1254, 8.507059e+37
      %v1256 = vand.u32 %v1241, 2147483648
      %v1257 = vor.u32 1.1754944e-38, %v1256
      %v1258 = vsel %vm1255, %v1257, %v1253
      %v1259 = vrcp.pop %v1244
      %v1260 = vmul.f32 %v1244, %v1259
      %v1261 = vsub.f32 1.0, %v1260
      %v1262 = vmul.f32 %v1259, %v1261
      %v1263 = vadd.f32 %v1259, %v1262
      %vm1264 = vweird.f32 %v1244
      %vm1265 = vweird.f32 %v1259
      %vm1266 = vmor %vm1264, %vm1265
      %v1267 = vsel %vm1266, %v1259, %v1263
      %v1268 = vand.u32 2147483647, %v1244
      %vm1269 = vcmp.eq.f32.partialorder %v1268, 8.507059e+37
      %v1270 = vand.u32 %v1244, 2147483648
      %v1271 = vor.u32 1.1754944e-38, %v1270
      %v1272 = vsel %vm1269, %v1271, %v1267
      %v1273 = vmul.f32 %v1236, %v1258
      %v1274 = vmul.f32 %v1238, %v1272
      %v1275 = vld [vmem:[%s6] sm:$0xff]
      %v1276 = vld [vmem:[%s6 + $0x8] sm:$0xff]
      %v1277 = vmul.f32 %v1275, %v1273
      %v1278 = vmul.f32 %v1276, %v1274
      %v1279 = vld [vmem:[%s878] sm:$0xff]
      %v1280 = vld [vmem:[%s878 + $0x8] sm:$0xff]
      %v1281 = vmul.f32 %v1279, %v1273
      %v1282 = vmul.f32 %v1280, %v1274
      %v1284 = vsel %vm796, %v1281, 0
      %v1287 = vsel %vm796, %v1282, 0
      %1289 = vmatpush.msra.mxu0 0.0
      %1290 = vmatpush.msra.mxu0 0.0
      %1291 = vmatpush.msra.mxu0 0.0
      %1292 = vmatpush.msra.mxu0 0.0
      %1293 = vmatpush.msra.mxu0 0.0
      %1294 = vmatpush.msra.mxu0 0.0
      %1295 = vmatpush.msra.mxu0 0.0
      %1296 = vmatpush.msra.mxu0 0.0
      %1297 = vmatpush.msra.mxu0 0.0
      %1298 = vmatpush.msra.mxu0 0.0
      %1299 = vmatpush.msra.mxu0 0.0
      %1300 = vmatpush.msra.mxu0 0.0
      %1301 = vmatpush.msra.mxu0 0.0
      %1302 = vmatpush.msra.mxu0 0.0
      %1303 = vmatpush.msra.mxu0 %v598
      %1304 = vmatpush.msra.mxu0 %v595
      %1305 = vmatmul.f32.gmra.mxu0 %v1284
      %v1306 = vpop.f32.mrf.mxu0
      %v1307 = vadd.f32 0.0, %v1306
      %1308 = vmatmul.f32.gmra.mxu0 %v1287
      %v1309 = vpop.f32.mrf.mxu0
      %v1310 = vadd.f32 0.0, %v1309
      %1311 = vdwg.mxu0
      %v1313 = vsel %vm796, %v1277, 0
      %v1316 = vsel %vm796, %v1278, 0
      %1318 = vmatpush.msra.mxu0 0.0
      %1319 = vmatpush.msra.mxu0 0.0
      %1320 = vmatpush.msra.mxu0 0.0
      %1321 = vmatpush.msra.mxu0 0.0
      %1322 = vmatpush.msra.mxu0 0.0
      %1323 = vmatpush.msra.mxu0 0.0
      %1324 = vmatpush.msra.mxu0 0.0
      %1325 = vmatpush.msra.mxu0 0.0
      %1326 = vmatpush.msra.mxu0 0.0
      %1327 = vmatpush.msra.mxu0 0.0
      %1328 = vmatpush.msra.mxu0 0.0
      %1329 = vmatpush.msra.mxu0 0.0
      %1330 = vmatpush.msra.mxu0 0.0
      %1331 = vmatpush.msra.mxu0 0.0
      %1332 = vmatpush.msra.mxu0 %v569
      %1333 = vmatpush.msra.mxu0 %v566
      %1334 = vmatmul.f32.gmra.mxu0 %v1313
      %v1335 = vpop.f32.mrf.mxu0
      %v1336 = vadd.f32 %v1307, %v1335
      %1337 = vmatmul.f32.gmra.mxu0 %v1316
      %v1338 = vpop.f32.mrf.mxu0
      %v1339 = vadd.f32 %v1310, %v1338
      %1340 = vdwg.mxu0
      %v1341 = vld [vmem:[%s941] sm:$0xff]
      %v1342 = vld [vmem:[%s941 + $0x8] sm:$0xff]
      %v1343 = vmul.f32 %v1341, %v1273
      %v1344 = vmul.f32 %v1342, %v1274
      %v1346 = vsel %vm796, %v1343, 0
      %v1349 = vsel %vm796, %v1344, 0
      %1351 = vmatpush.msra.mxu0 0.0
      %1352 = vmatpush.msra.mxu0 0.0
      %1353 = vmatpush.msra.mxu0 0.0
      %1354 = vmatpush.msra.mxu0 0.0
      %1355 = vmatpush.msra.mxu0 0.0
      %1356 = vmatpush.msra.mxu0 0.0
      %1357 = vmatpush.msra.mxu0 0.0
      %1358 = vmatpush.msra.mxu0 0.0
      %1359 = vmatpush.msra.mxu0 0.0
      %1360 = vmatpush.msra.mxu0 0.0
      %1361 = vmatpush.msra.mxu0 0.0
      %1362 = vmatpush.msra.mxu0 0.0
      %1363 = vmatpush.msra.mxu0 0.0
      %1364 = vmatpush.msra.mxu0 0.0
      %1365 = vmatpush.msra.mxu0 %v627
      %1366 = vmatpush.msra.mxu0 %v624
      %1367 = vmatmul.f32.gmra.mxu0 %v1346
      %v1368 = vpop.f32.mrf.mxu0
      %v1369 = vadd.f32 0.0, %v1368
      %1370 = vmatmul.f32.gmra.mxu0 %v1349
      %v1371 = vpop.f32.mrf.mxu0
      %v1372 = vadd.f32 0.0, %v1371
      %1373 = vdwg.mxu0
      %v1374 = vadd.f32 %v1336, %v1369
      %v1375 = vadd.f32 %v1339, %v1372
      %v1376 = vmax.f32 %v1374, 0.0
      %v1377 = vmax.f32 %v1375, 0.0
      %v1378 = vadd.f32 %v525, %v1376
      %v1379 = vadd.f32 %v528, %v1377
      %v1380 = vmax.f32 %v1378, 0.0
      %v1381 = vmax.f32 %v1379, 0.0
      %1382 = vmatpush.msra.mxu0 %v715
      %1383 = vmatpush.msra.mxu0 %v714
      %1384 = vmatpush.msra.mxu0 %v713
      %1385 = vmatpush.msra.mxu0 %v712
      %1386 = vmatpush.msra.mxu0 %v711
      %1387 = vmatpush.msra.mxu0 %v710
      %1388 = vmatpush.msra.mxu0 %v709
      %1389 = vmatpush.msra.mxu0 %v708
      %1390 = vmatpush.msra.mxu0 %v707
      %1391 = vmatpush.msra.mxu0 %v706
      %1392 = vmatpush.msra.mxu0 %v705
      %1393 = vmatpush.msra.mxu0 %v704
      %1394 = vmatpush.msra.mxu0 %v703
      %1395 = vmatpush.msra.mxu0 %v702
      %1396 = vmatpush.msra.mxu0 %v701
      %1397 = vmatpush.msra.mxu0 %v700
      %1398 = vmatmul.f32.gmra.mxu0 %v1380
      %v1399 = vpop.f32.mrf.mxu0
      %v1400 = vadd.f32 0.0, %v1399
      %1401 = vmatmul.f32.gmra.mxu0 %v1381
      %v1402 = vpop.f32.mrf.mxu0
      %v1403 = vadd.f32 0.0, %v1402
      %1404 = vdwg.mxu0
      %v1406 = vsel %vm719, %v1400, 0
      %v1409 = vsel %vm719, %v1403, 0
      %1411 = vmatpush.msra.mxu0 0.0
      %1412 = vmatpush.msra.mxu0 0.0
      %1413 = vmatpush.msra.mxu0 0.0
      %1414 = vmatpush.msra.mxu0 0.0
      %1415 = vmatpush.msra.mxu0 0.0
      %1416 = vmatpush.msra.mxu0 0.0
      %1417 = vmatpush.msra.mxu0 0.0
      %1418 = vmatpush.msra.mxu0 0.0
      %1419 = vmatpush.msra.mxu0 0.0
      %1420 = vmatpush.msra.mxu0 0.0
      %1421 = vmatpush.msra.mxu0 0.0
      %1422 = vmatpush.msra.mxu0 0.0
      %1423 = vmatpush.msra.mxu0 0.0
      %1424 = vmatpush.msra.mxu0 0.0
      %1425 = vmatpush.msra.mxu0 0.0
      %1426 = vmatpush.msra.mxu0 %v716
      %1427 = vmatmul.f32.gmra.mxu0 %v1406
      %v1428 = vpop.f32.mrf.mxu0
      %v1429 = vadd.f32 0.0, %v1428
      %1430 = vmatmul.f32.gmra.mxu0 %v1409
      %v1431 = vpop.f32.mrf.mxu0
      %v1432 = vadd.f32 0.0, %v1431
      %1433 = vdwg.mxu0
      %v1434 = vsub.f32 %v1380, %v1429
      %v1435 = vsub.f32 %v1381, %v1432
      %v1436 = vmul.f32 %v1434, %v1434
      %v1437 = vmul.f32 %v1435, %v1435
      %1438 = vmatpush.msra.mxu0 %v715
      %1439 = vmatpush.msra.mxu0 %v714
      %1440 = vmatpush.msra.mxu0 %v713
      %1441 = vmatpush.msra.mxu0 %v712
      %1442 = vmatpush.msra.mxu0 %v711
      %1443 = vmatpush.msra.mxu0 %v710
      %1444 = vmatpush.msra.mxu0 %v709
      %1445 = vmatpush.msra.mxu0 %v708
      %1446 = vmatpush.msra.mxu0 %v707
      %1447 = vmatpush.msra.mxu0 %v706
      %1448 = vmatpush.msra.mxu0 %v705
      %1449 = vmatpush.msra.mxu0 %v704
      %1450 = vmatpush.msra.mxu0 %v703
      %1451 = vmatpush.msra.mxu0 %v702
      %1452 = vmatpush.msra.mxu0 %v701
      %1453 = vmatpush.msra.mxu0 %v700
      %1454 = vmatmul.f32.gmra.mxu0 %v1436
      %v1455 = vpop.f32.mrf.mxu0
      %v1456 = vadd.f32 1e-05, %v1455
      %1457 = vmatmul.f32.gmra.mxu0 %v1437
      %v1458 = vpop.f32.mrf.mxu0
      %v1459 = vadd.f32 1e-05, %v1458
      %1460 = vdwg.mxu0
      %v1461 = vrsqrt.pop %v1456
      %v1462 = vmul.f32 %v1461, %v1456
      %v1463 = vmul.f32 %v1462, %v1461
      %v1464 = vmul.f32 0.5, %v1463
      %v1465 = vsub.f32 1.5, %v1464
      %v1466 = vmul.f32 %v1461, %v1465
      %vm1467 = vweird.f32 %v1456
      %vm1468 = vweird.f32 %v1461
      %vm1469 = vmor %vm1467, %vm1468
      %v1470 = vsel %vm1469, %v1461, %v1466
      %v1471 = vrsqrt.pop %v1459
      %v1472 = vmul.f32 %v1471, %v1459
      %v1473 = vmul.f32 %v1472, %v1471
      %v1474 = vmul.f32 0.5, %v1473
      %v1475 = vsub.f32 1.5, %v1474
      %v1476 = vmul.f32 %v1471, %v1475
      %vm1477 = vweird.f32 %v1459
      %vm1478 = vweird.f32 %v1471
      %vm1479 = vmor %vm1477, %vm1478
      %v1480 = vsel %vm1479, %v1471, %v1476
      %v1482 = vsel %vm719, %v1470, 0
      %v1485 = vsel %vm719, %v1480, 0
      %1487 = vmatpush.msra.mxu0 0.0
      %1488 = vmatpush.msra.mxu0 0.0
      %1489 = vmatpush.msra.mxu0 0.0
      %1490 = vmatpush.msra.mxu0 0.0
      %1491 = vmatpush.msra.mxu0 0.0
      %1492 = vmatpush.msra.mxu0 0.0
      %1493 = vmatpush.msra.mxu0 0.0
      %1494 = vmatpush.msra.mxu0 0.0
      %1495 = vmatpush.msra.mxu0 0.0
      %1496 = vmatpush.msra.mxu0 0.0
      %1497 = vmatpush.msra.mxu0 0.0
      %1498 = vmatpush.msra.mxu0 0.0
      %1499 = vmatpush.msra.mxu0 0.0
      %1500 = vmatpush.msra.mxu0 0.0
      %1501 = vmatpush.msra.mxu0 0.0
      %1502 = vmatpush.msra.mxu0 %v716
      %1503 = vmatmul.f32.gmra.mxu0 %v1482
      %v1504 = vpop.f32.mrf.mxu0
      %v1505 = vadd.f32 0.0, %v1504
      %1506 = vmatmul.f32.gmra.mxu0 %v1485
      %v1507 = vpop.f32.mrf.mxu0
      %v1508 = vadd.f32 0.0, %v1507
      %1509 = vdwg.mxu0
      %v1510 = vmul.f32 %v1434, %v1505
      %v1511 = vmul.f32 %v1435, %v1508
      %v1512 = vmul.f32 %v1510, %v1114
      %v1513 = vmul.f32 %v1511, %v1114
      %v1514 = vadd.f32 %v1512, %v1119
      %v1515 = vadd.f32 %v1513, %v1119
      %s1516 = scalar_lea.vmem %s474, 16
      %1517 = vst [vmem:[%s1516] sm:$0xff] %v1514
      %1518 = vst [vmem:[%s1516 + $0x8] sm:$0xff] %v1515
      %s1519 = smul.u32 2, %s25
      %p1520 = scmp.lt.s32.totalorder %s1519, 7
      %s1521 = scalar_select %p1520, %s1519, 7
      %s1522 = smul.addr %s1521, 2
      %s1523 = smul.addr %s1522, 8
      %s1524 = scalar_lea.vmem %s14, %s1523
      // Predicated region
      $region77: #{mrstan_block.1} parent=75 // pred_check
        %p1525 = pneg %p342
      $region78: #{mrstan_block.1} parent=75 // pred_check_branch
        %1527 = sbr.rel (%p1525) target = $region80
      $region79: #{mrstan_block.1} parent=75 // pred_region
        %s1528 = smul.u32 2, %s25
      $region80: #{mrstan_block.1} parent=75 // pred_fallthru
        _
    $region76: #{mrstan_block.1} parent=5 // pred_fallthru
      _
    %p1529 = scmp.le.s32.totalorder 2, %s20
    // Predicated region
    $region81: #{mrstan_block.1} parent=5 // pred_check
      %p1530 = pneg %p1529
    $region82: #{mrstan_block.1} parent=5 // pred_check_branch
      %1532 = sbr.rel (%p1530) target = $region84
    $region83: #{mrstan_block.1} parent=5 // pred_region
      %s1533 = ssub.s32 %s20, 2
      // Predicated region
      $region85: #{mrstan_block.1} parent=83 // pred_check
        %p1534 = pneg %p348
      $region86: #{mrstan_block.1} parent=83 // pred_check_branch
        %1536 = sbr.rel (%p1534) target = $region88
      $region87: #{mrstan_block.1} parent=83 // pred_region
        %s1537 = smul.u32 2, %s26
        %p1538 = scmp.lt.s32.totalorder %s1537, 7
        %s1539 = scalar_select %p1538, %s1537, 7
        %s1540 = smul.addr %s1539, 2
        %s1541 = smul.addr %s1540, 8
        %s1542 = scalar_lea.vmem %s14, %s1541
      $region88: #{mrstan_block.1} parent=83 // pred_fallthru
        _
    $region84: #{mrstan_block.1} parent=5 // pred_fallthru
      _
  $region6: #{mrstan_block.1} parent=0 // loop_footer
    %s24 = sadd.s32 1, %s20
  $region7: #{mrstan_block.1} parent=0 // loop_footer_branch
    %19 = sbr.rel target = $region3
  $region8: #{mrstan_block.1} parent=0 // loop_exit
    _

// kernel: tile.18
$region0: #{tile.18}
  #allocation0 [shape = 's32[1]{0}', space=sflag, size = 0x4, scoped, tag = 'scoped memory for tile.18']
  %s0 = inlined_call_operand.vmem [shape: f32[16], index: 0, kind: input, shape index: {}]
  %s1 = inlined_call_operand.vmem [shape: f32[8,16], index: 1, kind: output, shape index: {}]
  // Predicated region
  $region2: #{tile.18} parent=0 // pred_check
    _
  $region3: #{tile.18} parent=0 // pred_check_branch
    %3 = sbr.rel (0) target = $region5
  $region4: #{tile.18} parent=0 // pred_region
    _
  $region5: #{tile.18} parent=0 // pred_fallthru
    _
  %v4 = vld [vmem:[%s0] ss:$0 sm:$0xff]
  %5 = vst [vmem:[%s1] sm:$0xff] %v4

// kernel: tile.19
$region0: #{tile.19}
  %s0 = inlined_call_operand.vmem [shape: f32[8,16], index: 0, kind: input, shape index: {}]
  %s1 = inlined_call_operand.vmem [shape: f32[1,128], index: 1, kind: output, shape index: {}]
  $region1: #{tile.19} parent=0
    #allocation0 [shape = 'u8[4096]{0}', space=vmem, size = 0x1000, scoped, tag = 'scoped mem for output reshape']
    %v2 = vld [vmem:[%s0] sm:$0x1]
    %vm3 = vcmask 130048
    %4 = vst.msk [vmem:[#allocation0] sm:$0x1] %vm3, %v2
    %s5 = scalar_lea.vmem %s0, 7
    %v6 = vld [vmem:[%s5] sm:$0x1]
    %7 = vrot.lane.b32.xlu0 %v6, 112
    %v8 = vpop.permute.xlu0 %7
    %vm9 = vcmask 1048448
    %10 = vst.msk [vmem:[#allocation0] sm:$0x1] %vm9, %v8
    %s11 = scalar_lea.vmem %s0, 6
    %v12 = vld [vmem:[%s11] sm:$0x1]
    %13 = vrot.lane.b32.xlu0 %v12, 96
    %v14 = vpop.permute.xlu0 %13
    %vm15 = vcmask 917248
    %16 = vst.msk [vmem:[#allocation0] sm:$0x1] %vm15, %v14
    %s17 = scalar_lea.vmem %s0, 5
    %v18 = vld [vmem:[%s17] sm:$0x1]
    %19 = vrot.lane.b32.xlu0 %v18, 80
    %v20 = vpop.permute.xlu0 %19
    %vm21 = vcmask 786048
    %22 = vst.msk [vmem:[#allocation0] sm:$0x1] %vm21, %v20
    %s23 = scalar_lea.vmem %s0, 4
    %v24 = vld [vmem:[%s23] sm:$0x1]
    %25 = vrot.lane.b32.xlu0 %v24, 64
    %v26 = vpop.permute.xlu0 %25
    %vm27 = vcmask 654848
    %28 = vst.msk [vmem:[#allocation0] sm:$0x1] %vm27, %v26
    %s29 = scalar_lea.vmem %s0, 3
    %v30 = vld [vmem:[%s29] sm:$0x1]
    %31 = vrot.lane.b32.xlu0 %v30, 48
    %v32 = vpop.permute.xlu0 %31
    %vm33 = vcmask 523648
    %34 = vst.msk [vmem:[#allocation0] sm:$0x1] %vm33, %v32
    %s35 = scalar_lea.vmem %s0, 2
    %v36 = vld [vmem:[%s35] sm:$0x1]
    %37 = vrot.lane.b32.xlu0 %v36, 32
    %v38 = vpop.permute.xlu0 %37
    %vm39 = vcmask 392448
    %40 = vst.msk [vmem:[#allocation0] sm:$0x1] %vm39, %v38
    %s41 = scalar_lea.vmem %s0, 1
    %v42 = vld [vmem:[%s41] sm:$0x1]
    %43 = vrot.lane.b32.xlu0 %v42, 16
    %v44 = vpop.permute.xlu0 %43
    %vm45 = vcmask 261248
    %46 = vst.msk [vmem:[#allocation0] sm:$0x1] %vm45, %v44
    %s48 = ssub.s32 2, 1
    %v49 = vld [vmem:[#allocation0] sm:%s48]
    %s51 = ssub.s32 2, 1
    %52 = vst [vmem:[%s1] sm:%s51] %v49

// kernel: mrstan_block.1
$region0: #{mrstan_block.1}
  #allocation0 [shape = 'u32[]', space=smem, size = 0x4, offset = 0x4, fixed_abs, tag = 'smem constant byte address 0x4 - core index']
  #allocation1 [shape = 'u32[72,128]{1,0:T(1,128)}', space=vmem, size = 0x9000, scoped, tag = 'internal scratch']
  %s0 = inlined_call_operand.vmem [shape: f32[8,16,32], index: 0, kind: input, shape index: {}]
  %s1 = inlined_call_operand.vmem [shape: f32[32,8], index: 1, kind: input, shape index: {}]
  %s2 = inlined_call_operand.vmem [shape: f32[32,8], index: 2, kind: input, shape index: {}]
  %s3 = inlined_call_operand.vmem [shape: f32[16,16], index: 3, kind: input, shape index: {}]
  %s4 = inlined_call_operand.vmem [shape: f32[16,16], index: 4, kind: input, shape index: {}]
  %s5 = inlined_call_operand.vmem [shape: f32[1,16], index: 5, kind: input, shape index: {}]
  %s6 = inlined_call_operand.vmem [shape: f32[3,16,16], index: 6, kind: input, shape index: {}]
  %s7 = inlined_call_operand.vmem [shape: f32[32,384], index: 7, kind: input, shape index: {}]
  %s8 = inlined_call_operand.vmem [shape: f32[32,128], index: 8, kind: input, shape index: {}]
  %s9 = inlined_call_operand.vmem [shape: f32[1,128], index: 9, kind: input, shape index: {}]
  %s10 = inlined_call_operand.vmem [shape: f32[128,8], index: 10, kind: input, shape index: {}]
  %s11 = inlined_call_operand.vmem [shape: f32[8,128], index: 11, kind: input, shape index: {}]
  %s12 = inlined_call_operand.vmem [shape: f32[1,128], index: 12, kind: input, shape index: {}]
  %s13 = inlined_call_operand.vmem [shape: f32[1,128], index: 13, kind: input, shape index: {}]
  %s14 = inlined_call_operand.vmem [shape: f32[8,16,128], index: 14, kind: output, shape index: {}]
  %s15 = sld [smem:[#allocation0]]
  $region89: #{mrstan_block.1} parent=0
    _
  %s17 = ssub.s32 1, %s15
  %s18 = scalar_select 0, %s17, %s15
  loop: start=0, step=1, limit=6
  $region2: #{mrstan_block.1} parent=0 // loop_pre_header
    _
  $region3: #{mrstan_block.1} parent=0 // loop_header
    %s20 = sphi 0, %s24
    %p21 = scmp.ge.s32.totalorder %s20, 6
    %s30 = sphi 0, %s32
    %s33 = sphi 0, %s30
    %s34 = sphi 0, %s33
    %s50 = sphi 0, %s34
    %s54 = sphi 0, %s54
    %s56 = sphi 0, %s54
    %s57 = sphi 0, %s56
    %s71 = sphi 0, %s57
    %s75 = sphi 0, %s75
    %s77 = sphi 0, %s75
    %s78 = sphi 0, %s77
    %s92 = sphi 0, %s78
    %s96 = sphi 0, %s96
    %s98 = sphi 0, %s96
    %s99 = sphi 0, %s98
    %s113 = sphi 0, %s99
    %s117 = sphi 0, %s117
    %s119 = sphi 0, %s117
    %s120 = sphi 0, %s119
    %s134 = sphi 0, %s120
    %s138 = sphi 0, %s138
    %s140 = sphi 0, %s138
    %s141 = sphi 0, %s140
    %s155 = sphi 0, %s141
    %s159 = sphi 0, %s159
    %s161 = sphi 0, %s159
    %s162 = sphi 0, %s161
    %s176 = sphi 0, %s162
    %s180 = sphi 0, %s180
    %s182 = sphi 0, %s180
    %s183 = sphi 0, %s182
    %s197 = sphi 0, %s183
    %s201 = sphi 0, %s201
    %s203 = sphi 0, %s201
    %s204 = sphi 0, %s203
    %s218 = sphi 0, %s204
    %s222 = sphi 0, %s222
    %s224 = sphi 0, %s222
    %s225 = sphi 0, %s224
    %s239 = sphi 0, %s225
    %s243 = sphi 0, %s243
    %s245 = sphi 0, %s243
    %s246 = sphi 0, %s245
    %s260 = sphi 0, %s246
    %s264 = sphi 0, %s264
    %s266 = sphi 0, %s264
    %s267 = sphi 0, %s266
    %s281 = sphi 0, %s267
    %s285 = sphi 0, %s285
    %s287 = sphi 0, %s285
    %s288 = sphi 0, %s287
    %s302 = sphi 0, %s288
    %s306 = sphi 0, %s306
    %s308 = sphi 0, %s306
    %s309 = sphi 0, %s308
    %s323 = sphi 0, %s309
    %s329 = sphi 0, %s331
    %s332 = sphi 0, %s329
    %s333 = sphi 0, %s332
    %s349 = sphi 0, %s333
  $region4: #{mrstan_block.1} parent=0 // loop_header_branch
    %23 = sbr.rel (%p21) target = $region8
  $region5: #{mrstan_block.1} parent=0 // loop_body
    %s25 = ssub.s32 %s20, 1
    %s26 = ssub.s32 %s20, 2
    %s27 = sadd.s32 %s20, 1
    %s28 = ssub.s32 %s20, %s27
    %p29 = scmp.eq.s32.totalorder %s28, 0
    %s31 = sadd.s32 %s30, 1
    %s32 = scalar_select %p29, %s30, %s31
    %p35 = pneg %p29
    %p36 = scmp.eq.s32.totalorder %s20, 3
    %p37 = por %p35, %p36
    %p38 = scmp.ne.s32.totalorder %s30, %s33
    %p39 = scmp.eq.s32.totalorder %s20, 0
    %p40 = por %p38, %p39
    %p41 = scmp.ne.s32.totalorder %s30, %s33
    %p42 = scmp.eq.s32.totalorder %s25, 3
    %p43 = por %p41, %p42
    %p44 = scmp.ne.s32.totalorder %s33, %s34
    %p45 = scmp.eq.s32.totalorder %s25, 0
    %p46 = por %p44, %p45
    %p47 = scmp.ne.s32.totalorder %s33, %s34
    %p48 = scmp.eq.s32.totalorder %s26, 3
    %p49 = por %p47, %p48
    %p51 = scmp.ne.s32.totalorder %s34, %s50
    %p52 = scmp.eq.s32.totalorder %s26, 0
    %p53 = por %p51, %p52
    %s55 = sadd.s32 %s54, 1
    %p58 = scmp.eq.s32.totalorder %s20, 3
    %p59 = scmp.ne.s32.totalorder %s54, %s56
    %p60 = scmp.eq.s32.totalorder %s20, 0
    %p61 = por %p59, %p60
    %p62 = scmp.ne.s32.totalorder %s54, %s56
    %p63 = scmp.eq.s32.totalorder %s25, 3
    %p64 = por %p62, %p63
    %p65 = scmp.ne.s32.totalorder %s56, %s57
    %p66 = scmp.eq.s32.totalorder %s25, 0
    %p67 = por %p65, %p66
    %p68 = scmp.ne.s32.totalorder %s56, %s57
    %p69 = scmp.eq.s32.totalorder %s26, 3
    %p70 = por %p68, %p69
    %p72 = scmp.ne.s32.totalorder %s57, %s71
    %p73 = scmp.eq.s32.totalorder %s26, 0
    %p74 = por %p72, %p73
    %s76 = sadd.s32 %s75, 1
    %p79 = scmp.eq.s32.totalorder %s20, 3
    %p80 = scmp.ne.s32.totalorder %s75, %s77
    %p81 = scmp.eq.s32.totalorder %s20, 0
    %p82 = por %p80, %p81
    %p83 = scmp.ne.s32.totalorder %s75, %s77
    %p84 = scmp.eq.s32.totalorder %s25, 3
    %p85 = por %p83, %p84
    %p86 = scmp.ne.s32.totalorder %s77, %s78
    %p87 = scmp.eq.s32.totalorder %s25, 0
    %p88 = por %p86, %p87
    %p89 = scmp.ne.s32.totalorder %s77, %s78
    %p90 = scmp.eq.s32.totalorder %s26, 3
    %p91 = por %p89, %p90
    %p93 = scmp.ne.s32.totalorder %s78, %s92
    %p94 = scmp.eq.s32.totalorder %s26, 0
    %p95 = por %p93, %p94
    %s97 = sadd.s32 %s96, 1
    %p100 = scmp.eq.s32.totalorder %s20, 3
    %p101 = scmp.ne.s32.totalorder %s96, %s98
    %p102 = scmp.eq.s32.totalorder %s20, 0
    %p103 = por %p101, %p102
    %p104 = scmp.ne.s32.totalorder %s96, %s98
    %p105 = scmp.eq.s32.totalorder %s25, 3
    %p106 = por %p104, %p105
    %p107 = scmp.ne.s32.totalorder %s98, %s99
    %p108 = scmp.eq.s32.totalorder %s25, 0
    %p109 = por %p107, %p108
    %p110 = scmp.ne.s32.totalorder %s98, %s99
    %p111 = scmp.eq.s32.totalorder %s26, 3
    %p112 = por %p110, %p111
    %p114 = scmp.ne.s32.totalorder %s99, %s113
    %p115 = scmp.eq.s32.totalorder %s26, 0
    %p116 = por %p114, %p115
    %s118 = sadd.s32 %s117, 1
    %p121 = scmp.eq.s32.totalorder %s20, 3
    %p122 = scmp.ne.s32.totalorder %s117, %s119
    %p123 = scmp.eq.s32.totalorder %s20, 0
    %p124 = por %p122, %p123
    %p125 = scmp.ne.s32.totalorder %s117, %s119
    %p126 = scmp.eq.s32.totalorder %s25, 3
    %p127 = por %p125, %p126
    %p128 = scmp.ne.s32.totalorder %s119, %s120
    %p129 = scmp.eq.s32.totalorder %s25, 0
    %p130 = por %p128, %p129
    %p131 = scmp.ne.s32.totalorder %s119, %s120
    %p132 = scmp.eq.s32.totalorder %s26, 3
    %p133 = por %p131, %p132
    %p135 = scmp.ne.s32.totalorder %s120, %s134
    %p136 = scmp.eq.s32.totalorder %s26, 0
    %p137 = por %p135, %p136
    %s139 = sadd.s32 %s138, 1
    %p142 = scmp.eq.s32.totalorder %s20, 3
    %p143 = scmp.ne.s32.totalorder %s138, %s140
    %p144 = scmp.eq.s32.totalorder %s20, 0
    %p145 = por %p143, %p144
    %p146 = scmp.ne.s32.totalorder %s138, %s140
    %p147 = scmp.eq.s32.totalorder %s25, 3
    %p148 = por %p146, %p147
    %p149 = scmp.ne.s32.totalorder %s140, %s141
    %p150 = scmp.eq.s32.totalorder %s25, 0
    %p151 = por %p149, %p150
    %p152 = scmp.ne.s32.totalorder %s140, %s141
    %p153 = scmp.eq.s32.totalorder %s26, 3
    %p154 = por %p152, %p153
    %p156 = scmp.ne.s32.totalorder %s141, %s155
    %p157 = scmp.eq.s32.totalorder %s26, 0
    %p158 = por %p156, %p157
    %s160 = sadd.s32 %s159, 1
    %p163 = scmp.eq.s32.totalorder %s20, 3
    %p164 = scmp.ne.s32.totalorder %s159, %s161
    %p165 = scmp.eq.s32.totalorder %s20, 0
    %p166 = por %p164, %p165
    %p167 = scmp.ne.s32.totalorder %s159, %s161
    %p168 = scmp.eq.s32.totalorder %s25, 3
    %p169 = por %p167, %p168
    %p170 = scmp.ne.s32.totalorder %s161, %s162
    %p171 = scmp.eq.s32.totalorder %s25, 0
    %p172 = por %p170, %p171
    %p173 = scmp.ne.s32.totalorder %s161, %s162
    %p174 = scmp.eq.s32.totalorder %s26, 3
    %p175 = por %p173, %p174
    %p177 = scmp.ne.s32.totalorder %s162, %s176
    %p178 = scmp.eq.s32.totalorder %s26, 0
    %p179 = por %p177, %p178
    %s181 = sadd.s32 %s180, 1
    %p184 = scmp.eq.s32.totalorder %s20, 3
    %p185 = scmp.ne.s32.totalorder %s180, %s182
    %p186 = scmp.eq.s32.totalorder %s20, 0
    %p187 = por %p185, %p186
    %p188 = scmp.ne.s32.totalorder %s180, %s182
    %p189 = scmp.eq.s32.totalorder %s25, 3
    %p190 = por %p188, %p189
    %p191 = scmp.ne.s32.totalorder %s182, %s183
    %p192 = scmp.eq.s32.totalorder %s25, 0
    %p193 = por %p191, %p192
    %p194 = scmp.ne.s32.totalorder %s182, %s183
    %p195 = scmp.eq.s32.totalorder %s26, 3
    %p196 = por %p194, %p195
    %p198 = scmp.ne.s32.totalorder %s183, %s197
    %p199 = scmp.eq.s32.totalorder %s26, 0
    %p200 = por %p198, %p199
    %s202 = sadd.s32 %s201, 1
    %p205 = scmp.eq.s32.totalorder %s20, 3
    %p206 = scmp.ne.s32.totalorder %s201, %s203
    %p207 = scmp.eq.s32.totalorder %s20, 0
    %p208 = por %p206, %p207
    %p209 = scmp.ne.s32.totalorder %s201, %s203
    %p210 = scmp.eq.s32.totalorder %s25, 3
    %p211 = por %p209, %p210
    %p212 = scmp.ne.s32.totalorder %s203, %s204
    %p213 = scmp.eq.s32.totalorder %s25, 0
    %p214 = por %p212, %p213
    %p215 = scmp.ne.s32.totalorder %s203, %s204
    %p216 = scmp.eq.s32.totalorder %s26, 3
    %p217 = por %p215, %p216
    %p219 = scmp.ne.s32.totalorder %s204, %s218
    %p220 = scmp.eq.s32.totalorder %s26, 0
    %p221 = por %p219, %p220
    %s223 = sadd.s32 %s222, 1
    %p226 = scmp.eq.s32.totalorder %s20, 3
    %p227 = scmp.ne.s32.totalorder %s222, %s224
    %p228 = scmp.eq.s32.totalorder %s20, 0
    %p229 = por %p227, %p228
    %p230 = scmp.ne.s32.totalorder %s222, %s224
    %p231 = scmp.eq.s32.totalorder %s25, 3
    %p232 = por %p230, %p231
    %p233 = scmp.ne.s32.totalorder %s224, %s225
    %p234 = scmp.eq.s32.totalorder %s25, 0
    %p235 = por %p233, %p234
    %p236 = scmp.ne.s32.totalorder %s224, %s225
    %p237 = scmp.eq.s32.totalorder %s26, 3
    %p238 = por %p236, %p237
    %p240 = scmp.ne.s32.totalorder %s225, %s239
    %p241 = scmp.eq.s32.totalorder %s26, 0
    %p242 = por %p240, %p241
    %s244 = sadd.s32 %s243, 1
    %p247 = scmp.eq.s32.totalorder %s20, 3
    %p248 = scmp.ne.s32.totalorder %s243, %s245
    %p249 = scmp.eq.s32.totalorder %s20, 0
    %p250 = por %p248, %p249
    %p251 = scmp.ne.s32.totalorder %s243, %s245
    %p252 = scmp.eq.s32.totalorder %s25, 3
    %p253 = por %p251, %p252
    %p254 = scmp.ne.s32.totalorder %s245, %s246
    %p255 = scmp.eq.s32.totalorder %s25, 0
    %p256 = por %p254, %p255
    %p257 = scmp.ne.s32.totalorder %s245, %s246
    %p258 = scmp.eq.s32.totalorder %s26, 3
    %p259 = por %p257, %p258
    %p261 = scmp.ne.s32.totalorder %s246, %s260
    %p262 = scmp.eq.s32.totalorder %s26, 0
    %p263 = por %p261, %p262
    %s265 = sadd.s32 %s264, 1
    %p268 = scmp.eq.s32.totalorder %s20, 3
    %p269 = scmp.ne.s32.totalorder %s264, %s266
    %p270 = scmp.eq.s32.totalorder %s20, 0
    %p271 = por %p269, %p270
    %p272 = scmp.ne.s32.totalorder %s264, %s266
    %p273 = scmp.eq.s32.totalorder %s25, 3
    %p274 = por %p272, %p273
    %p275 = scmp.ne.s32.totalorder %s266, %s267
    %p276 = scmp.eq.s32.totalorder %s25, 0
    %p277 = por %p275, %p276
    %p278 = scmp.ne.s32.totalorder %s266, %s267
    %p279 = scmp.eq.s32.totalorder %s26, 3
    %p280 = por %p278, %p279
    %p282 = scmp.ne.s32.totalorder %s267, %s281
    %p283 = scmp.eq.s32.totalorder %s26, 0
    %p284 = por %p282, %p283
    %s286 = sadd.s32 %s285, 1
    %p289 = scmp.eq.s32.totalorder %s20, 3
    %p290 = scmp.ne.s32.totalorder %s285, %s287
    %p291 = scmp.eq.s32.totalorder %s20, 0
    %p292 = por %p290, %p291
    %p293 = scmp.ne.s32.totalorder %s285, %s287
    %p294 = scmp.eq.s32.totalorder %s25, 3
    %p295 = por %p293, %p294
    %p296 = scmp.ne.s32.totalorder %s287, %s288
    %p297 = scmp.eq.s32.totalorder %s25, 0
    %p298 = por %p296, %p297
    %p299 = scmp.ne.s32.totalorder %s287, %s288
    %p300 = scmp.eq.s32.totalorder %s26, 3
    %p301 = por %p299, %p300
    %p303 = scmp.ne.s32.totalorder %s288, %s302
    %p304 = scmp.eq.s32.totalorder %s26, 0
    %p305 = por %p303, %p304
    %s307 = sadd.s32 %s306, 1
    %p310 = scmp.eq.s32.totalorder %s20, 3
    %p311 = scmp.ne.s32.totalorder %s306, %s308
    %p312 = scmp.eq.s32.totalorder %s20, 0
    %p313 = por %p311, %p312
    %p314 = scmp.ne.s32.totalorder %s306, %s308
    %p315 = scmp.eq.s32.totalorder %s25, 3
    %p316 = por %p314, %p315
    %p317 = scmp.ne.s32.totalorder %s308, %s309
    %p318 = scmp.eq.s32.totalorder %s25, 0
    %p319 = por %p317, %p318
    %p320 = scmp.ne.s32.totalorder %s308, %s309
    %p321 = scmp.eq.s32.totalorder %s26, 3
    %p322 = por %p320, %p321
    %p324 = scmp.ne.s32.totalorder %s309, %s323
    %p325 = scmp.eq.s32.totalorder %s26, 0
    %p326 = por %p324, %p325
    %s327 = ssub.s32 %s20, %s27
    %p328 = scmp.eq.s32.totalorder %s327, 0
    %s330 = sadd.s32 %s329, 1
    %s331 = scalar_select %p328, %s329, %s330
    %p334 = pneg %p328
    %p335 = scmp.eq.s32.totalorder %s20, 3
    %p336 = por %p334, %p335
    %p337 = scmp.ne.s32.totalorder %s329, %s332
    %p338 = scmp.eq.s32.totalorder %s20, 0
    %p339 = por %p337, %p338
    %p340 = scmp.ne.s32.totalorder %s329, %s332
    %p341 = scmp.eq.s32.totalorder %s25, 3
    %p342 = por %p340, %p341
    %p343 = scmp.ne.s32.totalorder %s332, %s333
    %p344 = scmp.eq.s32.totalorder %s25, 0
    %p345 = por %p343, %p344
    %p346 = scmp.ne.s32.totalorder %s332, %s333
    %p347 = scmp.eq.s32.totalorder %s26, 3
    %p348 = por %p346, %p347
    %p350 = scmp.ne.s32.totalorder %s333, %s349
    %p351 = scmp.eq.s32.totalorder %s26, 0
    %p352 = por %p350, %p351
    %p353 = scmp.le.s32.totalorder 1, %s20
    %p354 = scmp.lt.s32.totalorder %s20, 5
    %p355 = pnand %p353, %p354
    %p356 = pneg %p355
    // Predicated region
    $region9: #{mrstan_block.1} parent=5 // pred_check
      _
    $region10: #{mrstan_block.1} parent=5 // pred_check_branch
      %358 = sbr.rel (%p355) target = $region12
    $region11: #{mrstan_block.1} parent=5 // pred_region
      %s359 = ssub.s32 %s20, 1
      // Predicated region
      $region13: #{mrstan_block.1} parent=11 // pred_check
        %p360 = pneg %p67
      $region14: #{mrstan_block.1} parent=11 // pred_check_branch
        %362 = sbr.rel (%p360) target = $region16
      $region15: #{mrstan_block.1} parent=11 // pred_region
        _
      $region16: #{mrstan_block.1} parent=11 // pred_fallthru
        _
      // Predicated region
      $region17: #{mrstan_block.1} parent=11 // pred_check
        %p363 = pneg %p88
      $region18: #{mrstan_block.1} parent=11 // pred_check_branch
        %365 = sbr.rel (%p363) target = $region20
      $region19: #{mrstan_block.1} parent=11 // pred_region
        _
      $region20: #{mrstan_block.1} parent=11 // pred_fallthru
        _
      // Predicated region
      $region21: #{mrstan_block.1} parent=11 // pred_check
        %p366 = pneg %p109
      $region22: #{mrstan_block.1} parent=11 // pred_check_branch
        %368 = sbr.rel (%p366) target = $region24
      $region23: #{mrstan_block.1} parent=11 // pred_region
        _
      $region24: #{mrstan_block.1} parent=11 // pred_fallthru
        _
      // Predicated region
      $region25: #{mrstan_block.1} parent=11 // pred_check
        %p369 = pneg %p130
      $region26: #{mrstan_block.1} parent=11 // pred_check_branch
        %371 = sbr.rel (%p369) target = $region28
      $region27: #{mrstan_block.1} parent=11 // pred_region
        _
      $region28: #{mrstan_block.1} parent=11 // pred_fallthru
        _
      // Predicated region
      $region29: #{mrstan_block.1} parent=11 // pred_check
        %p372 = pneg %p151
      $region30: #{mrstan_block.1} parent=11 // pred_check_branch
        %374 = sbr.rel (%p372) target = $region32
      $region31: #{mrstan_block.1} parent=11 // pred_region
        _
      $region32: #{mrstan_block.1} parent=11 // pred_fallthru
        _
      // Predicated region
      $region33: #{mrstan_block.1} parent=11 // pred_check
        %p375 = pneg %p172
      $region34: #{mrstan_block.1} parent=11 // pred_check_branch
        %377 = sbr.rel (%p375) target = $region36
      $region35: #{mrstan_block.1} parent=11 // pred_region
        _
      $region36: #{mrstan_block.1} parent=11 // pred_fallthru
        _
      // Predicated region
      $region37: #{mrstan_block.1} parent=11 // pred_check
        %p378 = pneg %p193
      $region38: #{mrstan_block.1} parent=11 // pred_check_branch
        %380 = sbr.rel (%p378) target = $region40
      $region39: #{mrstan_block.1} parent=11 // pred_region
        _
      $region40: #{mrstan_block.1} parent=11 // pred_fallthru
        _
      // Predicated region
      $region41: #{mrstan_block.1} parent=11 // pred_check
        %p381 = pneg %p214
      $region42: #{mrstan_block.1} parent=11 // pred_check_branch
        %383 = sbr.rel (%p381) target = $region44
      $region43: #{mrstan_block.1} parent=11 // pred_region
        _
      $region44: #{mrstan_block.1} parent=11 // pred_fallthru
        _
      // Predicated region
      $region45: #{mrstan_block.1} parent=11 // pred_check
        %p384 = pneg %p235
      $region46: #{mrstan_block.1} parent=11 // pred_check_branch
        %386 = sbr.rel (%p384) target = $region48
      $region47: #{mrstan_block.1} parent=11 // pred_region
        _
      $region48: #{mrstan_block.1} parent=11 // pred_fallthru
        _
      // Predicated region
      $region49: #{mrstan_block.1} parent=11 // pred_check
        %p387 = pneg %p256
      $region50: #{mrstan_block.1} parent=11 // pred_check_branch
        %389 = sbr.rel (%p387) target = $region52
      $region51: #{mrstan_block.1} parent=11 // pred_region
        _
      $region52: #{mrstan_block.1} parent=11 // pred_fallthru
        _
      // Predicated region
      $region53: #{mrstan_block.1} parent=11 // pred_check
        %p390 = pneg %p277
      $region54: #{mrstan_block.1} parent=11 // pred_check_branch
        %392 = sbr.rel (%p390) target = $region56
      $region55: #{mrstan_block.1} parent=11 // pred_region
        _
      $region56: #{mrstan_block.1} parent=11 // pred_fallthru
        _
      // Predicated region
      $region57: #{mrstan_block.1} parent=11 // pred_check
        %p393 = pneg %p298
      $region58: #{mrstan_block.1} parent=11 // pred_check_branch
        %395 = sbr.rel (%p393) target = $region60
      $region59: #{mrstan_block.1} parent=11 // pred_region
        _
      $region60: #{mrstan_block.1} parent=11 // pred_fallthru
        _
      // Predicated region
      $region61: #{mrstan_block.1} parent=11 // pred_check
        %p396 = pneg %p319
      $region62: #{mrstan_block.1} parent=11 // pred_check_branch
        %398 = sbr.rel (%p396) target = $region64
      $region63: #{mrstan_block.1} parent=11 // pred_region
        _
      $region64: #{mrstan_block.1} parent=11 // pred_fallthru
        _
    $region12: #{mrstan_block.1} parent=5 // pred_fallthru
      _
    %p399 = scmp.lt.s32.totalorder %s20, 4
    // Predicated region
    $region65: #{mrstan_block.1} parent=5 // pred_check
      %p400 = pneg %p399
    $region66: #{mrstan_block.1} parent=5 // pred_check_branch
      %402 = sbr.rel (%p400) target = $region68
    $region67: #{mrstan_block.1} parent=5 // pred_region
      // Predicated region
      $region69: #{mrstan_block.1} parent=67 // pred_check
        %p403 = pneg %p40
      $region70: #{mrstan_block.1} parent=67 // pred_check_branch
        %405 = sbr.rel (%p403) target = $region72
      $region71: #{mrstan_block.1} parent=67 // pred_region
        %s406 = smul.u32 2, %s20
        %p407 = scmp.lt.s32.totalorder %s406, 7
        %s408 = scalar_select %p407, %s406, 7
        %s409 = smul.addr %s408, 2
        %s410 = smul.addr %s409, 8
        %s411 = scalar_lea.vmem %s0, %s410
        %s412 = smul.u32 2, %s20
      $region72: #{mrstan_block.1} parent=67 // pred_fallthru
        _
    $region68: #{mrstan_block.1} parent=5 // pred_fallthru
      _
    %p413 = scmp.le.s32.totalorder 1, %s20
    %p414 = scmp.lt.s32.totalorder %s20, 5
    %p415 = pnand %p413, %p414
    %p416 = pneg %p415
    // Predicated region
    $region73: #{mrstan_block.1} parent=5 // pred_check
      _
    $region74: #{mrstan_block.1} parent=5 // pred_check_branch
      %418 = sbr.rel (%p415) target = $region76
    $region75: #{mrstan_block.1} parent=5 // pred_region
      %s419 = ssub.s32 %s20, 1
      %s420 = smul.u32 2, %s25
      %p421 = scmp.lt.s32.totalorder %s420, 7
      %s422 = scalar_select %p421, %s420, 7
      %s423 = smul.addr %s422, 2
      %s424 = smul.addr %s423, 8
      %s425 = scalar_lea.vmem %s0, %s424
      %p426 = pneg %p46
      %p427 = pneg %p43
      %p428 = pneg %p67
      %p429 = pneg %p64
      %p430 = pneg %p88
      %p431 = pneg %p85
      %p432 = pneg %p109
      %p433 = pneg %p106
      %p434 = pneg %p130
      %p435 = pneg %p127
      %p436 = pneg %p151
      %p437 = pneg %p148
      %p438 = pneg %p172
      %p439 = pneg %p169
      %p440 = pneg %p193
      %p441 = pneg %p190
      %p442 = pneg %p214
      %p443 = pneg %p211
      %p444 = pneg %p235
      %p445 = pneg %p232
      %p446 = pneg %p256
      %p447 = pneg %p253
      %p448 = pneg %p277
      %p449 = pneg %p274
      %p450 = pneg %p298
      %p451 = pneg %p295
      %p452 = pneg %p319
      %p453 = pneg %p316
      %p454 = pneg %p345
      %p455 = pneg %p342
      %s456 = smul.u32 2, %s25
      %p457 = scmp.lt.s32.totalorder %s456, 7
      %s458 = scalar_select %p457, %s456, 7
      %s459 = smul.addr %s458, 2
      %s460 = smul.addr %s459, 8
      %s461 = scalar_lea.vmem %s14, %s460
      %s462 = smul.u32 2, %s25
      %p463 = scmp.lt.s32.totalorder %s462, 7
      %s464 = scalar_select %p463, %s462, 7
      %s465 = smul.addr %s464, 2
      %s466 = smul.addr %s465, 8
      %s467 = scalar_lea.vmem %s0, %s466
      %s468 = smul.u32 2, %s25
      %s469 = smul.u32 2, %s25
      %p470 = scmp.lt.s32.totalorder %s469, 7
      %s471 = scalar_select %p470, %s469, 7
      %s472 = smul.addr %s471, 2
      %s473 = smul.addr %s472, 8
      %s474 = scalar_lea.vmem %s14, %s473
      %s475 = smul.u32 2, %s25
      %v476 = vld [vmem:[%s467] sm:$0xff]
      %v477 = vld [vmem:[%s467 + $0x8] sm:$0xff]
      %v478 = vld [vmem:[%s467 + $0x10] sm:$0xff]
      %v479 = vld [vmem:[%s467 + $0x18] sm:$0xff]
      %v480 = vld [vmem:[%s8] sm:$0xff]
      %v481 = vld [vmem:[%s8 + $0x8] sm:$0xff]
      %v482 = vld [vmem:[%s8 + $0x10] sm:$0xff]
      %v483 = vld [vmem:[%s8 + $0x18] sm:$0xff]
      %v484 = vld [vmem:[%s9] sm:$0x1]
      %v486 = vperm.slane %v484, 0
      %vm488 = vcmask 261120
      %v490 = vsel %vm488, %v476, 0
      %v493 = vsel %vm488, %v477, 0
      %v496 = vsel %vm488, %v478, 0
      %v499 = vsel %vm488, %v479, 0
      %501 = vmatpush.msra.mxu0 0.0
      %502 = vmatpush.msra.mxu0 0.0
      %503 = vmatpush.msra.mxu0 0.0
      %504 = vmatpush.msra.mxu0 0.0
      %505 = vmatpush.msra.mxu0 0.0
      %506 = vmatpush.msra.mxu0 0.0
      %507 = vmatpush.msra.mxu0 0.0
      %508 = vmatpush.msra.mxu0 0.0
      %509 = vmatpush.msra.mxu0 0.0
      %510 = vmatpush.msra.mxu0 0.0
      %511 = vmatpush.msra.mxu0 0.0
      %512 = vmatpush.msra.mxu0 0.0
      %513 = vmatpush.msra.mxu0 %v483
      %514 = vmatpush.msra.mxu0 %v482
      %515 = vmatpush.msra.mxu0 %v481
      %516 = vmatpush.msra.mxu0 %v480
      %517 = vmatmul.f32.gmra.mxu0 %v490
      %v518 = vpop.f32.mrf.mxu0
      %v519 = vadd.f32 %v486, %v518
      %520 = vmatmul.f32.gmra.mxu0 %v493
      %v521 = vpop.f32.mrf.mxu0
      %v522 = vadd.f32 %v486, %v521
      %523 = vmatmul.f32.gmra.mxu0 %v496
      %v524 = vpop.f32.mrf.mxu0
      %v525 = vadd.f32 %v486, %v524
      %526 = vmatmul.f32.gmra.mxu0 %v499
      %v527 = vpop.f32.mrf.mxu0
      %v528 = vadd.f32 %v486, %v527
      %529 = vdwg.mxu0
      %v530 = vld [vmem:[%s7] sm:$0xff]
      %v531 = vld [vmem:[%s7 + $0x8] sm:$0xff]
      %v532 = vld [vmem:[%s7 + $0x10] sm:$0xff]
      %v533 = vld [vmem:[%s7 + $0x18] sm:$0xff]
      %v534 = vld [vmem:[%s7 + $0x20] sm:$0xff]
      %v535 = vld [vmem:[%s7 + $0x28] sm:$0xff]
      %v536 = vld [vmem:[%s7 + $0x30] sm:$0xff]
      %v537 = vld [vmem:[%s7 + $0x38] sm:$0xff]
      %v538 = vld [vmem:[%s7 + $0x40] sm:$0xff]
      %v539 = vld [vmem:[%s7 + $0x48] sm:$0xff]
      %v540 = vld [vmem:[%s7 + $0x50] sm:$0xff]
      %v541 = vld [vmem:[%s7 + $0x58] sm:$0xff]
      %542 = vmatpush.msra.mxu0 0.0
      %543 = vmatpush.msra.mxu0 0.0
      %544 = vmatpush.msra.mxu0 0.0
      %545 = vmatpush.msra.mxu0 0.0
      %546 = vmatpush.msra.mxu0 0.0
      %547 = vmatpush.msra.mxu0 0.0
      %548 = vmatpush.msra.mxu0 0.0
      %549 = vmatpush.msra.mxu0 0.0
      %550 = vmatpush.msra.mxu0 0.0
      %551 = vmatpush.msra.mxu0 0.0
      %552 = vmatpush.msra.mxu0 0.0
      %553 = vmatpush.msra.mxu0 0.0
      %554 = vmatpush.msra.mxu0 %v539
      %555 = vmatpush.msra.mxu0 %v536
      %556 = vmatpush.msra.mxu0 %v533
      %557 = vmatpush.msra.mxu0 %v530
      %558 = vmatmul.f32.gmra.mxu0 %v490
      %v559 = vpop.f32.mrf.mxu0
      %v560 = vadd.f32 0.0, %v559
      %561 = vmatmul.f32.gmra.mxu0 %v493
      %v562 = vpop.f32.mrf.mxu0
      %v563 = vadd.f32 0.0, %v562
      %564 = vmatmul.f32.gmra.mxu0 %v496
      %v565 = vpop.f32.mrf.mxu0
      %v566 = vadd.f32 0.0, %v565
      %567 = vmatmul.f32.gmra.mxu0 %v499
      %v568 = vpop.f32.mrf.mxu0
      %v569 = vadd.f32 0.0, %v568
      %570 = vdwg.mxu0
      %571 = vmatpush.msra.mxu0 0.0
      %572 = vmatpush.msra.mxu0 0.0
      %573 = vmatpush.msra.mxu0 0.0
      %574 = vmatpush.msra.mxu0 0.0
      %575 = vmatpush.msra.mxu0 0.0
      %576 = vmatpush.msra.mxu0 0.0
      %577 = vmatpush.msra.mxu0 0.0
      %578 = vmatpush.msra.mxu0 0.0
      %579 = vmatpush.msra.mxu0 0.0
      %580 = vmatpush.msra.mxu0 0.0
      %581 = vmatpush.msra.mxu0 0.0
      %582 = vmatpush.msra.mxu0 0.0
      %583 = vmatpush.msra.mxu0 %v540
      %584 = vmatpush.msra.mxu0 %v537
      %585 = vmatpush.msra.mxu0 %v534
      %586 = vmatpush.msra.mxu0 %v531
      %587 = vmatmul.f32.gmra.mxu0 %v490
      %v588 = vpop.f32.mrf.mxu0
      %v589 = vadd.f32 0.0, %v588
      %590 = vmatmul.f32.gmra.mxu0 %v493
      %v591 = vpop.f32.mrf.mxu0
      %v592 = vadd.f32 0.0, %v591
      %593 = vmatmul.f32.gmra.mxu0 %v496
      %v594 = vpop.f32.mrf.mxu0
      %v595 = vadd.f32 0.0, %v594
      %596 = vmatmul.f32.gmra.mxu0 %v499
      %v597 = vpop.f32.mrf.mxu0
      %v598 = vadd.f32 0.0, %v597
      %599 = vdwg.mxu0
      %600 = vmatpush.msra.mxu0 0.0
      %601 = vmatpush.msra.mxu0 0.0
      %602 = vmatpush.msra.mxu0 0.0
      %603 = vmatpush.msra.mxu0 0.0
      %604 = vmatpush.msra.mxu0 0.0
      %605 = vmatpush.msra.mxu0 0.0
      %606 = vmatpush.msra.mxu0 0.0
      %607 = vmatpush.msra.mxu0 0.0
      %608 = vmatpush.msra.mxu0 0.0
      %609 = vmatpush.msra.mxu0 0.0
      %610 = vmatpush.msra.mxu0 0.0
      %611 = vmatpush.msra.mxu0 0.0
      %612 = vmatpush.msra.mxu0 %v541
      %613 = vmatpush.msra.mxu0 %v538
      %614 = vmatpush.msra.mxu0 %v535
      %615 = vmatpush.msra.mxu0 %v532
      %616 = vmatmul.f32.gmra.mxu0 %v490
      %v617 = vpop.f32.mrf.mxu0
      %v618 = vadd.f32 0.0, %v617
      %619 = vmatmul.f32.gmra.mxu0 %v493
      %v620 = vpop.f32.mrf.mxu0
      %v621 = vadd.f32 0.0, %v620
      %622 = vmatmul.f32.gmra.mxu0 %v496
      %v623 = vpop.f32.mrf.mxu0
      %v624 = vadd.f32 0.0, %v623
      %625 = vmatmul.f32.gmra.mxu0 %v499
      %v626 = vpop.f32.mrf.mxu0
      %v627 = vadd.f32 0.0, %v626
      %628 = vdwg.mxu0
      %v629 = vld [vmem:[%s1] sm:$0xff]
      %v630 = vld [vmem:[%s1 + $0x8] sm:$0xff]
      %v631 = vld [vmem:[%s1 + $0x10] sm:$0xff]
      %v632 = vld [vmem:[%s1 + $0x18] sm:$0xff]
      %633 = vmatpush.msra.mxu0 0.0
      %634 = vmatpush.msra.mxu0 0.0
      %635 = vmatpush.msra.mxu0 0.0
      %636 = vmatpush.msra.mxu0 0.0
      %637 = vmatpush.msra.mxu0 0.0
      %638 = vmatpush.msra.mxu0 0.0
      %639 = vmatpush.msra.mxu0 0.0
      %640 = vmatpush.msra.mxu0 0.0
      %641 = vmatpush.msra.mxu0 0.0
      %642 = vmatpush.msra.mxu0 0.0
      %643 = vmatpush.msra.mxu0 0.0
      %644 = vmatpush.msra.mxu0 0.0
      %645 = vmatpush.msra.mxu0 %v632
      %646 = vmatpush.msra.mxu0 %v631
      %647 = vmatpush.msra.mxu0 %v630
      %648 = vmatpush.msra.mxu0 %v629
      %649 = vmatmul.f32.gmra.mxu0 %v490
      %v650 = vpop.f32.mrf.mxu0
      %v651 = vadd.f32 0.0, %v650
      %652 = vmatmul.f32.gmra.mxu0 %v493
      %v653 = vpop.f32.mrf.mxu0
      %v654 = vadd.f32 0.0, %v653
      %655 = vmatmul.f32.gmra.mxu0 %v496
      %v656 = vpop.f32.mrf.mxu0
      %v657 = vadd.f32 0.0, %v656
      %658 = vmatmul.f32.gmra.mxu0 %v499
      %v659 = vpop.f32.mrf.mxu0
      %v660 = vadd.f32 0.0, %v659
      %661 = vdwg.mxu0
      %v662 = vld [vmem:[%s2] sm:$0xff]
      %v663 = vld [vmem:[%s2 + $0x8] sm:$0xff]
      %v664 = vld [vmem:[%s2 + $0x10] sm:$0xff]
      %v665 = vld [vmem:[%s2 + $0x18] sm:$0xff]
      %666 = vmatpush.msra.mxu0 0.0
      %667 = vmatpush.msra.mxu0 0.0
      %668 = vmatpush.msra.mxu0 0.0
      %669 = vmatpush.msra.mxu0 0.0
      %670 = vmatpush.msra.mxu0 0.0
      %671 = vmatpush.msra.mxu0 0.0
      %672 = vmatpush.msra.mxu0 0.0
      %673 = vmatpush.msra.mxu0 0.0
      %674 = vmatpush.msra.mxu0 0.0
      %675 = vmatpush.msra.mxu0 0.0
      %676 = vmatpush.msra.mxu0 0.0
      %677 = vmatpush.msra.mxu0 0.0
      %678 = vmatpush.msra.mxu0 %v665
      %679 = vmatpush.msra.mxu0 %v664
      %680 = vmatpush.msra.mxu0 %v663
      %681 = vmatpush.msra.mxu0 %v662
      %682 = vmatmul.f32.gmra.mxu0 %v490
      %v683 = vpop.f32.mrf.mxu0
      %v684 = vadd.f32 0.0, %v683
      %685 = vmatmul.f32.gmra.mxu0 %v493
      %v686 = vpop.f32.mrf.mxu0
      %v687 = vadd.f32 0.0, %v686
      %688 = vmatmul.f32.gmra.mxu0 %v496
      %v689 = vpop.f32.mrf.mxu0
      %v690 = vadd.f32 0.0, %v689
      %691 = vmatmul.f32.gmra.mxu0 %v499
      %v692 = vpop.f32.mrf.mxu0
      %v693 = vadd.f32 0.0, %v692
      %694 = vdwg.mxu0
      %v695 = vld [vmem:[%s3] sm:$0xff]
      %v696 = vld [vmem:[%s3 + $0x8] sm:$0xff]
      %v697 = vld [vmem:[%s4] sm:$0xff]
      %v698 = vld [vmem:[%s4 + $0x8] sm:$0xff]
      %v699 = vld [vmem:[%s5] sm:$0x1]
      %v700 = vld [vmem:[%s10] sm:$0xff]
      %v701 = vld [vmem:[%s10 + $0x8] sm:$0xff]
      %v702 = vld [vmem:[%s10 + $0x10] sm:$0xff]
      %v703 = vld [vmem:[%s10 + $0x18] sm:$0xff]
      %v704 = vld [vmem:[%s10 + $0x20] sm:$0xff]
      %v705 = vld [vmem:[%s10 + $0x28] sm:$0xff]
      %v706 = vld [vmem:[%s10 + $0x30] sm:$0xff]
      %v707 = vld [vmem:[%s10 + $0x38] sm:$0xff]
      %v708 = vld [vmem:[%s10 + $0x40] sm:$0xff]
      %v709 = vld [vmem:[%s10 + $0x48] sm:$0xff]
      %v710 = vld [vmem:[%s10 + $0x50] sm:$0xff]
      %v711 = vld [vmem:[%s10 + $0x58] sm:$0xff]
      %v712 = vld [vmem:[%s10 + $0x60] sm:$0xff]
      %v713 = vld [vmem:[%s10 + $0x68] sm:$0xff]
      %v714 = vld [vmem:[%s10 + $0x70] sm:$0xff]
      %v715 = vld [vmem:[%s10 + $0x78] sm:$0xff]
      %v716 = vld [vmem:[%s11] sm:$0xff]
      %v717 = vld [vmem:[%s12] sm:$0x1]
      %v718 = vld [vmem:[%s13] sm:$0x1]
      %vm719 = vcmask 64512
      %v721 = vsel %vm719, %v684, 0
      %v724 = vsel %vm719, %v687, 0
      %v727 = vsel %vm719, %v651, 0
      %v730 = vsel %vm719, %v654, 0
      %732 = vmatpush.xpose.msra.mxu0 0.0
      %733 = vmatpush.xpose.msra.mxu0 0.0
      %734 = vmatpush.xpose.msra.mxu0 0.0
      %735 = vmatpush.xpose.msra.mxu0 0.0
      %736 = vmatpush.xpose.msra.mxu0 0.0
      %737 = vmatpush.xpose.msra.mxu0 0.0
      %738 = vmatpush.xpose.msra.mxu0 0.0
      %739 = vmatpush.xpose.msra.mxu0 0.0
      %740 = vmatpush.xpose.msra.mxu0 0.0
      %741 = vmatpush.xpose.msra.mxu0 0.0
      %742 = vmatpush.xpose.msra.mxu0 0.0
      %743 = vmatpush.xpose.msra.mxu0 0.0
      %744 = vmatpush.xpose.msra.mxu0 0.0
      %745 = vmatpush.xpose.msra.mxu0 0.0
      %746 = vmatpush.xpose.msra.mxu0 %v730
      %747 = vmatpush.xpose.msra.mxu0 %v727
      %748 = vmatmul.f32.gmra.mxu0 %v721
      %v749 = vpop.f32.mrf.mxu0
      %v750 = vadd.f32 %v695, %v749
      %751 = vmatmul.f32.gmra.mxu0 %v724
      %v752 = vpop.f32.mrf.mxu0
      %v753 = vadd.f32 %v696, %v752
      %754 = vdwg.mxu0
      %v755 = vxor.u32 %v750, 2147483648
      %v756 = vxor.u32 %v753, 2147483648
      %v757 = vmul.f32 %v755, 1.442695
      %v758 = vpow.pop %v757
      %v759 = vmul.f32 %v756, 1.442695
      %v760 = vpow.pop %v759
      %v761 = vadd.f32 %v758, 1.0
      %v762 = vadd.f32 %v760, 1.0
      %v763 = vrcp.pop %v761
      %v764 = vmul.f32 %v761, %v763
      %v765 = vsub.f32 1.0, %v764
      %v766 = vmul.f32 %v763, %v765
      %v767 = vadd.f32 %v763, %v766
      %vm768 = vweird.f32 %v761
      %vm769 = vweird.f32 %v763
      %vm770 = vmor %vm768, %vm769
      %v771 = vsel %vm770, %v763, %v767
      %v772 = vand.u32 2147483647, %v761
      %vm773 = vcmp.eq.f32.partialorder %v772, 8.507059e+37
      %v774 = vand.u32 %v761, 2147483648
      %v775 = vor.u32 1.1754944e-38, %v774
      %v776 = vsel %vm773, %v775, %v771
      %v777 = vmul.f32 1.0, %v776
      %v778 = vrcp.pop %v762
      %v779 = vmul.f32 %v762, %v778
      %v780 = vsub.f32 1.0, %v779
      %v781 = vmul.f32 %v778, %v780
      %v782 = vadd.f32 %v778, %v781
      %vm783 = vweird.f32 %v762
      %vm784 = vweird.f32 %v778
      %vm785 = vmor %vm783, %vm784
      %v786 = vsel %vm785, %v778, %v782
      %v787 = vand.u32 2147483647, %v762
      %vm788 = vcmp.eq.f32.partialorder %v787, 8.507059e+37
      %v789 = vand.u32 %v762, 2147483648
      %v790 = vor.u32 1.1754944e-38, %v789
      %v791 = vsel %vm788, %v790, %v786
      %v792 = vmul.f32 1.0, %v791
      %v794 = vperm.slane %v699, 0
      %vm796 = vcmask 130048
      %v798 = vsel %vm796, %v777, 0
      %v801 = vsel %vm796, %v792, 0
      %803 = vmatpush.msra.mxu0 0.0
      %804 = vmatpush.msra.mxu0 0.0
      %805 = vmatpush.msra.mxu0 0.0
      %806 = vmatpush.msra.mxu0 0.0
      %807 = vmatpush.msra.mxu0 0.0
      %808 = vmatpush.msra.mxu0 0.0
      %809 = vmatpush.msra.mxu0 0.0
      %810 = vmatpush.msra.mxu0 0.0
      %811 = vmatpush.msra.mxu0 0.0
      %812 = vmatpush.msra.mxu0 0.0
      %813 = vmatpush.msra.mxu0 0.0
      %814 = vmatpush.msra.mxu0 0.0
      %815 = vmatpush.msra.mxu0 0.0
      %816 = vmatpush.msra.mxu0 0.0
      %817 = vmatpush.msra.mxu0 %v698
      %818 = vmatpush.msra.mxu0 %v697
      %819 = vmatmul.f32.gmra.mxu0 %v798
      %v820 = vpop.f32.mrf.mxu0
      %v821 = vadd.f32 %v794, %v820
      %822 = vmatmul.f32.gmra.mxu0 %v801
      %v823 = vpop.f32.mrf.mxu0
      %v824 = vadd.f32 %v794, %v823
      %825 = vdwg.mxu0
      %v826 = vsel %vm796, %v821, -inf
      %827 = vmax.xlane.f32.xlu0 %v826
      %v828 = vpop.xlane.xlu0 %827
      %v829 = vsel %vm796, %v824, -inf
      %830 = vmax.xlane.f32.xlu0 %v829
      %v831 = vpop.xlane.xlu0 %830
      %v832 = vsub.f32 %v821, %v828
      %v833 = vsub.f32 %v824, %v831
      %v834 = vmul.f32 %v832, 1.442695
      %v835 = vpow.pop %v834
      %v836 = vmul.f32 %v833, 1.442695
      %v837 = vpow.pop %v836
      %v838 = vsel %vm796, %v835, 0.0
      %839 = vadd.xlane.f32.xlu0 %v838
      %v840 = vpop.xlane.xlu0 %839
      %v841 = vsel %vm796, %v837, 0.0
      %842 = vadd.xlane.f32.xlu0 %v841
      %v843 = vpop.xlane.xlu0 %842
      %v844 = vrcp.pop %v840
      %v845 = vmul.f32 %v840, %v844
      %v846 = vsub.f32 1.0, %v845
      %v847 = vmul.f32 %v844, %v846
      %v848 = vadd.f32 %v844, %v847
      %vm849 = vweird.f32 %v840
      %vm850 = vweird.f32 %v844
      %vm851 = vmor %vm849, %vm850
      %v852 = vsel %vm851, %v844, %v848
      %v853 = vand.u32 2147483647, %v840
      %vm854 = vcmp.eq.f32.partialorder %v853, 8.507059e+37
      %v855 = vand.u32 %v840, 2147483648
      %v856 = vor.u32 1.1754944e-38, %v855
      %v857 = vsel %vm854, %v856, %v852
      %v858 = vrcp.pop %v843
      %v859 = vmul.f32 %v843, %v858
      %v860 = vsub.f32 1.0, %v859
      %v861 = vmul.f32 %v858, %v860
      %v862 = vadd.f32 %v858, %v861
      %vm863 = vweird.f32 %v843
      %vm864 = vweird.f32 %v858
      %vm865 = vmor %vm863, %vm864
      %v866 = vsel %vm865, %v858, %v862
      %v867 = vand.u32 2147483647, %v843
      %vm868 = vcmp.eq.f32.partialorder %v867, 8.507059e+37
      %v869 = vand.u32 %v843, 2147483648
      %v870 = vor.u32 1.1754944e-38, %v869
      %v871 = vsel %vm868, %v870, %v866
      %v872 = vmul.f32 %v835, %v857
      %v873 = vmul.f32 %v837, %v871
      %v874 = vld [vmem:[%s6] sm:$0xff]
      %v875 = vld [vmem:[%s6 + $0x8] sm:$0xff]
      %v876 = vmul.f32 %v874, %v872
      %v877 = vmul.f32 %v875, %v873
      %s878 = scalar_lea.vmem %s6, 16
      %v879 = vld [vmem:[%s878] sm:$0xff]
      %v880 = vld [vmem:[%s878 + $0x8] sm:$0xff]
      %v881 = vmul.f32 %v879, %v872
      %v882 = vmul.f32 %v880, %v873
      %v884 = vsel %vm796, %v881, 0
      %v887 = vsel %vm796, %v882, 0
      %889 = vmatpush.msra.mxu0 0.0
      %890 = vmatpush.msra.mxu0 0.0
      %891 = vmatpush.msra.mxu0 0.0
      %892 = vmatpush.msra.mxu0 0.0
      %893 = vmatpush.msra.mxu0 0.0
      %894 = vmatpush.msra.mxu0 0.0
      %895 = vmatpush.msra.mxu0 0.0
      %896 = vmatpush.msra.mxu0 0.0
      %897 = vmatpush.msra.mxu0 0.0
      %898 = vmatpush.msra.mxu0 0.0
      %899 = vmatpush.msra.mxu0 0.0
      %900 = vmatpush.msra.mxu0 0.0
      %901 = vmatpush.msra.mxu0 0.0
      %902 = vmatpush.msra.mxu0 0.0
      %903 = vmatpush.msra.mxu0 %v592
      %904 = vmatpush.msra.mxu0 %v589
      %905 = vmatmul.f32.gmra.mxu0 %v884
      %v906 = vpop.f32.mrf.mxu0
      %v907 = vadd.f32 0.0, %v906
      %908 = vmatmul.f32.gmra.mxu0 %v887
      %v909 = vpop.f32.mrf.mxu0
      %v910 = vadd.f32 0.0, %v909
      %911 = vdwg.mxu0
      %v913 = vsel %vm796, %v876, 0
      %v916 = vsel %vm796, %v877, 0
      %918 = vmatpush.msra.mxu0 0.0
      %919 = vmatpush.msra.mxu0 0.0
      %920 = vmatpush.msra.mxu0 0.0
      %921 = vmatpush.msra.mxu0 0.0
      %922 = vmatpush.msra.mxu0 0.0
      %923 = vmatpush.msra.mxu0 0.0
      %924 = vmatpush.msra.mxu0 0.0
      %925 = vmatpush.msra.mxu0 0.0
      %926 = vmatpush.msra.mxu0 0.0
      %927 = vmatpush.msra.mxu0 0.0
      %928 = vmatpush.msra.mxu0 0.0
      %929 = vmatpush.msra.mxu0 0.0
      %930 = vmatpush.msra.mxu0 0.0
      %931 = vmatpush.msra.mxu0 0.0
      %932 = vmatpush.msra.mxu0 %v563
      %933 = vmatpush.msra.mxu0 %v560
      %934 = vmatmul.f32.gmra.mxu0 %v913
      %v935 = vpop.f32.mrf.mxu0
      %v936 = vadd.f32 %v907, %v935
      %937 = vmatmul.f32.gmra.mxu0 %v916
      %v938 = vpop.f32.mrf.mxu0
      %v939 = vadd.f32 %v910, %v938
      %940 = vdwg.mxu0
      %s941 = scalar_lea.vmem %s6, 32
      %v942 = vld [vmem:[%s941] sm:$0xff]
      %v943 = vld [vmem:[%s941 + $0x8] sm:$0xff]
      %v944 = vmul.f32 %v942, %v872
      %v945 = vmul.f32 %v943, %v873
      %v947 = vsel %vm796, %v944, 0
      %v950 = vsel %vm796, %v945, 0
      %952 = vmatpush.msra.mxu0 0.0
      %953 = vmatpush.msra.mxu0 0.0
      %954 = vmatpush.msra.mxu0 0.0
      %955 = vmatpush.msra.mxu0 0.0
      %956 = vmatpush.msra.mxu0 0.0
      %957 = vmatpush.msra.mxu0 0.0
      %958 = vmatpush.msra.mxu0 0.0
      %959 = vmatpush.msra.mxu0 0.0
      %960 = vmatpush.msra.mxu0 0.0
      %961 = vmatpush.msra.mxu0 0.0
      %962 = vmatpush.msra.mxu0 0.0
      %963 = vmatpush.msra.mxu0 0.0
      %964 = vmatpush.msra.mxu0 0.0
      %965 = vmatpush.msra.mxu0 0.0
      %966 = vmatpush.msra.mxu0 %v621
      %967 = vmatpush.msra.mxu0 %v618
      %968 = vmatmul.f32.gmra.mxu0 %v947
      %v969 = vpop.f32.mrf.mxu0
      %v970 = vadd.f32 0.0, %v969
      %971 = vmatmul.f32.gmra.mxu0 %v950
      %v972 = vpop.f32.mrf.mxu0
      %v973 = vadd.f32 0.0, %v972
      %974 = vdwg.mxu0
      %v975 = vadd.f32 %v936, %v970
      %v976 = vadd.f32 %v939, %v973
      %v977 = vmax.f32 %v975, 0.0
      %v978 = vmax.f32 %v976, 0.0
      %v979 = vadd.f32 %v519, %v977
      %v980 = vadd.f32 %v522, %v978
      %v981 = vmax.f32 %v979, 0.0
      %v982 = vmax.f32 %v980, 0.0
      %983 = vmatpush.msra.mxu0 %v715
      %984 = vmatpush.msra.mxu0 %v714
      %985 = vmatpush.msra.mxu0 %v713
      %986 = vmatpush.msra.mxu0 %v712
      %987 = vmatpush.msra.mxu0 %v711
      %988 = vmatpush.msra.mxu0 %v710
      %989 = vmatpush.msra.mxu0 %v709
      %990 = vmatpush.msra.mxu0 %v708
      %991 = vmatpush.msra.mxu0 %v707
      %992 = vmatpush.msra.mxu0 %v706
      %993 = vmatpush.msra.mxu0 %v705
      %994 = vmatpush.msra.mxu0 %v704
      %995 = vmatpush.msra.mxu0 %v703
      %996 = vmatpush.msra.mxu0 %v702
      %997 = vmatpush.msra.mxu0 %v701
      %998 = vmatpush.msra.mxu0 %v700
      %999 = vmatmul.f32.gmra.mxu0 %v981
      %v1000 = vpop.f32.mrf.mxu0
      %v1001 = vadd.f32 0.0, %v1000
      %1002 = vmatmul.f32.gmra.mxu0 %v982
      %v1003 = vpop.f32.mrf.mxu0
      %v1004 = vadd.f32 0.0, %v1003
      %1005 = vdwg.mxu0
      %v1007 = vsel %vm719, %v1001, 0
      %v1010 = vsel %vm719, %v1004, 0
      %1012 = vmatpush.msra.mxu0 0.0
      %1013 = vmatpush.msra.mxu0 0.0
      %1014 = vmatpush.msra.mxu0 0.0
      %1015 = vmatpush.msra.mxu0 0.0
      %1016 = vmatpush.msra.mxu0 0.0
      %1017 = vmatpush.msra.mxu0 0.0
      %1018 = vmatpush.msra.mxu0 0.0
      %1019 = vmatpush.msra.mxu0 0.0
      %1020 = vmatpush.msra.mxu0 0.0
      %1021 = vmatpush.msra.mxu0 0.0
      %1022 = vmatpush.msra.mxu0 0.0
      %1023 = vmatpush.msra.mxu0 0.0
      %1024 = vmatpush.msra.mxu0 0.0
      %1025 = vmatpush.msra.mxu0 0.0
      %1026 = vmatpush.msra.mxu0 0.0
      %1027 = vmatpush.msra.mxu0 %v716
      %1028 = vmatmul.f32.gmra.mxu0 %v1007
      %v1029 = vpop.f32.mrf.mxu0
      %v1030 = vadd.f32 0.0, %v1029
      %1031 = vmatmul.f32.gmra.mxu0 %v1010
      %v1032 = vpop.f32.mrf.mxu0
      %v1033 = vadd.f32 0.0, %v1032
      %1034 = vdwg.mxu0
      %v1035 = vsub.f32 %v981, %v1030
      %v1036 = vsub.f32 %v982, %v1033
      %v1037 = vmul.f32 %v1035, %v1035
      %v1038 = vmul.f32 %v1036, %v1036
      %1039 = vmatpush.msra.mxu0 %v715
      %1040 = vmatpush.msra.mxu0 %v714
      %1041 = vmatpush.msra.mxu0 %v713
      %1042 = vmatpush.msra.mxu0 %v712
      %1043 = vmatpush.msra.mxu0 %v711
      %1044 = vmatpush.msra.mxu0 %v710
      %1045 = vmatpush.msra.mxu0 %v709
      %1046 = vmatpush.msra.mxu0 %v708
      %1047 = vmatpush.msra.mxu0 %v707
      %1048 = vmatpush.msra.mxu0 %v706
      %1049 = vmatpush.msra.mxu0 %v705
      %1050 = vmatpush.msra.mxu0 %v704
      %1051 = vmatpush.msra.mxu0 %v703
      %1052 = vmatpush.msra.mxu0 %v702
      %1053 = vmatpush.msra.mxu0 %v701
      %1054 = vmatpush.msra.mxu0 %v700
      %1055 = vmatmul.f32.gmra.mxu0 %v1037
      %v1056 = vpop.f32.mrf.mxu0
      %v1057 = vadd.f32 1e-05, %v1056
      %1058 = vmatmul.f32.gmra.mxu0 %v1038
      %v1059 = vpop.f32.mrf.mxu0
      %v1060 = vadd.f32 1e-05, %v1059
      %1061 = vdwg.mxu0
      %v1062 = vrsqrt.pop %v1057
      %v1063 = vmul.f32 %v1062, %v1057
      %v1064 = vmul.f32 %v1063, %v1062
      %v1065 = vmul.f32 0.5, %v1064
      %v1066 = vsub.f32 1.5, %v1065
      %v1067 = vmul.f32 %v1062, %v1066
      %vm1068 = vweird.f32 %v1057
      %vm1069 = vweird.f32 %v1062
      %vm1070 = vmor %vm1068, %vm1069
      %v1071 = vsel %vm1070, %v1062, %v1067
      %v1072 = vrsqrt.pop %v1060
      %v1073 = vmul.f32 %v1072, %v1060
      %v1074 = vmul.f32 %v1073, %v1072
      %v1075 = vmul.f32 0.5, %v1074
      %v1076 = vsub.f32 1.5, %v1075
      %v1077 = vmul.f32 %v1072, %v1076
      %vm1078 = vweird.f32 %v1060
      %vm1079 = vweird.f32 %v1072
      %vm1080 = vmor %vm1078, %vm1079
      %v1081 = vsel %vm1080, %v1072, %v1077
      %v1083 = vsel %vm719, %v1071, 0
      %v1086 = vsel %vm719, %v1081, 0
      %1088 = vmatpush.msra.mxu0 0.0
      %1089 = vmatpush.msra.mxu0 0.0
      %1090 = vmatpush.msra.mxu0 0.0
      %1091 = vmatpush.msra.mxu0 0.0
      %1092 = vmatpush.msra.mxu0 0.0
      %1093 = vmatpush.msra.mxu0 0.0
      %1094 = vmatpush.msra.mxu0 0.0
      %1095 = vmatpush.msra.mxu0 0.0
      %1096 = vmatpush.msra.mxu0 0.0
      %1097 = vmatpush.msra.mxu0 0.0
      %1098 = vmatpush.msra.mxu0 0.0
      %1099 = vmatpush.msra.mxu0 0.0
      %1100 = vmatpush.msra.mxu0 0.0
      %1101 = vmatpush.msra.mxu0 0.0
      %1102 = vmatpush.msra.mxu0 0.0
      %1103 = vmatpush.msra.mxu0 %v716
      %1104 = vmatmul.f32.gmra.mxu0 %v1083
      %v1105 = vpop.f32.mrf.mxu0
      %v1106 = vadd.f32 0.0, %v1105
      %1107 = vmatmul.f32.gmra.mxu0 %v1086
      %v1108 = vpop.f32.mrf.mxu0
      %v1109 = vadd.f32 0.0, %v1108
      %1110 = vdwg.mxu0
      %v1111 = vmul.f32 %v1035, %v1106
      %v1112 = vmul.f32 %v1036, %v1109
      %v1114 = vperm.slane %v717, 0
      %v1116 = vmul.f32 %v1111, %v1114
      %v1117 = vmul.f32 %v1112, %v1114
      %v1119 = vperm.slane %v718, 0
      %v1121 = vadd.f32 %v1116, %v1119
      %v1122 = vadd.f32 %v1117, %v1119
      %1123 = vst [vmem:[%s474] sm:$0xff] %v1121
      %1124 = vst [vmem:[%s474 + $0x8] sm:$0xff] %v1122
      %v1126 = vsel %vm719, %v690, 0
      %v1129 = vsel %vm719, %v693, 0
      %v1132 = vsel %vm719, %v657, 0
      %v1135 = vsel %vm719, %v660, 0
      %1137 = vmatpush.xpose.msra.mxu0 0.0
      %1138 = vmatpush.xpose.msra.mxu0 0.0
      %1139 = vmatpush.xpose.msra.mxu0 0.0
      %1140 = vmatpush.xpose.msra.mxu0 0.0
      %1141 = vmatpush.xpose.msra.mxu0 0.0
      %1142 = vmatpush.xpose.msra.mxu0 0.0
      %1143 = vmatpush.xpose.msra.mxu0 0.0
      %1144 = vmatpush.xpose.msra.mxu0 0.0
      %1145 = vmatpush.xpose.msra.mxu0 0.0
      %1146 = vmatpush.xpose.msra.mxu0 0.0
      %1147 = vmatpush.xpose.msra.mxu0 0.0
      %1148 = vmatpush.xpose.msra.mxu0 0.0
      %1149 = vmatpush.xpose.msra.mxu0 0.0
      %1150 = vmatpush.xpose.msra.mxu0 0.0
      %1151 = vmatpush.xpose.msra.mxu0 %v1135
      %1152 = vmatpush.xpose.msra.mxu0 %v1132
      %1153 = vmatmul.f32.gmra.mxu0 %v1126
      %v1154 = vpop.f32.mrf.mxu0
      %v1155 = vadd.f32 %v695, %v1154
      %1156 = vmatmul.f32.gmra.mxu0 %v1129
      %v1157 = vpop.f32.mrf.mxu0
      %v1158 = vadd.f32 %v696, %v1157
      %1159 = vdwg.mxu0
      %v1160 = vxor.u32 %v1155, 2147483648
      %v1161 = vxor.u32 %v1158, 2147483648
      %v1162 = vmul.f32 %v1160, 1.442695
      %v1163 = vpow.pop %v1162
      %v1164 = vmul.f32 %v1161, 1.442695
      %v1165 = vpow.pop %v1164
      %v1166 = vadd.f32 %v1163, 1.0
      %v1167 = vadd.f32 %v1165, 1.0
      %v1168 = vrcp.pop %v1166
      %v1169 = vmul.f32 %v1166, %v1168
      %v1170 = vsub.f32 1.0, %v1169
      %v1171 = vmul.f32 %v1168, %v1170
      %v1172 = vadd.f32 %v1168, %v1171
      %vm1173 = vweird.f32 %v1166
      %vm1174 = vweird.f32 %v1168
      %vm1175 = vmor %vm1173, %vm1174
      %v1176 = vsel %vm1175, %v1168, %v1172
      %v1177 = vand.u32 2147483647, %v1166
      %vm1178 = vcmp.eq.f32.partialorder %v1177, 8.507059e+37
      %v1179 = vand.u32 %v1166, 2147483648
      %v1180 = vor.u32 1.1754944e-38, %v1179
      %v1181 = vsel %vm1178, %v1180, %v1176
      %v1182 = vmul.f32 1.0, %v1181
      %v1183 = vrcp.pop %v1167
      %v1184 = vmul.f32 %v1167, %v1183
      %v1185 = vsub.f32 1.0, %v1184
      %v1186 = vmul.f32 %v1183, %v1185
      %v1187 = vadd.f32 %v1183, %v1186
      %vm1188 = vweird.f32 %v1167
      %vm1189 = vweird.f32 %v1183
      %vm1190 = vmor %vm1188, %vm1189
      %v1191 = vsel %vm1190, %v1183, %v1187
      %v1192 = vand.u32 2147483647, %v1167
      %vm1193 = vcmp.eq.f32.partialorder %v1192, 8.507059e+37
      %v1194 = vand.u32 %v1167, 2147483648
      %v1195 = vor.u32 1.1754944e-38, %v1194
      %v1196 = vsel %vm1193, %v1195, %v1191
      %v1197 = vmul.f32 1.0, %v1196
      %v1199 = vsel %vm796, %v1182, 0
      %v1202 = vsel %vm796, %v1197, 0
      %1204 = vmatpush.msra.mxu0 0.0
      %1205 = vmatpush.msra.mxu0 0.0
      %1206 = vmatpush.msra.mxu0 0.0
      %1207 = vmatpush.msra.mxu0 0.0
      %1208 = vmatpush.msra.mxu0 0.0
      %1209 = vmatpush.msra.mxu0 0.0
      %1210 = vmatpush.msra.mxu0 0.0
      %1211 = vmatpush.msra.mxu0 0.0
      %1212 = vmatpush.msra.mxu0 0.0
      %1213 = vmatpush.msra.mxu0 0.0
      %1214 = vmatpush.msra.mxu0 0.0
      %1215 = vmatpush.msra.mxu0 0.0
      %1216 = vmatpush.msra.mxu0 0.0
      %1217 = vmatpush.msra.mxu0 0.0
      %1218 = vmatpush.msra.mxu0 %v698
      %1219 = vmatpush.msra.mxu0 %v697
      %1220 = vmatmul.f32.gmra.mxu0 %v1199
      %v1221 = vpop.f32.mrf.mxu0
      %v1222 = vadd.f32 %v794, %v1221
      %1223 = vmatmul.f32.gmra.mxu0 %v1202
      %v1224 = vpop.f32.mrf.mxu0
      %v1225 = vadd.f32 %v794, %v1224
      %1226 = vdwg.mxu0
      %v1227 = vsel %vm796, %v1222, -inf
      %1228 = vmax.xlane.f32.xlu0 %v1227
      %v1229 = vpop.xlane.xlu0 %1228
      %v1230 = vsel %vm796, %v1225, -inf
      %1231 = vmax.xlane.f32.xlu0 %v1230
      %v1232 = vpop.xlane.xlu0 %1231
      %v1233 = vsub.f32 %v1222, %v1229
      %v1234 = vsub.f32 %v1225, %v1232
      %v1235 = vmul.f32 %v1233, 1.442695
      %v1236 = vpow.pop %v1235
      %v1237 = vmul.f32 %v1234, 1.442695
      %v1238 = vpow.pop %v1237
      %v1239 = vsel %vm796, %v1236, 0.0
      %1240 = vadd.xlane.f32.xlu0 %v1239
      %v1241 = vpop.xlane.xlu0 %1240
      %v1242 = vsel %vm796, %v1238, 0.0
      %1243 = vadd.xlane.f32.xlu0 %v1242
      %v1244 = vpop.xlane.xlu0 %1243
      %v1245 = vrcp.pop %v1241
      %v1246 = vmul.f32 %v1241, %v1245
      %v1247 = vsub.f32 1.0, %v1246
      %v1248 = vmul.f32 %v1245, %v1247
      %v1249 = vadd.f32 %v1245, %v1248
      %vm1250 = vweird.f32 %v1241
      %vm1251 = vweird.f32 %v1245
      %vm1252 = vmor %vm1250, %vm1251
      %v1253 = vsel %vm1252, %v1245, %v1249
      %v1254 = vand.u32 2147483647, %v1241
      %vm1255 = vcmp.eq.f32.partialorder %v1254, 8.507059e+37
      %v1256 = vand.u32 %v1241, 2147483648
      %v1257 = vor.u32 1.1754944e-38, %v1256
      %v1258 = vsel %vm1255, %v1257, %v1253
      %v1259 = vrcp.pop %v1244
      %v1260 = vmul.f32 %v1244, %v1259
      %v1261 = vsub.f32 1.0, %v1260
      %v1262 = vmul.f32 %v1259, %v1261
      %v1263 = vadd.f32 %v1259, %v1262
      %vm1264 = vweird.f32 %v1244
      %vm1265 = vweird.f32 %v1259
      %vm1266 = vmor %vm1264, %vm1265
      %v1267 = vsel %vm1266, %v1259, %v1263
      %v1268 = vand.u32 2147483647, %v1244
      %vm1269 = vcmp.eq.f32.partialorder %v1268, 8.507059e+37
      %v1270 = vand.u32 %v1244, 2147483648
      %v1271 = vor.u32 1.1754944e-38, %v1270
      %v1272 = vsel %vm1269, %v1271, %v1267
      %v1273 = vmul.f32 %v1236, %v1258
      %v1274 = vmul.f32 %v1238, %v1272
      %v1275 = vld [vmem:[%s6] sm:$0xff]
      %v1276 = vld [vmem:[%s6 + $0x8] sm:$0xff]
      %v1277 = vmul.f32 %v1275, %v1273
      %v1278 = vmul.f32 %v1276, %v1274
      %v1279 = vld [vmem:[%s878] sm:$0xff]
      %v1280 = vld [vmem:[%s878 + $0x8] sm:$0xff]
      %v1281 = vmul.f32 %v1279, %v1273
      %v1282 = vmul.f32 %v1280, %v1274
      %v1284 = vsel %vm796, %v1281, 0
      %v1287 = vsel %vm796, %v1282, 0
      %1289 = vmatpush.msra.mxu0 0.0
      %1290 = vmatpush.msra.mxu0 0.0
      %1291 = vmatpush.msra.mxu0 0.0
      %1292 = vmatpush.msra.mxu0 0.0
      %1293 = vmatpush.msra.mxu0 0.0
      %1294 = vmatpush.msra.mxu0 0.0
      %1295 = vmatpush.msra.mxu0 0.0
      %1296 = vmatpush.msra.mxu0 0.0
      %1297 = vmatpush.msra.mxu0 0.0
      %1298 = vmatpush.msra.mxu0 0.0
      %1299 = vmatpush.msra.mxu0 0.0
      %1300 = vmatpush.msra.mxu0 0.0
      %1301 = vmatpush.msra.mxu0 0.0
      %1302 = vmatpush.msra.mxu0 0.0
      %1303 = vmatpush.msra.mxu0 %v598
      %1304 = vmatpush.msra.mxu0 %v595
      %1305 = vmatmul.f32.gmra.mxu0 %v1284
      %v1306 = vpop.f32.mrf.mxu0
      %v1307 = vadd.f32 0.0, %v1306
      %1308 = vmatmul.f32.gmra.mxu0 %v1287
      %v1309 = vpop.f32.mrf.mxu0
      %v1310 = vadd.f32 0.0, %v1309
      %1311 = vdwg.mxu0
      %v1313 = vsel %vm796, %v1277, 0
      %v1316 = vsel %vm796, %v1278, 0
      %1318 = vmatpush.msra.mxu0 0.0
      %1319 = vmatpush.msra.mxu0 0.0
      %1320 = vmatpush.msra.mxu0 0.0
      %1321 = vmatpush.msra.mxu0 0.0
      %1322 = vmatpush.msra.mxu0 0.0
      %1323 = vmatpush.msra.mxu0 0.0
      %1324 = vmatpush.msra.mxu0 0.0
      %1325 = vmatpush.msra.mxu0 0.0
      %1326 = vmatpush.msra.mxu0 0.0
      %1327 = vmatpush.msra.mxu0 0.0
      %1328 = vmatpush.msra.mxu0 0.0
      %1329 = vmatpush.msra.mxu0 0.0
      %1330 = vmatpush.msra.mxu0 0.0
      %1331 = vmatpush.msra.mxu0 0.0
      %1332 = vmatpush.msra.mxu0 %v569
      %1333 = vmatpush.msra.mxu0 %v566
      %1334 = vmatmul.f32.gmra.mxu0 %v1313
      %v1335 = vpop.f32.mrf.mxu0
      %v1336 = vadd.f32 %v1307, %v1335
      %1337 = vmatmul.f32.gmra.mxu0 %v1316
      %v1338 = vpop.f32.mrf.mxu0
      %v1339 = vadd.f32 %v1310, %v1338
      %1340 = vdwg.mxu0
      %v1341 = vld [vmem:[%s941] sm:$0xff]
      %v1342 = vld [vmem:[%s941 + $0x8] sm:$0xff]
      %v1343 = vmul.f32 %v1341, %v1273
      %v1344 = vmul.f32 %v1342, %v1274
      %v1346 = vsel %vm796, %v1343, 0
      %v1349 = vsel %vm796, %v1344, 0
      %1351 = vmatpush.msra.mxu0 0.0
      %1352 = vmatpush.msra.mxu0 0.0
      %1353 = vmatpush.msra.mxu0 0.0
      %1354 = vmatpush.msra.mxu0 0.0
      %1355 = vmatpush.msra.mxu0 0.0
      %1356 = vmatpush.msra.mxu0 0.0
      %1357 = vmatpush.msra.mxu0 0.0
      %1358 = vmatpush.msra.mxu0 0.0
      %1359 = vmatpush.msra.mxu0 0.0
      %1360 = vmatpush.msra.mxu0 0.0
      %1361 = vmatpush.msra.mxu0 0.0
      %1362 = vmatpush.msra.mxu0 0.0
      %1363 = vmatpush.msra.mxu0 0.0
      %1364 = vmatpush.msra.mxu0 0.0
      %1365 = vmatpush.msra.mxu0 %v627
      %1366 = vmatpush.msra.mxu0 %v624
      %1367 = vmatmul.f32.gmra.mxu0 %v1346
      %v1368 = vpop.f32.mrf.mxu0
      %v1369 = vadd.f32 0.0, %v1368
      %1370 = vmatmul.f32.gmra.mxu0 %v1349
      %v1371 = vpop.f32.mrf.mxu0
      %v1372 = vadd.f32 0.0, %v1371
      %1373 = vdwg.mxu0
      %v1374 = vadd.f32 %v1336, %v1369
      %v1375 = vadd.f32 %v1339, %v1372
      %v1376 = vmax.f32 %v1374, 0.0
      %v1377 = vmax.f32 %v1375, 0.0
      %v1378 = vadd.f32 %v525, %v1376
      %v1379 = vadd.f32 %v528, %v1377
      %v1380 = vmax.f32 %v1378, 0.0
      %v1381 = vmax.f32 %v1379, 0.0
      %1382 = vmatpush.msra.mxu0 %v715
      %1383 = vmatpush.msra.mxu0 %v714
      %1384 = vmatpush.msra.mxu0 %v713
      %1385 = vmatpush.msra.mxu0 %v712
      %1386 = vmatpush.msra.mxu0 %v711
      %1387 = vmatpush.msra.mxu0 %v710
      %1388 = vmatpush.msra.mxu0 %v709
      %1389 = vmatpush.msra.mxu0 %v708
      %1390 = vmatpush.msra.mxu0 %v707
      %1391 = vmatpush.msra.mxu0 %v706
      %1392 = vmatpush.msra.mxu0 %v705
      %1393 = vmatpush.msra.mxu0 %v704
      %1394 = vmatpush.msra.mxu0 %v703
      %1395 = vmatpush.msra.mxu0 %v702
      %1396 = vmatpush.msra.mxu0 %v701
      %1397 = vmatpush.msra.mxu0 %v700
      %1398 = vmatmul.f32.gmra.mxu0 %v1380
      %v1399 = vpop.f32.mrf.mxu0
      %v1400 = vadd.f32 0.0, %v1399
      %1401 = vmatmul.f32.gmra.mxu0 %v1381
      %v1402 = vpop.f32.mrf.mxu0
      %v1403 = vadd.f32 0.0, %v1402
      %1404 = vdwg.mxu0
      %v1406 = vsel %vm719, %v1400, 0
      %v1409 = vsel %vm719, %v1403, 0
      %1411 = vmatpush.msra.mxu0 0.0
      %1412 = vmatpush.msra.mxu0 0.0
      %1413 = vmatpush.msra.mxu0 0.0
      %1414 = vmatpush.msra.mxu0 0.0
      %1415 = vmatpush.msra.mxu0 0.0
      %1416 = vmatpush.msra.mxu0 0.0
      %1417 = vmatpush.msra.mxu0 0.0
      %1418 = vmatpush.msra.mxu0 0.0
      %1419 = vmatpush.msra.mxu0 0.0
      %1420 = vmatpush.msra.mxu0 0.0
      %1421 = vmatpush.msra.mxu0 0.0
      %1422 = vmatpush.msra.mxu0 0.0
      %1423 = vmatpush.msra.mxu0 0.0
      %1424 = vmatpush.msra.mxu0 0.0
      %1425 = vmatpush.msra.mxu0 0.0
      %1426 = vmatpush.msra.mxu0 %v716
      %1427 = vmatmul.f32.gmra.mxu0 %v1406
      %v1428 = vpop.f32.mrf.mxu0
      %v1429 = vadd.f32 0.0, %v1428
      %1430 = vmatmul.f32.gmra.mxu0 %v1409
      %v1431 = vpop.f32.mrf.mxu0
      %v1432 = vadd.f32 0.0, %v1431
      %1433 = vdwg.mxu0
      %v1434 = vsub.f32 %v1380, %v1429
      %v1435 = vsub.f32 %v1381, %v1432
      %v1436 = vmul.f32 %v1434, %v1434
      %v1437 = vmul.f32 %v1435, %v1435
      %1438 = vmatpush.msra.mxu0 %v715
      %1439 = vmatpush.msra.mxu0 %v714
      %1440 = vmatpush.msra.mxu0 %v713
      %1441 = vmatpush.msra.mxu0 %v712
      %1442 = vmatpush.msra.mxu0 %v711
      %1443 = vmatpush.msra.mxu0 %v710
      %1444 = vmatpush.msra.mxu0 %v709
      %1445 = vmatpush.msra.mxu0 %v708
      %1446 = vmatpush.msra.mxu0 %v707
      %1447 = vmatpush.msra.mxu0 %v706
      %1448 = vmatpush.msra.mxu0 %v705
      %1449 = vmatpush.msra.mxu0 %v704
      %1450 = vmatpush.msra.mxu0 %v703
      %1451 = vmatpush.msra.mxu0 %v702
      %1452 = vmatpush.msra.mxu0 %v701
      %1453 = vmatpush.msra.mxu0 %v700
      %1454 = vmatmul.f32.gmra.mxu0 %v1436
      %v1455 = vpop.f32.mrf.mxu0
      %v1456 = vadd.f32 1e-05, %v1455
      %1457 = vmatmul.f32.gmra.mxu0 %v1437
      %v1458 = vpop.f32.mrf.mxu0
      %v1459 = vadd.f32 1e-05, %v1458
      %1460 = vdwg.mxu0
      %v1461 = vrsqrt.pop %v1456
      %v1462 = vmul.f32 %v1461, %v1456
      %v1463 = vmul.f32 %v1462, %v1461
      %v1464 = vmul.f32 0.5, %v1463
      %v1465 = vsub.f32 1.5, %v1464
      %v1466 = vmul.f32 %v1461, %v1465
      %vm1467 = vweird.f32 %v1456
      %vm1468 = vweird.f32 %v1461
      %vm1469 = vmor %vm1467, %vm1468
      %v1470 = vsel %vm1469, %v1461, %v1466
      %v1471 = vrsqrt.pop %v1459
      %v1472 = vmul.f32 %v1471, %v1459
      %v1473 = vmul.f32 %v1472, %v1471
      %v1474 = vmul.f32 0.5, %v1473
      %v1475 = vsub.f32 1.5, %v1474
      %v1476 = vmul.f32 %v1471, %v1475
      %vm1477 = vweird.f32 %v1459
      %vm1478 = vweird.f32 %v1471
      %vm1479 = vmor %vm1477, %vm1478
      %v1480 = vsel %vm1479, %v1471, %v1476
      %v1482 = vsel %vm719, %v1470, 0
      %v1485 = vsel %vm719, %v1480, 0
      %1487 = vmatpush.msra.mxu0 0.0
      %1488 = vmatpush.msra.mxu0 0.0
      %1489 = vmatpush.msra.mxu0 0.0
      %1490 = vmatpush.msra.mxu0 0.0
      %1491 = vmatpush.msra.mxu0 0.0
      %1492 = vmatpush.msra.mxu0 0.0
      %1493 = vmatpush.msra.mxu0 0.0
      %1494 = vmatpush.msra.mxu0 0.0
      %1495 = vmatpush.msra.mxu0 0.0
      %1496 = vmatpush.msra.mxu0 0.0
      %1497 = vmatpush.msra.mxu0 0.0
      %1498 = vmatpush.msra.mxu0 0.0
      %1499 = vmatpush.msra.mxu0 0.0
      %1500 = vmatpush.msra.mxu0 0.0
      %1501 = vmatpush.msra.mxu0 0.0
      %1502 = vmatpush.msra.mxu0 %v716
      %1503 = vmatmul.f32.gmra.mxu0 %v1482
      %v1504 = vpop.f32.mrf.mxu0
      %v1505 = vadd.f32 0.0, %v1504
      %1506 = vmatmul.f32.gmra.mxu0 %v1485
      %v1507 = vpop.f32.mrf.mxu0
      %v1508 = vadd.f32 0.0, %v1507
      %1509 = vdwg.mxu0
      %v1510 = vmul.f32 %v1434, %v1505
      %v1511 = vmul.f32 %v1435, %v1508
      %v1512 = vmul.f32 %v1510, %v1114
      %v1513 = vmul.f32 %v1511, %v1114
      %v1514 = vadd.f32 %v1512, %v1119
      %v1515 = vadd.f32 %v1513, %v1119
      %s1516 = scalar_lea.vmem %s474, 16
      %1517 = vst [vmem:[%s1516] sm:$0xff] %v1514
      %1518 = vst [vmem:[%s1516 + $0x8] sm:$0xff] %v1515
      %s1519 = smul.u32 2, %s25
      %p1520 = scmp.lt.s32.totalorder %s1519, 7
      %s1521 = scalar_select %p1520, %s1519, 7
      %s1522 = smul.addr %s1521, 2
      %s1523 = smul.addr %s1522, 8
      %s1524 = scalar_lea.vmem %s14, %s1523
      // Predicated region
      $region77: #{mrstan_block.1} parent=75 // pred_check
        %p1525 = pneg %p342
      $region78: #{mrstan_block.1} parent=75 // pred_check_branch
        %1527 = sbr.rel (%p1525) target = $region80
      $region79: #{mrstan_block.1} parent=75 // pred_region
        %s1528 = smul.u32 2, %s25
      $region80: #{mrstan_block.1} parent=75 // pred_fallthru
        _
    $region76: #{mrstan_block.1} parent=5 // pred_fallthru
      _
    %p1529 = scmp.le.s32.totalorder 2, %s20
    // Predicated region
    $region81: #{mrstan_block.1} parent=5 // pred_check
      %p1530 = pneg %p1529
    $region82: #{mrstan_block.1} parent=5 // pred_check_branch
      %1532 = sbr.rel (%p1530) target = $region84
    $region83: #{mrstan_block.1} parent=5 // pred_region
      %s1533 = ssub.s32 %s20, 2
      // Predicated region
      $region85: #{mrstan_block.1} parent=83 // pred_check
        %p1534 = pneg %p348
      $region86: #{mrstan_block.1} parent=83 // pred_check_branch
        %1536 = sbr.rel (%p1534) target = $region88
      $region87: #{mrstan_block.1} parent=83 // pred_region
        %s1537 = smul.u32 2, %s26
        %p1538 = scmp.lt.s32.totalorder %s1537, 7
        %s1539 = scalar_select %p1538, %s1537, 7
        %s1540 = smul.addr %s1539, 2
        %s1541 = smul.addr %s1540, 8
        %s1542 = scalar_lea.vmem %s14, %s1541
      $region88: #{mrstan_block.1} parent=83 // pred_fallthru
        _
    $region84: #{mrstan_block.1} parent=5 // pred_fallthru
      _
  $region6: #{mrstan_block.1} parent=0 // loop_footer
    %s24 = sadd.s32 1, %s20
  $region7: #{mrstan_block.1} parent=0 // loop_footer_branch
    %19 = sbr.rel target = $region3
  $region8: #{mrstan_block.1} parent=0 // loop_exit
    _

</llo_original>
